<compile_context>
chip_gen: v6e
topology: v6e:2x2x1
jax: 0.10.0
libtpu: 0.0.40
codegen_flags: <defaults>
</compile_context>

<pallas_src>
import math

import jax
import jax.numpy as jnp
from jax import lax
from jax.experimental import pallas as pl
from jax.experimental.pallas import tpu as pltpu  # noqa: F401

# -------------------- config (small synthetic shapes) --------------------
BATCH = 2
SEQ = 8
HIDDEN = 32          # base_model.config.hidden_size (synthetic)
N_HEADS = 2
HEAD_DIM = HIDDEN // N_HEADS
FFN = 64
VOCAB = 50
EXP_HIDDEN = 16      # exp_hidden_size (small analogue of the default 64)
NUM_CLASSES = 6

NSEQ = 2 * BATCH     # input-pass + rationale-pass sequences batched together
ROWS = NSEQ * SEQ    # flattened (sequence, position) rows


# ============================ fused Pallas kernel ============================

def _layer_norm(v, g, b):
    mu = jnp.mean(v, axis=-1, keepdims=True)
    var = jnp.mean((v - mu) ** 2, axis=-1, keepdims=True)
    return (v - mu) * lax.rsqrt(var + 1e-12) * g + b


def _mm(a, b):
    return jnp.dot(a, b, preferred_element_type=jnp.float32)


def _rac_fused_kernel(
    x0_ref, mask_ref,
    ln_emb_g_ref, ln_emb_b_ref,
    wqkv_ref, bqkv_ref, wo_ref, bo_ref,
    ln1_g_ref, ln1_b_ref,
    w1_ref, b1_ref, w2_ref, b2_ref,
    ln2_g_ref, ln2_b_ref,
    wp_ref, bp_ref,
    wcls_ref, bcls_ref,
    wcl_ref, bcl_ref,
    gru_wi_ref, gru_bi_ref,
    gru_whf_ref, gru_bhf_ref, gru_whb_ref, gru_bhb_ref,
    exp_wf_ref, exp_wb_ref, exp_b_ref,
    cls_ref, exp_ref, feat_ref,
):
    f32 = jnp.float32
    H, E = HIDDEN, EXP_HIDDEN

    # ---------------- embedding LayerNorm ----------------
    x = _layer_norm(x0_ref[...], ln_emb_g_ref[...], ln_emb_b_ref[...])   # (ROWS, H)

    # ---------------- self-attention (all sequences & heads, no grid) -----
    mask = mask_ref[...]                                                 # (NSEQ, S)
    bias = ((mask - 1.0) * 1e9)[:, None, :]                              # (NSEQ, 1, S)
    qkv = _mm(x, wqkv_ref[...]) + bqkv_ref[...]                          # (ROWS, 3H)
    wo = wo_ref[...]
    scale = 1.0 / math.sqrt(HEAD_DIM)
    attn = jnp.zeros((ROWS, H), f32)
    for h in range(N_HEADS):                                             # static unroll
        lo = h * HEAD_DIM
        q3 = qkv[:, lo:lo + HEAD_DIM].reshape(NSEQ, SEQ, HEAD_DIM)
        k3 = qkv[:, H + lo:H + lo + HEAD_DIM].reshape(NSEQ, SEQ, HEAD_DIM)
        v3 = qkv[:, 2 * H + lo:2 * H + lo + HEAD_DIM].reshape(NSEQ, SEQ, HEAD_DIM)
        s = jnp.einsum('bqd,bkd->bqk', q3, k3,
                       preferred_element_type=f32) * scale + bias        # (NSEQ,S,S)
        s = s - jnp.max(s, axis=-1, keepdims=True)
        p = jnp.exp(s)
        p = p * pl.reciprocal(jnp.sum(p, axis=-1, keepdims=True), approx=True)
        ctx = jnp.einsum('bqk,bkd->bqd', p, v3,
                         preferred_element_type=f32).reshape(ROWS, HEAD_DIM)
        attn = attn + _mm(ctx, wo[lo:lo + HEAD_DIM, :])
    x = _layer_norm(x + attn + bo_ref[...], ln1_g_ref[...], ln1_b_ref[...])

    # ---------------- feed-forward + residual LN ----------------
    # TODO(synk): HF BERT uses exact (erf) GELU; tanh approximation used here.
    hmid = jax.nn.gelu(_mm(x, w1_ref[...]) + b1_ref[...], approximate=True)
    x = _layer_norm(x + _mm(hmid, w2_ref[...]) + b2_ref[...],
                    ln2_g_ref[...], ln2_b_ref[...])                      # sequence output

    # ---------------- pooler: pick CLS rows via a tiny selection matmul ---
    rid = lax.broadcasted_iota(jnp.int32, (NSEQ, ROWS), 0)
    cid = lax.broadcasted_iota(jnp.int32, (NSEQ, ROWS), 1)
    sel = (cid == rid * SEQ).astype(f32)                                 # (NSEQ, ROWS)
    pooled = jnp.tanh(_mm(_mm(sel, x), wp_ref[...]) + bp_ref[...])       # (NSEQ, H)

    # ---------------- classification head (input pass only) ---------------
    # TODO(synk): nn.Dropout(0.1) in ClsLayers/CLLayers is eval-mode identity.
    cls_ref[...] = _mm(pooled[:BATCH], wcls_ref[...]) + bcls_ref[...]

    # ---------------- contrastive projection + L2 normalize (both passes) -
    y = _mm(pooled, wcl_ref[...]) + bcl_ref[...]                         # (NSEQ, E)
    nrm = jnp.sqrt(jnp.sum(y * y, axis=-1, keepdims=True))
    feat_ref[...] = y / jnp.maximum(nrm, 1e-12)

    # ---------------- rationale head: bidirectional GRU + sigmoid ---------
    # batch_first=False semantics reproduced: GRU time axis = batch axis
    # (T = BATCH), GRU batch axis = SEQ.  Input projections for both
    # directions are hoisted into ONE matmul; hidden gates use ONE fused
    # (E, 3E) matmul per step (PyTorch gate order [r, z, n]).
    x_seq = x[:BATCH * SEQ]                                              # input pass rows
    gi = _mm(x_seq, gru_wi_ref[...]) + gru_bi_ref[...]                   # (B*S, 6E)
    gi_f = gi[:, :3 * E].reshape(BATCH, SEQ, 3 * E)
    gi_b = gi[:, 3 * E:].reshape(BATCH, SEQ, 3 * E)
    whf, bhf = gru_whf_ref[...], gru_bhf_ref[...]
    whb, bhb = gru_whb_ref[...], gru_bhb_ref[...]

    def gru_cell(gi_t, hstate, wh, bh):
        gh = _mm(hstate, wh) + bh                                        # (S, 3E)
        r = jax.nn.sigmoid(gi_t[:, :E] + gh[:, :E])
        z = jax.nn.sigmoid(gi_t[:, E:2 * E] + gh[:, E:2 * E])
        n = jnp.tanh(gi_t[:, 2 * E:] + r * gh[:, 2 * E:])
        return (1.0 - z) * n + z * hstate

    hf = [None] * BATCH
    hb = [None] * BATCH
    hstate = jnp.zeros((SEQ, E), f32)
    for t in range(BATCH):                       # forward direction
        hstate = gru_cell(gi_f[t], hstate, whf, bhf)
        hf[t] = hstate
    hstate = jnp.zeros((SEQ, E), f32)
    for t in range(BATCH - 1, -1, -1):           # backward direction
        hstate = gru_cell(gi_b[t], hstate, whb, bhb)
        hb[t] = hstate

    # exp head: Linear(2E -> 1) + Sigmoid, emitted lane-dense as (BATCH, SEQ)
    wf_row, wb_row, eb = exp_wf_ref[...], exp_wb_ref[...], exp_b_ref[...]
    nt = (((1,), (1,)), ((), ()))                # contract both last dims (A @ B^T)
    rows = []
    for t in range(BATCH):
        logit = (lax.dot_general(wf_row, hf[t], nt, preferred_element_type=f32)
                 + lax.dot_general(wb_row, hb[t], nt, preferred_element_type=f32)
                 + eb)                                                   # (1, SEQ)
        rows.append(jax.nn.sigmoid(logit) * mask[t:t + 1, :])
    exp_ref[...] = jnp.concatenate(rows, axis=0)                         # (BATCH, SEQ)


# ============================ model glue ============================

def rac_forward(params, input_ids, attention_mask, rationale_ids, rationale_mask):
    has_rationale = rationale_ids is not None
    if not has_rationale:
        rationale_ids, rationale_mask = input_ids, attention_mask

    # Batch the two encoder passes (input + rationale) into one 2B-seq pass.
    ids = jnp.concatenate([input_ids, rationale_ids], axis=0)            # (2B, S)
    mask = jnp.concatenate([attention_mask, rationale_mask],
                           axis=0).astype(jnp.float32)                   # (2B, S)
    # TODO(synk): token-embedding gather stays in XLA (data-dependent gather).
    emb = jnp.take(params["word_emb"], ids, axis=0) + params["pos_emb"][None, :, :]
    x0 = emb.reshape(ROWS, HIDDEN).astype(jnp.float32)

    cls_out, exp_out, feats = pl.pallas_call(
        _rac_fused_kernel,
        out_shape=(
            jax.ShapeDtypeStruct((BATCH, NUM_CLASSES), jnp.float32),
            jax.ShapeDtypeStruct((BATCH, SEQ), jnp.float32),
            jax.ShapeDtypeStruct((NSEQ, EXP_HIDDEN), jnp.float32),
        ),
    )(
        x0, mask,
        params["ln_emb_g"], params["ln_emb_b"],
        params["wqkv"], params["bqkv"], params["wo"], params["bo"],
        params["ln1_g"], params["ln1_b"],
        params["w1"], params["b1"], params["w2"], params["b2"],
        params["ln2_g"], params["ln2_b"],
        params["wp"], params["bp"],
        params["wcls"], params["bcls"],
        params["wcl"], params["bcl"],
        params["gru_wi"], params["gru_bi"],
        params["gru_whf"], params["gru_bhf"], params["gru_whb"], params["gru_bhb"],
        params["exp_wf"], params["exp_wb"], params["exp_b"],
    )

    if not has_rationale:
        return cls_out, exp_out, None
    # torch.cat([f1.unsqueeze(1), f2.unsqueeze(1)], dim=1)
    r_outputs = jnp.stack([feats[:BATCH], feats[BATCH:]], axis=1)        # (B, 2, E)
    return cls_out, exp_out, r_outputs


# ============================ parameter init ============================

def init_params(key):
    keys = iter(jax.random.split(key, 32))
    H, E = HIDDEN, EXP_HIDDEN

    def nrm(shape, scale=0.02):
        return (scale * jax.random.normal(next(keys), shape)).astype(jnp.float32)

    def zeros(shape):
        return jnp.zeros(shape, jnp.float32)

    def ones(shape):
        return jnp.ones(shape, jnp.float32)

    # biases pre-shaped to (1, n); fused weight layouts built once at init
    return dict(
        word_emb=nrm((VOCAB, H)), pos_emb=nrm((SEQ, H)),
        ln_emb_g=ones((1, H)), ln_emb_b=zeros((1, H)),
        wqkv=nrm((H, 3 * H)), bqkv=zeros((1, 3 * H)),
        wo=nrm((H, H)), bo=zeros((1, H)),
        ln1_g=ones((1, H)), ln1_b=zeros((1, H)),
        w1=nrm((H, FFN)), b1=zeros((1, FFN)),
        w2=nrm((FFN, H)), b2=zeros((1, H)),
        ln2_g=ones((1, H)), ln2_b=zeros((1, H)),
        wp=nrm((H, H)), bp=zeros((1, H)),
        wcls=nrm((H, NUM_CLASSES)), bcls=zeros((1, NUM_CLASSES)),
        wcl=nrm((H, E)), bcl=zeros((1, E)),
        # GRU: input weights [fwd r|z|n | bwd r|z|n] fused to one (H, 6E) matmul
        gru_wi=nrm((H, 6 * E)), gru_bi=nrm((1, 6 * E), 0.01),
        gru_whf=nrm((E, 3 * E)), gru_bhf=nrm((1, 3 * E), 0.01),
        gru_whb=nrm((E, 3 * E)), gru_bhb=nrm((1, 3 * E), 0.01),
        exp_wf=nrm((1, E)), exp_wb=nrm((1, E)), exp_b=zeros((1, 1)),
    )


# ============================ main ============================

if __name__ == "__main__":
    key = jax.random.PRNGKey(0)
    pkey, ikey, rkey = jax.random.split(key, 3)
    params = init_params(pkey)

    input_ids = jax.random.randint(ikey, (BATCH, SEQ), 0, VOCAB)
    rationale_ids = jax.random.randint(rkey, (BATCH, SEQ), 0, VOCAB)
    attention_mask = jnp.ones((BATCH, SEQ), jnp.float32)
    rationale_mask = jnp.ones((BATCH, SEQ), jnp.float32)

    fwd = jax.jit(rac_forward)
    cls_out, exp_out, r_out = fwd(params, input_ids, attention_mask,
                                  rationale_ids, rationale_mask)
    cls_out, exp_out, r_out = jax.block_until_ready((cls_out, exp_out, r_out))

    assert cls_out.shape == (BATCH, NUM_CLASSES)
    assert exp_out.shape == (BATCH, SEQ)
    assert r_out.shape == (BATCH, 2, EXP_HIDDEN)
    assert bool(jnp.all(jnp.isfinite(cls_out)))
    assert bool(jnp.all(jnp.isfinite(exp_out)))
    assert bool(jnp.all(jnp.isfinite(r_out)))
    print("KERNEL_OK")
</pallas_src>

<mosaic_0001>
module attributes {stable_mosaic.version = 11 : i64} {
  func.func @_rac_fused_kernel(%arg0: memref<32x32xf32, #tpu.memory_space<vmem>>, %arg1: memref<4x8xf32, #tpu.memory_space<vmem>>, %arg2: memref<1x32xf32, #tpu.memory_space<vmem>>, %arg3: memref<1x32xf32, #tpu.memory_space<vmem>>, %arg4: memref<32x96xf32, #tpu.memory_space<vmem>>, %arg5: memref<1x96xf32, #tpu.memory_space<vmem>>, %arg6: memref<32x32xf32, #tpu.memory_space<vmem>>, %arg7: memref<1x32xf32, #tpu.memory_space<vmem>>, %arg8: memref<1x32xf32, #tpu.memory_space<vmem>>, %arg9: memref<1x32xf32, #tpu.memory_space<vmem>>, %arg10: memref<32x64xf32, #tpu.memory_space<vmem>>, %arg11: memref<1x64xf32, #tpu.memory_space<vmem>>, %arg12: memref<64x32xf32, #tpu.memory_space<vmem>>, %arg13: memref<1x32xf32, #tpu.memory_space<vmem>>, %arg14: memref<1x32xf32, #tpu.memory_space<vmem>>, %arg15: memref<1x32xf32, #tpu.memory_space<vmem>>, %arg16: memref<32x32xf32, #tpu.memory_space<vmem>>, %arg17: memref<1x32xf32, #tpu.memory_space<vmem>>, %arg18: memref<32x6xf32, #tpu.memory_space<vmem>>, %arg19: memref<1x6xf32, #tpu.memory_space<vmem>>, %arg20: memref<32x16xf32, #tpu.memory_space<vmem>>, %arg21: memref<1x16xf32, #tpu.memory_space<vmem>>, %arg22: memref<32x96xf32, #tpu.memory_space<vmem>>, %arg23: memref<1x96xf32, #tpu.memory_space<vmem>>, %arg24: memref<16x48xf32, #tpu.memory_space<vmem>>, %arg25: memref<1x48xf32, #tpu.memory_space<vmem>>, %arg26: memref<16x48xf32, #tpu.memory_space<vmem>>, %arg27: memref<1x48xf32, #tpu.memory_space<vmem>>, %arg28: memref<1x16xf32, #tpu.memory_space<vmem>>, %arg29: memref<1x16xf32, #tpu.memory_space<vmem>>, %arg30: memref<1x1xf32, #tpu.memory_space<vmem>>, %arg31: memref<2x6xf32, #tpu.memory_space<vmem>>, %arg32: memref<2x8xf32, #tpu.memory_space<vmem>>, %arg33: memref<4x16xf32, #tpu.memory_space<vmem>>) attributes {dimension_semantics = [], scalar_prefetch = 0 : i64, scratch_operands = 0 : i64, tpu.core_type = #tpu.core_type<tc>} {
    %c0 = arith.constant 0 : index
    %c0_0 = arith.constant 0 : index
    %0 = vector.load %arg0[%c0, %c0_0] : memref<32x32xf32, #tpu.memory_space<vmem>>, vector<32x32xf32>
    %c0_1 = arith.constant 0 : index
    %c0_2 = arith.constant 0 : index
    %1 = vector.load %arg2[%c0_1, %c0_2] : memref<1x32xf32, #tpu.memory_space<vmem>>, vector<1x32xf32>
    %c0_3 = arith.constant 0 : index
    %c0_4 = arith.constant 0 : index
    %2 = vector.load %arg3[%c0_3, %c0_4] : memref<1x32xf32, #tpu.memory_space<vmem>>, vector<1x32xf32>
    %cst = arith.constant dense<0.000000e+00> : vector<32xf32>
    %3 = vector.multi_reduction <add>, %0, %cst [1] : vector<32x32xf32> to vector<32xf32>
    %4 = vector.shape_cast %3 : vector<32xf32> to vector<32x1xf32>
    %cst_5 = arith.constant 3.200000e+01 : f32
    %5 = vector.broadcast %cst_5 : f32 to vector<32x1xf32>
    %6 = arith.divf %4, %5 : vector<32x1xf32>
    %7 = vector.broadcast %6 : vector<32x1xf32> to vector<32x32xf32>
    %8 = arith.subf %0, %7 : vector<32x32xf32>
    %9 = arith.mulf %8, %8 : vector<32x32xf32>
    %cst_6 = arith.constant dense<0.000000e+00> : vector<32xf32>
    %10 = vector.multi_reduction <add>, %9, %cst_6 [1] : vector<32x32xf32> to vector<32xf32>
    %11 = vector.shape_cast %10 : vector<32xf32> to vector<32x1xf32>
    %cst_7 = arith.constant 3.200000e+01 : f32
    %12 = vector.broadcast %cst_7 : f32 to vector<32x1xf32>
    %13 = arith.divf %11, %12 : vector<32x1xf32>
    %14 = vector.broadcast %6 : vector<32x1xf32> to vector<32x32xf32>
    %15 = arith.subf %0, %14 : vector<32x32xf32>
    %cst_8 = arith.constant 9.99999996E-13 : f32
    %16 = vector.broadcast %cst_8 : f32 to vector<32x1xf32>
    %17 = arith.addf %13, %16 : vector<32x1xf32>
    %18 = math.rsqrt %17 : vector<32x1xf32>
    %19 = vector.broadcast %18 : vector<32x1xf32> to vector<32x32xf32>
    %20 = arith.mulf %15, %19 : vector<32x32xf32>
    %21 = vector.broadcast %1 : vector<1x32xf32> to vector<32x32xf32>
    %22 = arith.mulf %20, %21 : vector<32x32xf32>
    %23 = vector.broadcast %2 : vector<1x32xf32> to vector<32x32xf32>
    %24 = arith.addf %22, %23 : vector<32x32xf32>
    %c0_9 = arith.constant 0 : index
    %c0_10 = arith.constant 0 : index
    %25 = vector.load %arg1[%c0_9, %c0_10] : memref<4x8xf32, #tpu.memory_space<vmem>>, vector<4x8xf32>
    %cst_11 = arith.constant 1.000000e+00 : f32
    %26 = vector.broadcast %cst_11 : f32 to vector<4x8xf32>
    %27 = arith.subf %25, %26 : vector<4x8xf32>
    %cst_12 = arith.constant 1.000000e+09 : f32
    %28 = vector.broadcast %cst_12 : f32 to vector<4x8xf32>
    %29 = arith.mulf %27, %28 : vector<4x8xf32>
    %30 = vector.shape_cast %29 : vector<4x8xf32> to vector<4x1x8xf32>
    %c0_13 = arith.constant 0 : index
    %c0_14 = arith.constant 0 : index
    %31 = vector.load %arg4[%c0_13, %c0_14] : memref<32x96xf32, #tpu.memory_space<vmem>>, vector<32x96xf32>
    %cst_15 = arith.constant dense<0.000000e+00> : vector<32x96xf32>
    %32 = tpu.matmul %24, %31, %cst_15 {dimension_numbers = #tpu.dot_dimension_numbers<[1], [0], [0], [1], [0, 0, 1, 1], [], []>} : vector<32x32xf32>, vector<32x96xf32>, vector<32x96xf32> -> vector<32x96xf32>
    %c0_16 = arith.constant 0 : index
    %c0_17 = arith.constant 0 : index
    %33 = vector.load %arg5[%c0_16, %c0_17] : memref<1x96xf32, #tpu.memory_space<vmem>>, vector<1x96xf32>
    %34 = vector.broadcast %33 : vector<1x96xf32> to vector<32x96xf32>
    %35 = arith.addf %32, %34 : vector<32x96xf32>
    %c0_18 = arith.constant 0 : index
    %c0_19 = arith.constant 0 : index
    %36 = vector.load %arg6[%c0_18, %c0_19] : memref<32x32xf32, #tpu.memory_space<vmem>>, vector<32x32xf32>
    %cst_20 = arith.constant 0.000000e+00 : f32
    %37 = vector.broadcast %cst_20 : f32 to vector<32x32xf32>
    %38 = vector.extract_strided_slice %35 {offsets = [0, 0], sizes = [32, 16], strides = [1, 1]} : vector<32x96xf32> to vector<32x16xf32>
    %39 = vector.shape_cast %38 : vector<32x16xf32> to vector<4x8x16xf32>
    %40 = vector.extract_strided_slice %35 {offsets = [0, 32], sizes = [32, 16], strides = [1, 1]} : vector<32x96xf32> to vector<32x16xf32>
    %41 = vector.shape_cast %40 : vector<32x16xf32> to vector<4x8x16xf32>
    %42 = vector.extract_strided_slice %35 {offsets = [0, 64], sizes = [32, 16], strides = [1, 1]} : vector<32x96xf32> to vector<32x16xf32>
    %43 = vector.shape_cast %42 : vector<32x16xf32> to vector<4x8x16xf32>
    "tpu.trace_start"() <{level = 10 : i32, message = "bqd,bkd->bqk"}> : () -> ()
    %cst_21 = arith.constant dense<0.000000e+00> : vector<4x8x8xf32>
    %44 = tpu.matmul %39, %41, %cst_21 {dimension_numbers = #tpu.dot_dimension_numbers<[2], [2], [1], [1], [0, 0, 0, 1, 1, 1], [0], [0]>} : vector<4x8x16xf32>, vector<4x8x16xf32>, vector<4x8x8xf32> -> vector<4x8x8xf32>
    "tpu.trace_stop"() : () -> ()
    %cst_22 = arith.constant 2.500000e-01 : f32
    %45 = vector.broadcast %cst_22 : f32 to vector<4x8x8xf32>
    %46 = arith.mulf %44, %45 : vector<4x8x8xf32>
    %47 = vector.broadcast %30 : vector<4x1x8xf32> to vector<4x8x8xf32>
    %48 = arith.addf %46, %47 : vector<4x8x8xf32>
    %cst_23 = arith.constant dense<0xFF800000> : vector<4x8xf32>
    %49 = vector.multi_reduction <maximumf>, %48, %cst_23 [2] : vector<4x8x8xf32> to vector<4x8xf32>
    %50 = vector.shape_cast %49 : vector<4x8xf32> to vector<4x8x1xf32>
    %51 = vector.broadcast %50 : vector<4x8x1xf32> to vector<4x8x8xf32>
    %52 = arith.subf %48, %51 : vector<4x8x8xf32>
    %53 = math.exp %52 : vector<4x8x8xf32>
    %cst_24 = arith.constant dense<0.000000e+00> : vector<4x8xf32>
    %54 = vector.multi_reduction <add>, %53, %cst_24 [2] : vector<4x8x8xf32> to vector<4x8xf32>
    %55 = vector.shape_cast %54 : vector<4x8xf32> to vector<4x8x1xf32>
    %56 = tpu.reciprocal %55 {approx = true} : vector<4x8x1xf32> -> vector<4x8x1xf32>
    %57 = vector.broadcast %56 : vector<4x8x1xf32> to vector<4x8x8xf32>
    %58 = arith.mulf %53, %57 : vector<4x8x8xf32>
    "tpu.trace_start"() <{level = 10 : i32, message = "bqk,bkd->bqd"}> : () -> ()
    %cst_25 = arith.constant dense<0.000000e+00> : vector<4x8x16xf32>
    %59 = tpu.matmul %58, %43, %cst_25 {dimension_numbers = #tpu.dot_dimension_numbers<[2], [1], [1], [2], [0, 0, 0, 1, 1, 2], [0], [0]>} : vector<4x8x8xf32>, vector<4x8x16xf32>, vector<4x8x16xf32> -> vector<4x8x16xf32>
    "tpu.trace_stop"() : () -> ()
    %60 = vector.shape_cast %59 : vector<4x8x16xf32> to vector<32x16xf32>
    %61 = vector.extract_strided_slice %36 {offsets = [0, 0], sizes = [16, 32], strides = [1, 1]} : vector<32x32xf32> to vector<16x32xf32>
    %cst_26 = arith.constant dense<0.000000e+00> : vector<32x32xf32>
    %62 = tpu.matmul %60, %61, %cst_26 {dimension_numbers = #tpu.dot_dimension_numbers<[1], [0], [0], [1], [0, 0, 1, 1], [], []>} : vector<32x16xf32>, vector<16x32xf32>, vector<32x32xf32> -> vector<32x32xf32>
    %63 = arith.addf %37, %62 : vector<32x32xf32>
    %64 = vector.extract_strided_slice %35 {offsets = [0, 16], sizes = [32, 16], strides = [1, 1]} : vector<32x96xf32> to vector<32x16xf32>
    %65 = vector.shape_cast %64 : vector<32x16xf32> to vector<4x8x16xf32>
    %66 = vector.extract_strided_slice %35 {offsets = [0, 48], sizes = [32, 16], strides = [1, 1]} : vector<32x96xf32> to vector<32x16xf32>
    %67 = vector.shape_cast %66 : vector<32x16xf32> to vector<4x8x16xf32>
    %68 = vector.extract_strided_slice %35 {offsets = [0, 80], sizes = [32, 16], strides = [1, 1]} : vector<32x96xf32> to vector<32x16xf32>
    %69 = vector.shape_cast %68 : vector<32x16xf32> to vector<4x8x16xf32>
    "tpu.trace_start"() <{level = 10 : i32, message = "bqd,bkd->bqk"}> : () -> ()
    %cst_27 = arith.constant dense<0.000000e+00> : vector<4x8x8xf32>
    %70 = tpu.matmul %65, %67, %cst_27 {dimension_numbers = #tpu.dot_dimension_numbers<[2], [2], [1], [1], [0, 0, 0, 1, 1, 1], [0], [0]>} : vector<4x8x16xf32>, vector<4x8x16xf32>, vector<4x8x8xf32> -> vector<4x8x8xf32>
    "tpu.trace_stop"() : () -> ()
    %cst_28 = arith.constant 2.500000e-01 : f32
    %71 = vector.broadcast %cst_28 : f32 to vector<4x8x8xf32>
    %72 = arith.mulf %70, %71 : vector<4x8x8xf32>
    %73 = vector.broadcast %30 : vector<4x1x8xf32> to vector<4x8x8xf32>
    %74 = arith.addf %72, %73 : vector<4x8x8xf32>
    %cst_29 = arith.constant dense<0xFF800000> : vector<4x8xf32>
    %75 = vector.multi_reduction <maximumf>, %74, %cst_29 [2] : vector<4x8x8xf32> to vector<4x8xf32>
    %76 = vector.shape_cast %75 : vector<4x8xf32> to vector<4x8x1xf32>
    %77 = vector.broadcast %76 : vector<4x8x1xf32> to vector<4x8x8xf32>
    %78 = arith.subf %74, %77 : vector<4x8x8xf32>
    %79 = math.exp %78 : vector<4x8x8xf32>
    %cst_30 = arith.constant dense<0.000000e+00> : vector<4x8xf32>
    %80 = vector.multi_reduction <add>, %79, %cst_30 [2] : vector<4x8x8xf32> to vector<4x8xf32>
    %81 = vector.shape_cast %80 : vector<4x8xf32> to vector<4x8x1xf32>
    %82 = tpu.reciprocal %81 {approx = true} : vector<4x8x1xf32> -> vector<4x8x1xf32>
    %83 = vector.broadcast %82 : vector<4x8x1xf32> to vector<4x8x8xf32>
    %84 = arith.mulf %79, %83 : vector<4x8x8xf32>
    "tpu.trace_start"() <{level = 10 : i32, message = "bqk,bkd->bqd"}> : () -> ()
    %cst_31 = arith.constant dense<0.000000e+00> : vector<4x8x16xf32>
    %85 = tpu.matmul %84, %69, %cst_31 {dimension_numbers = #tpu.dot_dimension_numbers<[2], [1], [1], [2], [0, 0, 0, 1, 1, 2], [0], [0]>} : vector<4x8x8xf32>, vector<4x8x16xf32>, vector<4x8x16xf32> -> vector<4x8x16xf32>
    "tpu.trace_stop"() : () -> ()
    %86 = vector.shape_cast %85 : vector<4x8x16xf32> to vector<32x16xf32>
    %87 = vector.extract_strided_slice %36 {offsets = [16, 0], sizes = [16, 32], strides = [1, 1]} : vector<32x32xf32> to vector<16x32xf32>
    %cst_32 = arith.constant dense<0.000000e+00> : vector<32x32xf32>
    %88 = tpu.matmul %86, %87, %cst_32 {dimension_numbers = #tpu.dot_dimension_numbers<[1], [0], [0], [1], [0, 0, 1, 1], [], []>} : vector<32x16xf32>, vector<16x32xf32>, vector<32x32xf32> -> vector<32x32xf32>
    %89 = arith.addf %63, %88 : vector<32x32xf32>
    %90 = arith.addf %24, %89 : vector<32x32xf32>
    %c0_33 = arith.constant 0 : index
    %c0_34 = arith.constant 0 : index
    %91 = vector.load %arg7[%c0_33, %c0_34] : memref<1x32xf32, #tpu.memory_space<vmem>>, vector<1x32xf32>
    %92 = vector.broadcast %91 : vector<1x32xf32> to vector<32x32xf32>
    %93 = arith.addf %90, %92 : vector<32x32xf32>
    %c0_35 = arith.constant 0 : index
    %c0_36 = arith.constant 0 : index
    %94 = vector.load %arg8[%c0_35, %c0_36] : memref<1x32xf32, #tpu.memory_space<vmem>>, vector<1x32xf32>
    %c0_37 = arith.constant 0 : index
    %c0_38 = arith.constant 0 : index
    %95 = vector.load %arg9[%c0_37, %c0_38] : memref<1x32xf32, #tpu.memory_space<vmem>>, vector<1x32xf32>
    %cst_39 = arith.constant dense<0.000000e+00> : vector<32xf32>
    %96 = vector.multi_reduction <add>, %93, %cst_39 [1] : vector<32x32xf32> to vector<32xf32>
    %97 = vector.shape_cast %96 : vector<32xf32> to vector<32x1xf32>
    %cst_40 = arith.constant 3.200000e+01 : f32
    %98 = vector.broadcast %cst_40 : f32 to vector<32x1xf32>
    %99 = arith.divf %97, %98 : vector<32x1xf32>
    %100 = vector.broadcast %99 : vector<32x1xf32> to vector<32x32xf32>
    %101 = arith.subf %93, %100 : vector<32x32xf32>
    %102 = arith.mulf %101, %101 : vector<32x32xf32>
    %cst_41 = arith.constant dense<0.000000e+00> : vector<32xf32>
    %103 = vector.multi_reduction <add>, %102, %cst_41 [1] : vector<32x32xf32> to vector<32xf32>
    %104 = vector.shape_cast %103 : vector<32xf32> to vector<32x1xf32>
    %cst_42 = arith.constant 3.200000e+01 : f32
    %105 = vector.broadcast %cst_42 : f32 to vector<32x1xf32>
    %106 = arith.divf %104, %105 : vector<32x1xf32>
    %107 = vector.broadcast %99 : vector<32x1xf32> to vector<32x32xf32>
    %108 = arith.subf %93, %107 : vector<32x32xf32>
    %cst_43 = arith.constant 9.99999996E-13 : f32
    %109 = vector.broadcast %cst_43 : f32 to vector<32x1xf32>
    %110 = arith.addf %106, %109 : vector<32x1xf32>
    %111 = math.rsqrt %110 : vector<32x1xf32>
    %112 = vector.broadcast %111 : vector<32x1xf32> to vector<32x32xf32>
    %113 = arith.mulf %108, %112 : vector<32x32xf32>
    %114 = vector.broadcast %94 : vector<1x32xf32> to vector<32x32xf32>
    %115 = arith.mulf %113, %114 : vector<32x32xf32>
    %116 = vector.broadcast %95 : vector<1x32xf32> to vector<32x32xf32>
    %117 = arith.addf %115, %116 : vector<32x32xf32>
    %c0_44 = arith.constant 0 : index
    %c0_45 = arith.constant 0 : index
    %118 = vector.load %arg10[%c0_44, %c0_45] : memref<32x64xf32, #tpu.memory_space<vmem>>, vector<32x64xf32>
    %cst_46 = arith.constant dense<0.000000e+00> : vector<32x64xf32>
    %119 = tpu.matmul %117, %118, %cst_46 {dimension_numbers = #tpu.dot_dimension_numbers<[1], [0], [0], [1], [0, 0, 1, 1], [], []>} : vector<32x32xf32>, vector<32x64xf32>, vector<32x64xf32> -> vector<32x64xf32>
    %c0_47 = arith.constant 0 : index
    %c0_48 = arith.constant 0 : index
    %120 = vector.load %arg11[%c0_47, %c0_48] : memref<1x64xf32, #tpu.memory_space<vmem>>, vector<1x64xf32>
    %121 = vector.broadcast %120 : vector<1x64xf32> to vector<32x64xf32>
    %122 = arith.addf %119, %121 : vector<32x64xf32>
    %123 = arith.mulf %122, %122 : vector<32x64xf32>
    %124 = arith.mulf %122, %123 : vector<32x64xf32>
    %cst_49 = arith.constant 4.471500e-02 : f32
    %125 = vector.broadcast %cst_49 : f32 to vector<32x64xf32>
    %126 = arith.mulf %125, %124 : vector<32x64xf32>
    %127 = arith.addf %122, %126 : vector<32x64xf32>
    %cst_50 = arith.constant 0.797884583 : f32
    %128 = vector.broadcast %cst_50 : f32 to vector<32x64xf32>
    %129 = arith.mulf %128, %127 : vector<32x64xf32>
    %130 = math.tanh %129 : vector<32x64xf32>
    %cst_51 = arith.constant 1.000000e+00 : f32
    %131 = vector.broadcast %cst_51 : f32 to vector<32x64xf32>
    %132 = arith.addf %131, %130 : vector<32x64xf32>
    %cst_52 = arith.constant 5.000000e-01 : f32
    %133 = vector.broadcast %cst_52 : f32 to vector<32x64xf32>
    %134 = arith.mulf %133, %132 : vector<32x64xf32>
    %135 = arith.mulf %122, %134 : vector<32x64xf32>
    %c0_53 = arith.constant 0 : index
    %c0_54 = arith.constant 0 : index
    %136 = vector.load %arg12[%c0_53, %c0_54] : memref<64x32xf32, #tpu.memory_space<vmem>>, vector<64x32xf32>
    %cst_55 = arith.constant dense<0.000000e+00> : vector<32x32xf32>
    %137 = tpu.matmul %135, %136, %cst_55 {dimension_numbers = #tpu.dot_dimension_numbers<[1], [0], [0], [1], [0, 0, 1, 1], [], []>} : vector<32x64xf32>, vector<64x32xf32>, vector<32x32xf32> -> vector<32x32xf32>
    %138 = arith.addf %117, %137 : vector<32x32xf32>
    %c0_56 = arith.constant 0 : index
    %c0_57 = arith.constant 0 : index
    %139 = vector.load %arg13[%c0_56, %c0_57] : memref<1x32xf32, #tpu.memory_space<vmem>>, vector<1x32xf32>
    %140 = vector.broadcast %139 : vector<1x32xf32> to vector<32x32xf32>
    %141 = arith.addf %138, %140 : vector<32x32xf32>
    %c0_58 = arith.constant 0 : index
    %c0_59 = arith.constant 0 : index
    %142 = vector.load %arg14[%c0_58, %c0_59] : memref<1x32xf32, #tpu.memory_space<vmem>>, vector<1x32xf32>
    %c0_60 = arith.constant 0 : index
    %c0_61 = arith.constant 0 : index
    %143 = vector.load %arg15[%c0_60, %c0_61] : memref<1x32xf32, #tpu.memory_space<vmem>>, vector<1x32xf32>
    %cst_62 = arith.constant dense<0.000000e+00> : vector<32xf32>
    %144 = vector.multi_reduction <add>, %141, %cst_62 [1] : vector<32x32xf32> to vector<32xf32>
    %145 = vector.shape_cast %144 : vector<32xf32> to vector<32x1xf32>
    %cst_63 = arith.constant 3.200000e+01 : f32
    %146 = vector.broadcast %cst_63 : f32 to vector<32x1xf32>
    %147 = arith.divf %145, %146 : vector<32x1xf32>
    %148 = vector.broadcast %147 : vector<32x1xf32> to vector<32x32xf32>
    %149 = arith.subf %141, %148 : vector<32x32xf32>
    %150 = arith.mulf %149, %149 : vector<32x32xf32>
    %cst_64 = arith.constant dense<0.000000e+00> : vector<32xf32>
    %151 = vector.multi_reduction <add>, %150, %cst_64 [1] : vector<32x32xf32> to vector<32xf32>
    %152 = vector.shape_cast %151 : vector<32xf32> to vector<32x1xf32>
    %cst_65 = arith.constant 3.200000e+01 : f32
    %153 = vector.broadcast %cst_65 : f32 to vector<32x1xf32>
    %154 = arith.divf %152, %153 : vector<32x1xf32>
    %155 = vector.broadcast %147 : vector<32x1xf32> to vector<32x32xf32>
    %156 = arith.subf %141, %155 : vector<32x32xf32>
    %cst_66 = arith.constant 9.99999996E-13 : f32
    %157 = vector.broadcast %cst_66 : f32 to vector<32x1xf32>
    %158 = arith.addf %154, %157 : vector<32x1xf32>
    %159 = math.rsqrt %158 : vector<32x1xf32>
    %160 = vector.broadcast %159 : vector<32x1xf32> to vector<32x32xf32>
    %161 = arith.mulf %156, %160 : vector<32x32xf32>
    %162 = vector.broadcast %142 : vector<1x32xf32> to vector<32x32xf32>
    %163 = arith.mulf %161, %162 : vector<32x32xf32>
    %164 = vector.broadcast %143 : vector<1x32xf32> to vector<32x32xf32>
    %165 = arith.addf %163, %164 : vector<32x32xf32>
    %166 = tpu.iota {dimensions = array<i32: 0>} : vector<4x32xi32>
    %167 = tpu.iota {dimensions = array<i32: 1>} : vector<4x32xi32>
    %c8_i32 = arith.constant 8 : i32
    %168 = vector.broadcast %c8_i32 : i32 to vector<4x32xi32>
    %169 = arith.muli %166, %168 : vector<4x32xi32>
    %170 = arith.cmpi eq, %167, %169 : vector<4x32xi32>
    %171 = arith.extui %170 : vector<4x32xi1> to vector<4x32xi32>
    %172 = arith.sitofp %171 : vector<4x32xi32> to vector<4x32xf32>
    %cst_67 = arith.constant dense<0.000000e+00> : vector<4x32xf32>
    %173 = tpu.matmul %172, %165, %cst_67 {dimension_numbers = #tpu.dot_dimension_numbers<[1], [0], [0], [1], [0, 0, 1, 1], [], []>} : vector<4x32xf32>, vector<32x32xf32>, vector<4x32xf32> -> vector<4x32xf32>
    %c0_68 = arith.constant 0 : index
    %c0_69 = arith.constant 0 : index
    %174 = vector.load %arg16[%c0_68, %c0_69] : memref<32x32xf32, #tpu.memory_space<vmem>>, vector<32x32xf32>
    %cst_70 = arith.constant dense<0.000000e+00> : vector<4x32xf32>
    %175 = tpu.matmul %173, %174, %cst_70 {dimension_numbers = #tpu.dot_dimension_numbers<[1], [0], [0], [1], [0, 0, 1, 1], [], []>} : vector<4x32xf32>, vector<32x32xf32>, vector<4x32xf32> -> vector<4x32xf32>
    %c0_71 = arith.constant 0 : index
    %c0_72 = arith.constant 0 : index
    %176 = vector.load %arg17[%c0_71, %c0_72] : memref<1x32xf32, #tpu.memory_space<vmem>>, vector<1x32xf32>
    %177 = vector.broadcast %176 : vector<1x32xf32> to vector<4x32xf32>
    %178 = arith.addf %175, %177 : vector<4x32xf32>
    %179 = math.tanh %178 : vector<4x32xf32>
    %180 = vector.extract_strided_slice %179 {offsets = [0, 0], sizes = [2, 32], strides = [1, 1]} : vector<4x32xf32> to vector<2x32xf32>
    %c0_73 = arith.constant 0 : index
    %c0_74 = arith.constant 0 : index
    %181 = vector.load %arg18[%c0_73, %c0_74] : memref<32x6xf32, #tpu.memory_space<vmem>>, vector<32x6xf32>
    %cst_75 = arith.constant dense<0.000000e+00> : vector<2x6xf32>
    %182 = tpu.matmul %180, %181, %cst_75 {dimension_numbers = #tpu.dot_dimension_numbers<[1], [0], [0], [1], [0, 0, 1, 1], [], []>} : vector<2x32xf32>, vector<32x6xf32>, vector<2x6xf32> -> vector<2x6xf32>
    %c0_76 = arith.constant 0 : index
    %c0_77 = arith.constant 0 : index
    %183 = vector.load %arg19[%c0_76, %c0_77] : memref<1x6xf32, #tpu.memory_space<vmem>>, vector<1x6xf32>
    %184 = vector.broadcast %183 : vector<1x6xf32> to vector<2x6xf32>
    %185 = arith.addf %182, %184 : vector<2x6xf32>
    %c0_78 = arith.constant 0 : index
    %c0_79 = arith.constant 0 : index
    %186 = vector.load %arg31[%c0_78, %c0_79] : memref<2x6xf32, #tpu.memory_space<vmem>>, vector<2x6xf32>
    tpu.vector_store %arg31[%c0_78, %c0_79], %185 {strides = array<i32>} : memref<2x6xf32, #tpu.memory_space<vmem>>, vector<2x6xf32>,
    %c0_80 = arith.constant 0 : index
    %c0_81 = arith.constant 0 : index
    %187 = vector.load %arg20[%c0_80, %c0_81] : memref<32x16xf32, #tpu.memory_space<vmem>>, vector<32x16xf32>
    %cst_82 = arith.constant dense<0.000000e+00> : vector<4x16xf32>
    %188 = tpu.matmul %179, %187, %cst_82 {dimension_numbers = #tpu.dot_dimension_numbers<[1], [0], [0], [1], [0, 0, 1, 1], [], []>} : vector<4x32xf32>, vector<32x16xf32>, vector<4x16xf32> -> vector<4x16xf32>
    %c0_83 = arith.constant 0 : index
    %c0_84 = arith.constant 0 : index
    %189 = vector.load %arg21[%c0_83, %c0_84] : memref<1x16xf32, #tpu.memory_space<vmem>>, vector<1x16xf32>
    %190 = vector.broadcast %189 : vector<1x16xf32> to vector<4x16xf32>
    %191 = arith.addf %188, %190 : vector<4x16xf32>
    %192 = arith.mulf %191, %191 : vector<4x16xf32>
    %cst_85 = arith.constant dense<0.000000e+00> : vector<4xf32>
    %193 = vector.multi_reduction <add>, %192, %cst_85 [1] : vector<4x16xf32> to vector<4xf32>
    %194 = vector.shape_cast %193 : vector<4xf32> to vector<4x1xf32>
    %195 = math.sqrt %194 : vector<4x1xf32>
    %cst_86 = arith.constant 9.99999996E-13 : f32
    %196 = vector.broadcast %cst_86 : f32 to vector<4x1xf32>
    %197 = arith.maximumf %195, %196 : vector<4x1xf32>
    %198 = vector.broadcast %197 : vector<4x1xf32> to vector<4x16xf32>
    %199 = arith.divf %191, %198 : vector<4x16xf32>
    %c0_87 = arith.constant 0 : index
    %c0_88 = arith.constant 0 : index
    %200 = vector.load %arg33[%c0_87, %c0_88] : memref<4x16xf32, #tpu.memory_space<vmem>>, vector<4x16xf32>
    tpu.vector_store %arg33[%c0_87, %c0_88], %199 {strides = array<i32>} : memref<4x16xf32, #tpu.memory_space<vmem>>, vector<4x16xf32>,
    %201 = vector.extract_strided_slice %165 {offsets = [0, 0], sizes = [16, 32], strides = [1, 1]} : vector<32x32xf32> to vector<16x32xf32>
    %c0_89 = arith.constant 0 : index
    %c0_90 = arith.constant 0 : index
    %202 = vector.load %arg22[%c0_89, %c0_90] : memref<32x96xf32, #tpu.memory_space<vmem>>, vector<32x96xf32>
    %cst_91 = arith.constant dense<0.000000e+00> : vector<16x96xf32>
    %203 = tpu.matmul %201, %202, %cst_91 {dimension_numbers = #tpu.dot_dimension_numbers<[1], [0], [0], [1], [0, 0, 1, 1], [], []>} : vector<16x32xf32>, vector<32x96xf32>, vector<16x96xf32> -> vector<16x96xf32>
    %c0_92 = arith.constant 0 : index
    %c0_93 = arith.constant 0 : index
    %204 = vector.load %arg23[%c0_92, %c0_93] : memref<1x96xf32, #tpu.memory_space<vmem>>, vector<1x96xf32>
    %205 = vector.broadcast %204 : vector<1x96xf32> to vector<16x96xf32>
    %206 = arith.addf %203, %205 : vector<16x96xf32>
    %207 = vector.extract_strided_slice %206 {offsets = [0, 0], sizes = [16, 48], strides = [1, 1]} : vector<16x96xf32> to vector<16x48xf32>
    %208 = vector.shape_cast %207 : vector<16x48xf32> to vector<2x8x48xf32>
    %209 = vector.extract_strided_slice %206 {offsets = [0, 48], sizes = [16, 48], strides = [1, 1]} : vector<16x96xf32> to vector<16x48xf32>
    %210 = vector.shape_cast %209 : vector<16x48xf32> to vector<2x8x48xf32>
    %c0_94 = arith.constant 0 : index
    %c0_95 = arith.constant 0 : index
    %211 = vector.load %arg24[%c0_94, %c0_95] : memref<16x48xf32, #tpu.memory_space<vmem>>, vector<16x48xf32>
    %c0_96 = arith.constant 0 : index
    %c0_97 = arith.constant 0 : index
    %212 = vector.load %arg25[%c0_96, %c0_97] : memref<1x48xf32, #tpu.memory_space<vmem>>, vector<1x48xf32>
    %c0_98 = arith.constant 0 : index
    %c0_99 = arith.constant 0 : index
    %213 = vector.load %arg26[%c0_98, %c0_99] : memref<16x48xf32, #tpu.memory_space<vmem>>, vector<16x48xf32>
    %c0_100 = arith.constant 0 : index
    %c0_101 = arith.constant 0 : index
    %214 = vector.load %arg27[%c0_100, %c0_101] : memref<1x48xf32, #tpu.memory_space<vmem>>, vector<1x48xf32>
    %cst_102 = arith.constant 0.000000e+00 : f32
    %215 = vector.broadcast %cst_102 : f32 to vector<8x16xf32>
    %216 = vector.extract_strided_slice %208 {offsets = [0, 0, 0], sizes = [1, 8, 48], strides = [1, 1, 1]} : vector<2x8x48xf32> to vector<1x8x48xf32>
    %217 = vector.shape_cast %216 : vector<1x8x48xf32> to vector<8x48xf32>
    %cst_103 = arith.constant dense<0.000000e+00> : vector<8x48xf32>
    %218 = tpu.matmul %215, %211, %cst_103 {dimension_numbers = #tpu.dot_dimension_numbers<[1], [0], [0], [1], [0, 0, 1, 1], [], []>} : vector<8x16xf32>, vector<16x48xf32>, vector<8x48xf32> -> vector<8x48xf32>
    %219 = vector.broadcast %212 : vector<1x48xf32> to vector<8x48xf32>
    %220 = arith.addf %218, %219 : vector<8x48xf32>
    %221 = vector.extract_strided_slice %217 {offsets = [0, 0], sizes = [8, 16], strides = [1, 1]} : vector<8x48xf32> to vector<8x16xf32>
    %222 = vector.extract_strided_slice %220 {offsets = [0, 0], sizes = [8, 16], strides = [1, 1]} : vector<8x48xf32> to vector<8x16xf32>
    %223 = arith.addf %221, %222 : vector<8x16xf32>
    %224 = arith.negf %223 : vector<8x16xf32>
    %225 = math.exp %224 : vector<8x16xf32>
    %cst_104 = arith.constant 1.000000e+00 : f32
    %226 = vector.broadcast %cst_104 : f32 to vector<8x16xf32>
    %227 = arith.addf %226, %225 : vector<8x16xf32>
    %228 = arith.divf %226, %227 : vector<8x16xf32>
    %229 = vector.extract_strided_slice %217 {offsets = [0, 16], sizes = [8, 16], strides = [1, 1]} : vector<8x48xf32> to vector<8x16xf32>
    %230 = vector.extract_strided_slice %220 {offsets = [0, 16], sizes = [8, 16], strides = [1, 1]} : vector<8x48xf32> to vector<8x16xf32>
    %231 = arith.addf %229, %230 : vector<8x16xf32>
    %232 = arith.negf %231 : vector<8x16xf32>
    %233 = math.exp %232 : vector<8x16xf32>
    %cst_105 = arith.constant 1.000000e+00 : f32
    %234 = vector.broadcast %cst_105 : f32 to vector<8x16xf32>
    %235 = arith.addf %234, %233 : vector<8x16xf32>
    %236 = arith.divf %234, %235 : vector<8x16xf32>
    %237 = vector.extract_strided_slice %217 {offsets = [0, 32], sizes = [8, 16], strides = [1, 1]} : vector<8x48xf32> to vector<8x16xf32>
    %238 = vector.extract_strided_slice %220 {offsets = [0, 32], sizes = [8, 16], strides = [1, 1]} : vector<8x48xf32> to vector<8x16xf32>
    %239 = arith.mulf %228, %238 : vector<8x16xf32>
    %240 = arith.addf %237, %239 : vector<8x16xf32>
    %241 = math.tanh %240 : vector<8x16xf32>
    %cst_106 = arith.constant 1.000000e+00 : f32
    %242 = vector.broadcast %cst_106 : f32 to vector<8x16xf32>
    %243 = arith.subf %242, %236 : vector<8x16xf32>
    %244 = arith.mulf %243, %241 : vector<8x16xf32>
    %245 = arith.mulf %236, %215 : vector<8x16xf32>
    %246 = arith.addf %244, %245 : vector<8x16xf32>
    %247 = vector.extract_strided_slice %208 {offsets = [1, 0, 0], sizes = [1, 8, 48], strides = [1, 1, 1]} : vector<2x8x48xf32> to vector<1x8x48xf32>
    %248 = vector.shape_cast %247 : vector<1x8x48xf32> to vector<8x48xf32>
    %cst_107 = arith.constant dense<0.000000e+00> : vector<8x48xf32>
    %249 = tpu.matmul %246, %211, %cst_107 {dimension_numbers = #tpu.dot_dimension_numbers<[1], [0], [0], [1], [0, 0, 1, 1], [], []>} : vector<8x16xf32>, vector<16x48xf32>, vector<8x48xf32> -> vector<8x48xf32>
    %250 = vector.broadcast %212 : vector<1x48xf32> to vector<8x48xf32>
    %251 = arith.addf %249, %250 : vector<8x48xf32>
    %252 = vector.extract_strided_slice %248 {offsets = [0, 0], sizes = [8, 16], strides = [1, 1]} : vector<8x48xf32> to vector<8x16xf32>
    %253 = vector.extract_strided_slice %251 {offsets = [0, 0], sizes = [8, 16], strides = [1, 1]} : vector<8x48xf32> to vector<8x16xf32>
    %254 = arith.addf %252, %253 : vector<8x16xf32>
    %255 = arith.negf %254 : vector<8x16xf32>
    %256 = math.exp %255 : vector<8x16xf32>
    %cst_108 = arith.constant 1.000000e+00 : f32
    %257 = vector.broadcast %cst_108 : f32 to vector<8x16xf32>
    %258 = arith.addf %257, %256 : vector<8x16xf32>
    %259 = arith.divf %257, %258 : vector<8x16xf32>
    %260 = vector.extract_strided_slice %248 {offsets = [0, 16], sizes = [8, 16], strides = [1, 1]} : vector<8x48xf32> to vector<8x16xf32>
    %261 = vector.extract_strided_slice %251 {offsets = [0, 16], sizes = [8, 16], strides = [1, 1]} : vector<8x48xf32> to vector<8x16xf32>
    %262 = arith.addf %260, %261 : vector<8x16xf32>
    %263 = arith.negf %262 : vector<8x16xf32>
    %264 = math.exp %263 : vector<8x16xf32>
    %cst_109 = arith.constant 1.000000e+00 : f32
    %265 = vector.broadcast %cst_109 : f32 to vector<8x16xf32>
    %266 = arith.addf %265, %264 : vector<8x16xf32>
    %267 = arith.divf %265, %266 : vector<8x16xf32>
    %268 = vector.extract_strided_slice %248 {offsets = [0, 32], sizes = [8, 16], strides = [1, 1]} : vector<8x48xf32> to vector<8x16xf32>
    %269 = vector.extract_strided_slice %251 {offsets = [0, 32], sizes = [8, 16], strides = [1, 1]} : vector<8x48xf32> to vector<8x16xf32>
    %270 = arith.mulf %259, %269 : vector<8x16xf32>
    %271 = arith.addf %268, %270 : vector<8x16xf32>
    %272 = math.tanh %271 : vector<8x16xf32>
    %cst_110 = arith.constant 1.000000e+00 : f32
    %273 = vector.broadcast %cst_110 : f32 to vector<8x16xf32>
    %274 = arith.subf %273, %267 : vector<8x16xf32>
    %275 = arith.mulf %274, %272 : vector<8x16xf32>
    %276 = arith.mulf %267, %246 : vector<8x16xf32>
    %277 = arith.addf %275, %276 : vector<8x16xf32>
    %cst_111 = arith.constant 0.000000e+00 : f32
    %278 = vector.broadcast %cst_111 : f32 to vector<8x16xf32>
    %279 = vector.extract_strided_slice %210 {offsets = [1, 0, 0], sizes = [1, 8, 48], strides = [1, 1, 1]} : vector<2x8x48xf32> to vector<1x8x48xf32>
    %280 = vector.shape_cast %279 : vector<1x8x48xf32> to vector<8x48xf32>
    %cst_112 = arith.constant dense<0.000000e+00> : vector<8x48xf32>
    %281 = tpu.matmul %278, %213, %cst_112 {dimension_numbers = #tpu.dot_dimension_numbers<[1], [0], [0], [1], [0, 0, 1, 1], [], []>} : vector<8x16xf32>, vector<16x48xf32>, vector<8x48xf32> -> vector<8x48xf32>
    %282 = vector.broadcast %214 : vector<1x48xf32> to vector<8x48xf32>
    %283 = arith.addf %281, %282 : vector<8x48xf32>
    %284 = vector.extract_strided_slice %280 {offsets = [0, 0], sizes = [8, 16], strides = [1, 1]} : vector<8x48xf32> to vector<8x16xf32>
    %285 = vector.extract_strided_slice %283 {offsets = [0, 0], sizes = [8, 16], strides = [1, 1]} : vector<8x48xf32> to vector<8x16xf32>
    %286 = arith.addf %284, %285 : vector<8x16xf32>
    %287 = arith.negf %286 : vector<8x16xf32>
    %288 = math.exp %287 : vector<8x16xf32>
    %cst_113 = arith.constant 1.000000e+00 : f32
    %289 = vector.broadcast %cst_113 : f32 to vector<8x16xf32>
    %290 = arith.addf %289, %288 : vector<8x16xf32>
    %291 = arith.divf %289, %290 : vector<8x16xf32>
    %292 = vector.extract_strided_slice %280 {offsets = [0, 16], sizes = [8, 16], strides = [1, 1]} : vector<8x48xf32> to vector<8x16xf32>
    %293 = vector.extract_strided_slice %283 {offsets = [0, 16], sizes = [8, 16], strides = [1, 1]} : vector<8x48xf32> to vector<8x16xf32>
    %294 = arith.addf %292, %293 : vector<8x16xf32>
    %295 = arith.negf %294 : vector<8x16xf32>
    %296 = math.exp %295 : vector<8x16xf32>
    %cst_114 = arith.constant 1.000000e+00 : f32
    %297 = vector.broadcast %cst_114 : f32 to vector<8x16xf32>
    %298 = arith.addf %297, %296 : vector<8x16xf32>
    %299 = arith.divf %297, %298 : vector<8x16xf32>
    %300 = vector.extract_strided_slice %280 {offsets = [0, 32], sizes = [8, 16], strides = [1, 1]} : vector<8x48xf32> to vector<8x16xf32>
    %301 = vector.extract_strided_slice %283 {offsets = [0, 32], sizes = [8, 16], strides = [1, 1]} : vector<8x48xf32> to vector<8x16xf32>
    %302 = arith.mulf %291, %301 : vector<8x16xf32>
    %303 = arith.addf %300, %302 : vector<8x16xf32>
    %304 = math.tanh %303 : vector<8x16xf32>
    %cst_115 = arith.constant 1.000000e+00 : f32
    %305 = vector.broadcast %cst_115 : f32 to vector<8x16xf32>
    %306 = arith.subf %305, %299 : vector<8x16xf32>
    %307 = arith.mulf %306, %304 : vector<8x16xf32>
    %308 = arith.mulf %299, %278 : vector<8x16xf32>
    %309 = arith.addf %307, %308 : vector<8x16xf32>
    %310 = vector.extract_strided_slice %210 {offsets = [0, 0, 0], sizes = [1, 8, 48], strides = [1, 1, 1]} : vector<2x8x48xf32> to vector<1x8x48xf32>
    %311 = vector.shape_cast %310 : vector<1x8x48xf32> to vector<8x48xf32>
    %cst_116 = arith.constant dense<0.000000e+00> : vector<8x48xf32>
    %312 = tpu.matmul %309, %213, %cst_116 {dimension_numbers = #tpu.dot_dimension_numbers<[1], [0], [0], [1], [0, 0, 1, 1], [], []>} : vector<8x16xf32>, vector<16x48xf32>, vector<8x48xf32> -> vector<8x48xf32>
    %313 = vector.broadcast %214 : vector<1x48xf32> to vector<8x48xf32>
    %314 = arith.addf %312, %313 : vector<8x48xf32>
    %315 = vector.extract_strided_slice %311 {offsets = [0, 0], sizes = [8, 16], strides = [1, 1]} : vector<8x48xf32> to vector<8x16xf32>
    %316 = vector.extract_strided_slice %314 {offsets = [0, 0], sizes = [8, 16], strides = [1, 1]} : vector<8x48xf32> to vector<8x16xf32>
    %317 = arith.addf %315, %316 : vector<8x16xf32>
    %318 = arith.negf %317 : vector<8x16xf32>
    %319 = math.exp %318 : vector<8x16xf32>
    %cst_117 = arith.constant 1.000000e+00 : f32
    %320 = vector.broadcast %cst_117 : f32 to vector<8x16xf32>
    %321 = arith.addf %320, %319 : vector<8x16xf32>
    %322 = arith.divf %320, %321 : vector<8x16xf32>
    %323 = vector.extract_strided_slice %311 {offsets = [0, 16], sizes = [8, 16], strides = [1, 1]} : vector<8x48xf32> to vector<8x16xf32>
    %324 = vector.extract_strided_slice %314 {offsets = [0, 16], sizes = [8, 16], strides = [1, 1]} : vector<8x48xf32> to vector<8x16xf32>
    %325 = arith.addf %323, %324 : vector<8x16xf32>
    %326 = arith.negf %325 : vector<8x16xf32>
    %327 = math.exp %326 : vector<8x16xf32>
    %cst_118 = arith.constant 1.000000e+00 : f32
    %328 = vector.broadcast %cst_118 : f32 to vector<8x16xf32>
    %329 = arith.addf %328, %327 : vector<8x16xf32>
    %330 = arith.divf %328, %329 : vector<8x16xf32>
    %331 = vector.extract_strided_slice %311 {offsets = [0, 32], sizes = [8, 16], strides = [1, 1]} : vector<8x48xf32> to vector<8x16xf32>
    %332 = vector.extract_strided_slice %314 {offsets = [0, 32], sizes = [8, 16], strides = [1, 1]} : vector<8x48xf32> to vector<8x16xf32>
    %333 = arith.mulf %322, %332 : vector<8x16xf32>
    %334 = arith.addf %331, %333 : vector<8x16xf32>
    %335 = math.tanh %334 : vector<8x16xf32>
    %cst_119 = arith.constant 1.000000e+00 : f32
    %336 = vector.broadcast %cst_119 : f32 to vector<8x16xf32>
    %337 = arith.subf %336, %330 : vector<8x16xf32>
    %338 = arith.mulf %337, %335 : vector<8x16xf32>
    %339 = arith.mulf %330, %309 : vector<8x16xf32>
    %340 = arith.addf %338, %339 : vector<8x16xf32>
    %c0_120 = arith.constant 0 : index
    %c0_121 = arith.constant 0 : index
    %341 = vector.load %arg28[%c0_120, %c0_121] : memref<1x16xf32, #tpu.memory_space<vmem>>, vector<1x16xf32>
    %c0_122 = arith.constant 0 : index
    %c0_123 = arith.constant 0 : index
    %342 = vector.load %arg29[%c0_122, %c0_123] : memref<1x16xf32, #tpu.memory_space<vmem>>, vector<1x16xf32>
    %c0_124 = arith.constant 0 : index
    %c0_125 = arith.constant 0 : index
    %343 = vector.load %arg30[%c0_124, %c0_125] : memref<1x1xf32, #tpu.memory_space<vmem>>, vector<1x1xf32>
    %cst_126 = arith.constant dense<0.000000e+00> : vector<1x8xf32>
    %344 = tpu.matmul %341, %246, %cst_126 {dimension_numbers = #tpu.dot_dimension_numbers<[1], [1], [0], [0], [0, 0, 1, 0], [], []>} : vector<1x16xf32>, vector<8x16xf32>, vector<1x8xf32> -> vector<1x8xf32>
    %cst_127 = arith.constant dense<0.000000e+00> : vector<1x8xf32>
    %345 = tpu.matmul %342, %340, %cst_127 {dimension_numbers = #tpu.dot_dimension_numbers<[1], [1], [0], [0], [0, 0, 1, 0], [], []>} : vector<1x16xf32>, vector<8x16xf32>, vector<1x8xf32> -> vector<1x8xf32>
    %346 = arith.addf %344, %345 : vector<1x8xf32>
    %347 = vector.broadcast %343 : vector<1x1xf32> to vector<1x8xf32>
    %348 = arith.addf %346, %347 : vector<1x8xf32>
    %349 = arith.negf %348 : vector<1x8xf32>
    %350 = math.exp %349 : vector<1x8xf32>
    %cst_128 = arith.constant 1.000000e+00 : f32
    %351 = vector.broadcast %cst_128 : f32 to vector<1x8xf32>
    %352 = arith.addf %351, %350 : vector<1x8xf32>
    %353 = arith.divf %351, %352 : vector<1x8xf32>
    %354 = vector.extract_strided_slice %25 {offsets = [0, 0], sizes = [1, 8], strides = [1, 1]} : vector<4x8xf32> to vector<1x8xf32>
    %355 = arith.mulf %353, %354 : vector<1x8xf32>
    %cst_129 = arith.constant dense<0.000000e+00> : vector<1x8xf32>
    %356 = tpu.matmul %341, %277, %cst_129 {dimension_numbers = #tpu.dot_dimension_numbers<[1], [1], [0], [0], [0, 0, 1, 0], [], []>} : vector<1x16xf32>, vector<8x16xf32>, vector<1x8xf32> -> vector<1x8xf32>
    %cst_130 = arith.constant dense<0.000000e+00> : vector<1x8xf32>
    %357 = tpu.matmul %342, %309, %cst_130 {dimension_numbers = #tpu.dot_dimension_numbers<[1], [1], [0], [0], [0, 0, 1, 0], [], []>} : vector<1x16xf32>, vector<8x16xf32>, vector<1x8xf32> -> vector<1x8xf32>
    %358 = arith.addf %356, %357 : vector<1x8xf32>
    %359 = vector.broadcast %343 : vector<1x1xf32> to vector<1x8xf32>
    %360 = arith.addf %358, %359 : vector<1x8xf32>
    %361 = arith.negf %360 : vector<1x8xf32>
    %362 = math.exp %361 : vector<1x8xf32>
    %cst_131 = arith.constant 1.000000e+00 : f32
    %363 = vector.broadcast %cst_131 : f32 to vector<1x8xf32>
    %364 = arith.addf %363, %362 : vector<1x8xf32>
    %365 = arith.divf %363, %364 : vector<1x8xf32>
    %366 = vector.extract_strided_slice %25 {offsets = [1, 0], sizes = [1, 8], strides = [1, 1]} : vector<4x8xf32> to vector<1x8xf32>
    %367 = arith.mulf %365, %366 : vector<1x8xf32>
    %368 = tpu.concatenate %355, %367 in 0 : vector<1x8xf32>, vector<1x8xf32> -> vector<2x8xf32>
    %c0_132 = arith.constant 0 : index
    %c0_133 = arith.constant 0 : index
    %369 = vector.load %arg32[%c0_132, %c0_133] : memref<2x8xf32, #tpu.memory_space<vmem>>, vector<2x8xf32>
    tpu.vector_store %arg32[%c0_132, %c0_133], %368 {strides = array<i32>} : memref<2x8xf32, #tpu.memory_space<vmem>>, vector<2x8xf32>,
    return
  }
}

</mosaic_0001>

<llo_original>
// kernel: rac_forward.1
$region0: #{rac_forward.1}
  #allocation0 [shape = 'u32[]', space=smem, size = 0x4, offset = 0x4, fixed_abs, tag = 'smem constant byte address 0x4 - core index']
  #allocation1 [shape = 'u32[144,128]{1,0:T(1,128)}', space=vmem, size = 0x12000, scoped, tag = 'internal scratch']
  #allocation2 [shape = 'f32[1,1]{1,0:T(1,128)S(1)}', space=vmem, size = 0x200, scoped, tag = 'scoped memory for rac_forward.1']
  %s0 = inlined_call_operand.smem [shape: u32[34], index: -1, kind: input, shape index: {}]
  %s1 = sld [smem:[%s0]]
  %s2 = scalar_lea.smem %s0, 1
  %s3 = sld [smem:[%s2]]
  %s4 = scalar_lea.smem %s0, 2
  %s5 = sld [smem:[%s4]]
  %s6 = scalar_lea.smem %s0, 3
  %s7 = sld [smem:[%s6]]
  %s8 = scalar_lea.smem %s0, 4
  %s9 = sld [smem:[%s8]]
  %s10 = scalar_lea.smem %s0, 5
  %s11 = sld [smem:[%s10]]
  %s12 = scalar_lea.smem %s0, 6
  %s13 = sld [smem:[%s12]]
  %s14 = scalar_lea.smem %s0, 7
  %s15 = sld [smem:[%s14]]
  %s16 = scalar_lea.smem %s0, 8
  %s17 = sld [smem:[%s16]]
  %s18 = scalar_lea.smem %s0, 9
  %s19 = sld [smem:[%s18]]
  %s20 = scalar_lea.smem %s0, 10
  %s21 = sld [smem:[%s20]]
  %s22 = scalar_lea.smem %s0, 11
  %s23 = sld [smem:[%s22]]
  %s24 = scalar_lea.smem %s0, 12
  %s25 = sld [smem:[%s24]]
  %s26 = scalar_lea.smem %s0, 13
  %s27 = sld [smem:[%s26]]
  %s28 = scalar_lea.smem %s0, 14
  %s29 = sld [smem:[%s28]]
  %s30 = scalar_lea.smem %s0, 15
  %s31 = sld [smem:[%s30]]
  %s32 = scalar_lea.smem %s0, 16
  %s33 = sld [smem:[%s32]]
  %s34 = scalar_lea.smem %s0, 17
  %s35 = sld [smem:[%s34]]
  %s36 = scalar_lea.smem %s0, 18
  %s37 = sld [smem:[%s36]]
  %s38 = scalar_lea.smem %s0, 19
  %s39 = sld [smem:[%s38]]
  %s40 = scalar_lea.smem %s0, 20
  %s41 = sld [smem:[%s40]]
  %s42 = scalar_lea.smem %s0, 21
  %s43 = sld [smem:[%s42]]
  %s44 = scalar_lea.smem %s0, 22
  %s45 = sld [smem:[%s44]]
  %s46 = scalar_lea.smem %s0, 23
  %s47 = sld [smem:[%s46]]
  %s48 = scalar_lea.smem %s0, 24
  %s49 = sld [smem:[%s48]]
  %s50 = scalar_lea.smem %s0, 25
  %s51 = sld [smem:[%s50]]
  %s52 = scalar_lea.smem %s0, 26
  %s53 = sld [smem:[%s52]]
  %s54 = scalar_lea.smem %s0, 27
  %s55 = sld [smem:[%s54]]
  %s56 = scalar_lea.smem %s0, 28
  %s57 = sld [smem:[%s56]]
  %s58 = scalar_lea.smem %s0, 29
  %s59 = sld [smem:[%s58]]
  %s60 = scalar_lea.smem %s0, 30
  %s61 = sld [smem:[%s60]]
  %s62 = scalar_lea.smem %s0, 31
  %s63 = sld [smem:[%s62]]
  %s64 = scalar_lea.smem %s0, 32
  %s65 = sld [smem:[%s64]]
  %s66 = scalar_lea.smem %s0, 33
  %s67 = sld [smem:[%s66]]
  %68 = xla_tuple %s63, %s65, %s67
  %s69 = sld [smem:[#allocation0]]
  $region150: #{rac_forward.1} parent=0
    _
  %s71 = ssub.s32 1, %s69
  %s72 = scalar_select 0, %s71, %s69
  %v73 = vstv %s61
  %74 = vst [vmem:[#allocation2] sm:$0x1] %v73
  $region1: #{rac_forward.1} parent=0
    #allocation3 [shape = 'u8[1024]{0}', space=vmem, size = 0x400, scoped, tag = 'output window, operand 0, single buffered']
    #allocation4 [shape = 's32[1]{0}', space=sflag, size = 0x4, scoped, tag = 'scoped memory for rac_forward.1']
    #allocation5 [shape = 'u8[1024]{0}', space=vmem, size = 0x400, scoped, tag = 'output window, operand 1, single buffered']
    #allocation6 [shape = 's32[1]{0}', space=sflag, size = 0x4, scoped, tag = 'scoped memory for rac_forward.1']
    %75 = vsyncpa [#allocation4], 0
    %76 = vsyncpa [#allocation6], 0
    // Predicated region
    $region2: #{rac_forward.1} parent=1 // pred_check
      _
    $region3: #{rac_forward.1} parent=1 // pred_check_branch
      %78 = sbr.rel (0) target = $region5
    $region4: #{rac_forward.1} parent=1 // pred_region
      _
    $region5: #{rac_forward.1} parent=1 // pred_fallthru
      _
    // Predicated region
    $region6: #{rac_forward.1} parent=1 // pred_check
      _
    $region7: #{rac_forward.1} parent=1 // pred_check_branch
      %80 = sbr.rel (0) target = $region9
    $region8: #{rac_forward.1} parent=1 // pred_region
      _
    $region9: #{rac_forward.1} parent=1 // pred_fallthru
      _
    // Predicated region
    $region10: #{rac_forward.1} parent=1 // pred_check
      _
    $region11: #{rac_forward.1} parent=1 // pred_check_branch
      %82 = sbr.rel (0) target = $region13
    $region12: #{rac_forward.1} parent=1 // pred_region
      _
    $region13: #{rac_forward.1} parent=1 // pred_fallthru
      _
    // Predicated region
    $region14: #{rac_forward.1} parent=1 // pred_check
      _
    $region15: #{rac_forward.1} parent=1 // pred_check_branch
      %84 = sbr.rel (0) target = $region17
    $region16: #{rac_forward.1} parent=1 // pred_region
      _
    $region17: #{rac_forward.1} parent=1 // pred_fallthru
      _
    // Predicated region
    $region18: #{rac_forward.1} parent=1 // pred_check
      _
    $region19: #{rac_forward.1} parent=1 // pred_check_branch
      %86 = sbr.rel (0) target = $region21
    $region20: #{rac_forward.1} parent=1 // pred_region
      _
    $region21: #{rac_forward.1} parent=1 // pred_fallthru
      _
    // Predicated region
    $region22: #{rac_forward.1} parent=1 // pred_check
      _
    $region23: #{rac_forward.1} parent=1 // pred_check_branch
      %88 = sbr.rel (0) target = $region25
    $region24: #{rac_forward.1} parent=1 // pred_region
      _
    $region25: #{rac_forward.1} parent=1 // pred_fallthru
      _
    // Predicated region
    $region26: #{rac_forward.1} parent=1 // pred_check
      _
    $region27: #{rac_forward.1} parent=1 // pred_check_branch
      %90 = sbr.rel (0) target = $region29
    $region28: #{rac_forward.1} parent=1 // pred_region
      _
    $region29: #{rac_forward.1} parent=1 // pred_fallthru
      _
    // Predicated region
    $region30: #{rac_forward.1} parent=1 // pred_check
      _
    $region31: #{rac_forward.1} parent=1 // pred_check_branch
      %92 = sbr.rel (0) target = $region33
    $region32: #{rac_forward.1} parent=1 // pred_region
      _
    $region33: #{rac_forward.1} parent=1 // pred_fallthru
      _
    // Predicated region
    $region34: #{rac_forward.1} parent=1 // pred_check
      _
    $region35: #{rac_forward.1} parent=1 // pred_check_branch
      %94 = sbr.rel (0) target = $region37
    $region36: #{rac_forward.1} parent=1 // pred_region
      _
    $region37: #{rac_forward.1} parent=1 // pred_fallthru
      _
    // Predicated region
    $region38: #{rac_forward.1} parent=1 // pred_check
      _
    $region39: #{rac_forward.1} parent=1 // pred_check_branch
      %96 = sbr.rel (0) target = $region41
    $region40: #{rac_forward.1} parent=1 // pred_region
      _
    $region41: #{rac_forward.1} parent=1 // pred_fallthru
      _
    // Predicated region
    $region42: #{rac_forward.1} parent=1 // pred_check
      _
    $region43: #{rac_forward.1} parent=1 // pred_check_branch
      %98 = sbr.rel (0) target = $region45
    $region44: #{rac_forward.1} parent=1 // pred_region
      _
    $region45: #{rac_forward.1} parent=1 // pred_fallthru
      _
    // Predicated region
    $region46: #{rac_forward.1} parent=1 // pred_check
      _
    $region47: #{rac_forward.1} parent=1 // pred_check_branch
      %100 = sbr.rel (0) target = $region49
    $region48: #{rac_forward.1} parent=1 // pred_region
      _
    $region49: #{rac_forward.1} parent=1 // pred_fallthru
      _
    // Predicated region
    $region50: #{rac_forward.1} parent=1 // pred_check
      _
    $region51: #{rac_forward.1} parent=1 // pred_check_branch
      %102 = sbr.rel (0) target = $region53
    $region52: #{rac_forward.1} parent=1 // pred_region
      _
    $region53: #{rac_forward.1} parent=1 // pred_fallthru
      _
    // Predicated region
    $region54: #{rac_forward.1} parent=1 // pred_check
      _
    $region55: #{rac_forward.1} parent=1 // pred_check_branch
      %104 = sbr.rel (0) target = $region57
    $region56: #{rac_forward.1} parent=1 // pred_region
      _
    $region57: #{rac_forward.1} parent=1 // pred_fallthru
      _
    // Predicated region
    $region58: #{rac_forward.1} parent=1 // pred_check
      _
    $region59: #{rac_forward.1} parent=1 // pred_check_branch
      %106 = sbr.rel (0) target = $region61
    $region60: #{rac_forward.1} parent=1 // pred_region
      _
    $region61: #{rac_forward.1} parent=1 // pred_fallthru
      _
    // Predicated region
    $region62: #{rac_forward.1} parent=1 // pred_check
      _
    $region63: #{rac_forward.1} parent=1 // pred_check_branch
      %108 = sbr.rel (0) target = $region65
    $region64: #{rac_forward.1} parent=1 // pred_region
      _
    $region65: #{rac_forward.1} parent=1 // pred_fallthru
      _
    // Predicated region
    $region66: #{rac_forward.1} parent=1 // pred_check
      _
    $region67: #{rac_forward.1} parent=1 // pred_check_branch
      %110 = sbr.rel (0) target = $region69
    $region68: #{rac_forward.1} parent=1 // pred_region
      _
    $region69: #{rac_forward.1} parent=1 // pred_fallthru
      _
    // Predicated region
    $region70: #{rac_forward.1} parent=1 // pred_check
      _
    $region71: #{rac_forward.1} parent=1 // pred_check_branch
      %112 = sbr.rel (0) target = $region73
    $region72: #{rac_forward.1} parent=1 // pred_region
      _
    $region73: #{rac_forward.1} parent=1 // pred_fallthru
      _
    // Predicated region
    $region74: #{rac_forward.1} parent=1 // pred_check
      _
    $region75: #{rac_forward.1} parent=1 // pred_check_branch
      %114 = sbr.rel (0) target = $region77
    $region76: #{rac_forward.1} parent=1 // pred_region
      _
    $region77: #{rac_forward.1} parent=1 // pred_fallthru
      _
    // Predicated region
    $region78: #{rac_forward.1} parent=1 // pred_check
      _
    $region79: #{rac_forward.1} parent=1 // pred_check_branch
      %116 = sbr.rel (0) target = $region81
    $region80: #{rac_forward.1} parent=1 // pred_region
      _
    $region81: #{rac_forward.1} parent=1 // pred_fallthru
      _
    // Predicated region
    $region82: #{rac_forward.1} parent=1 // pred_check
      _
    $region83: #{rac_forward.1} parent=1 // pred_check_branch
      %118 = sbr.rel (0) target = $region85
    $region84: #{rac_forward.1} parent=1 // pred_region
      _
    $region85: #{rac_forward.1} parent=1 // pred_fallthru
      _
    // Predicated region
    $region86: #{rac_forward.1} parent=1 // pred_check
      _
    $region87: #{rac_forward.1} parent=1 // pred_check_branch
      %120 = sbr.rel (0) target = $region89
    $region88: #{rac_forward.1} parent=1 // pred_region
      _
    $region89: #{rac_forward.1} parent=1 // pred_fallthru
      _
    // Predicated region
    $region90: #{rac_forward.1} parent=1 // pred_check
      _
    $region91: #{rac_forward.1} parent=1 // pred_check_branch
      %122 = sbr.rel (0) target = $region93
    $region92: #{rac_forward.1} parent=1 // pred_region
      _
    $region93: #{rac_forward.1} parent=1 // pred_fallthru
      _
    // Predicated region
    $region94: #{rac_forward.1} parent=1 // pred_check
      _
    $region95: #{rac_forward.1} parent=1 // pred_check_branch
      %124 = sbr.rel (0) target = $region97
    $region96: #{rac_forward.1} parent=1 // pred_region
      _
    $region97: #{rac_forward.1} parent=1 // pred_fallthru
      _
    // Predicated region
    $region98: #{rac_forward.1} parent=1 // pred_check
      _
    $region99: #{rac_forward.1} parent=1 // pred_check_branch
      %126 = sbr.rel (0) target = $region101
    $region100: #{rac_forward.1} parent=1 // pred_region
      _
    $region101: #{rac_forward.1} parent=1 // pred_fallthru
      _
    // Predicated region
    $region102: #{rac_forward.1} parent=1 // pred_check
      _
    $region103: #{rac_forward.1} parent=1 // pred_check_branch
      %128 = sbr.rel (0) target = $region105
    $region104: #{rac_forward.1} parent=1 // pred_region
      _
    $region105: #{rac_forward.1} parent=1 // pred_fallthru
      _
    // Predicated region
    $region106: #{rac_forward.1} parent=1 // pred_check
      _
    $region107: #{rac_forward.1} parent=1 // pred_check_branch
      %130 = sbr.rel (0) target = $region109
    $region108: #{rac_forward.1} parent=1 // pred_region
      _
    $region109: #{rac_forward.1} parent=1 // pred_fallthru
      _
    // Predicated region
    $region110: #{rac_forward.1} parent=1 // pred_check
      _
    $region111: #{rac_forward.1} parent=1 // pred_check_branch
      %132 = sbr.rel (0) target = $region113
    $region112: #{rac_forward.1} parent=1 // pred_region
      _
    $region113: #{rac_forward.1} parent=1 // pred_fallthru
      _
    // Predicated region
    $region114: #{rac_forward.1} parent=1 // pred_check
      _
    $region115: #{rac_forward.1} parent=1 // pred_check_branch
      %134 = sbr.rel (0) target = $region117
    $region116: #{rac_forward.1} parent=1 // pred_region
      _
    $region117: #{rac_forward.1} parent=1 // pred_fallthru
      _
    // Predicated region
    $region118: #{rac_forward.1} parent=1 // pred_check
      _
    $region119: #{rac_forward.1} parent=1 // pred_check_branch
      %136 = sbr.rel (0) target = $region121
    $region120: #{rac_forward.1} parent=1 // pred_region
      _
    $region121: #{rac_forward.1} parent=1 // pred_fallthru
      _
    // Predicated region
    $region122: #{rac_forward.1} parent=1 // pred_check
      _
    $region123: #{rac_forward.1} parent=1 // pred_check_branch
      %138 = sbr.rel (0) target = $region125
    $region124: #{rac_forward.1} parent=1 // pred_region
      _
    $region125: #{rac_forward.1} parent=1 // pred_fallthru
      _
    %v139 = vld [vmem:[%s1] sm:$0xff]
    %v140 = vld [vmem:[%s1 + $0x8] sm:$0xff]
    %v141 = vld [vmem:[%s1 + $0x10] sm:$0xff]
    %v142 = vld [vmem:[%s1 + $0x18] sm:$0xff]
    %v143 = vld [vmem:[%s5] sm:$0x1]
    %v144 = vld [vmem:[%s7] sm:$0x1]
    %vm145 = vcmask 261120
    %v146 = vsel %vm145, %v139, 0.0
    %147 = vadd.xlane.f32.xlu0 %v146
    %v148 = vpop.xlane.xlu0 %147
    %v149 = vsel %vm145, %v140, 0.0
    %150 = vadd.xlane.f32.xlu0 %v149
    %v151 = vpop.xlane.xlu0 %150
    %v152 = vsel %vm145, %v141, 0.0
    %153 = vadd.xlane.f32.xlu0 %v152
    %v154 = vpop.xlane.xlu0 %153
    %v155 = vsel %vm145, %v142, 0.0
    %156 = vadd.xlane.f32.xlu0 %v155
    %v157 = vpop.xlane.xlu0 %156
    %v158 = vrcp.pop 32.0
    %v159 = vmul.f32 %v148, %v158
    %v160 = vmul.f32 %v151, %v158
    %v161 = vmul.f32 %v154, %v158
    %v162 = vmul.f32 %v157, %v158
    %v163 = vsub.f32 %v139, %v159
    %v164 = vsub.f32 %v140, %v160
    %v165 = vsub.f32 %v141, %v161
    %v166 = vsub.f32 %v142, %v162
    %v167 = vmul.f32 %v163, %v163
    %v168 = vmul.f32 %v164, %v164
    %v169 = vmul.f32 %v165, %v165
    %v170 = vmul.f32 %v166, %v166
    %v171 = vsel %vm145, %v167, 0.0
    %172 = vadd.xlane.f32.xlu0 %v171
    %v173 = vpop.xlane.xlu0 %172
    %v174 = vsel %vm145, %v168, 0.0
    %175 = vadd.xlane.f32.xlu0 %v174
    %v176 = vpop.xlane.xlu0 %175
    %v177 = vsel %vm145, %v169, 0.0
    %178 = vadd.xlane.f32.xlu0 %v177
    %v179 = vpop.xlane.xlu0 %178
    %v180 = vsel %vm145, %v170, 0.0
    %181 = vadd.xlane.f32.xlu0 %v180
    %v182 = vpop.xlane.xlu0 %181
    %v183 = vmul.f32 %v173, %v158
    %v184 = vmul.f32 %v176, %v158
    %v185 = vmul.f32 %v179, %v158
    %v186 = vmul.f32 %v182, %v158
    %v187 = vadd.f32 %v183, 1e-12
    %v188 = vadd.f32 %v184, 1e-12
    %v189 = vadd.f32 %v185, 1e-12
    %v190 = vadd.f32 %v186, 1e-12
    %v191 = vrsqrt.pop %v187
    %v192 = vrsqrt.pop %v188
    %v193 = vrsqrt.pop %v189
    %v194 = vrsqrt.pop %v190
    %v195 = vmul.f32 %v163, %v191
    %v196 = vmul.f32 %v164, %v192
    %v197 = vmul.f32 %v165, %v193
    %v198 = vmul.f32 %v166, %v194
    %v200 = vlaneseq
    %v201 = vshrl.u32 %v200, 7
    %v202 = vsub.s32 0, %v201
    %v203 = vrot.slane %v143, %v202
    %v205 = vmul.f32 %v195, %v203
    %v206 = vmul.f32 %v196, %v203
    %v207 = vmul.f32 %v197, %v203
    %v208 = vmul.f32 %v198, %v203
    %v210 = vlaneseq
    %v211 = vshrl.u32 %v210, 7
    %v212 = vsub.s32 0, %v211
    %v213 = vrot.slane %v144, %v212
    %v215 = vadd.f32 %v205, %v213
    %v216 = vadd.f32 %v206, %v213
    %v217 = vadd.f32 %v207, %v213
    %v218 = vadd.f32 %v208, %v213
    %v219 = vld [vmem:[%s3] sm:$0xf]
    %v220 = vsub.f32 %v219, 1.0
    %v221 = vmul.f32 %v220, 1e+09
    %v224 = vunpack.c.l.s4 1966171168
    %v225 = vunpack.c.0.s8 %v224
    %v226 = vlaneseq
    %v227 = vshrl.u32 %v226, 7
    %v228 = vsub.s32 %v225, %v227
    %v229 = vrot.slane %v221, %v228
    %v230 = vcombine.high %v229, %v229
    %v232 = vunpack.c.l.s4 1966171168
    %v233 = vunpack.c.0.s8 %v232
    %v234 = vlaneseq
    %v235 = vshrl.u32 %v234, 7
    %v236 = vsub.s32 %v233, %v235
    %v237 = vrot.slane %v229, %v236
    %v239 = vunpack.c.l.s4 1966171168
    %v240 = vunpack.c.0.s8 %v239
    %v241 = vlaneseq
    %v242 = vshrl.u32 %v241, 7
    %v243 = vsub.s32 %v240, %v242
    %v244 = vrot.slane %v230, %v243
    %v245 = vcombine.high %v237, %v237
    %v246 = vcombine.high %v244, %v244
    %v247 = vld [vmem:[%s9] sm:$0xff]
    %v248 = vld [vmem:[%s9 + $0x8] sm:$0xff]
    %v249 = vld [vmem:[%s9 + $0x10] sm:$0xff]
    %v250 = vld [vmem:[%s9 + $0x18] sm:$0xff]
    %v251 = vld [vmem:[%s11] sm:$0x1]
    %v253 = vlaneseq
    %v254 = vshrl.u32 %v253, 7
    %v255 = vsub.s32 0, %v254
    %v256 = vrot.slane %v251, %v255
    %v259 = vsel %vm145, %v215, 0
    %v262 = vsel %vm145, %v216, 0
    %v265 = vsel %vm145, %v217, 0
    %v268 = vsel %vm145, %v218, 0
    %270 = vmatprep.subr.mxu0 0.0
    %271 = vmatpush1.msra.mxu0 0.0
    %272 = vmatprep.subr.mxu0 0.0
    %273 = vmatpush1.msra.mxu0 0.0
    %274 = vmatprep.subr.mxu0 0.0
    %275 = vmatpush1.msra.mxu0 0.0
    %276 = vmatprep.subr.mxu0 0.0
    %277 = vmatpush1.msra.mxu0 0.0
    %278 = vmatprep.subr.mxu0 0.0
    %279 = vmatpush1.msra.mxu0 0.0
    %280 = vmatprep.subr.mxu0 0.0
    %281 = vmatpush1.msra.mxu0 0.0
    %282 = vmatprep.subr.mxu0 0.0
    %283 = vmatpush1.msra.mxu0 0.0
    %284 = vmatprep.subr.mxu0 0.0
    %285 = vmatpush1.msra.mxu0 0.0
    %286 = vmatprep.subr.mxu0 0.0
    %287 = vmatpush1.msra.mxu0 0.0
    %288 = vmatprep.subr.mxu0 0.0
    %289 = vmatpush1.msra.mxu0 0.0
    %290 = vmatprep.subr.mxu0 0.0
    %291 = vmatpush1.msra.mxu0 0.0
    %292 = vmatprep.subr.mxu0 0.0
    %293 = vmatpush1.msra.mxu0 0.0
    %294 = vmatprep.subr.mxu0 0.0
    %295 = vmatpush1.msra.mxu0 %v250
    %296 = vmatprep.subr.mxu0 0.0
    %297 = vmatpush1.msra.mxu0 %v249
    %298 = vmatprep.subr.mxu0 0.0
    %299 = vmatpush1.msra.mxu0 %v248
    %300 = vmatprep.subr.mxu0 0.0
    %301 = vmatpush1.msra.mxu0 %v247
    %302 = vmatprep.subr.mxu0 0.0
    %303 = vmatpush2.msra.mxu0 0.0
    %304 = vmatprep.subr.mxu0 0.0
    %305 = vmatpush2.msra.mxu0 0.0
    %306 = vmatprep.subr.mxu0 0.0
    %307 = vmatpush2.msra.mxu0 0.0
    %308 = vmatprep.subr.mxu0 0.0
    %309 = vmatpush2.msra.mxu0 0.0
    %310 = vmatprep.subr.mxu0 0.0
    %311 = vmatpush2.msra.mxu0 0.0
    %312 = vmatprep.subr.mxu0 0.0
    %313 = vmatpush2.msra.mxu0 0.0
    %314 = vmatprep.subr.mxu0 0.0
    %315 = vmatpush2.msra.mxu0 0.0
    %316 = vmatprep.subr.mxu0 0.0
    %317 = vmatpush2.msra.mxu0 0.0
    %318 = vmatprep.subr.mxu0 0.0
    %319 = vmatpush2.msra.mxu0 0.0
    %320 = vmatprep.subr.mxu0 0.0
    %321 = vmatpush2.msra.mxu0 0.0
    %322 = vmatprep.subr.mxu0 0.0
    %323 = vmatpush2.msra.mxu0 0.0
    %324 = vmatprep.subr.mxu0 0.0
    %325 = vmatpush2.msra.mxu0 0.0
    %326 = vmatprep.subr.mxu0 0.0
    %327 = vmatpush2.msra.mxu0 0.0
    %328 = vmatprep.subr.mxu0 0.0
    %329 = vmatpush2.msra.mxu0 0.0
    %330 = vmatprep.subr.mxu0 0.0
    %331 = vmatpush2.msra.mxu0 0.0
    %332 = vmatprep.subr.mxu0 0.0
    %333 = vmatpush2.msra.mxu0 0.0
    %334 = vmatprep.mubr.f32.mxu0 0.0
    %335 = vmatmul.mubr.f32.gmra.mxu0 %v259
    %v336 = vpop.f32.mrf.mxu0
    %v337 = vadd.f32 %v256, %v336
    %v338 = vpop.f32.mrf.mxu0
    %339 = vmatprep.mubr.f32.mxu0 0.0
    %340 = vmatmul.mubr.f32.gmra.mxu0 %v262
    %v341 = vpop.f32.mrf.mxu0
    %v342 = vadd.f32 %v256, %v341
    %v343 = vpop.f32.mrf.mxu0
    %344 = vmatprep.mubr.f32.mxu0 0.0
    %345 = vmatmul.mubr.f32.gmra.mxu0 %v265
    %v346 = vpop.f32.mrf.mxu0
    %v347 = vadd.f32 %v256, %v346
    %v348 = vpop.f32.mrf.mxu0
    %349 = vmatprep.mubr.f32.mxu0 0.0
    %350 = vmatmul.mubr.f32.gmra.mxu0 %v268
    %v351 = vpop.f32.mrf.mxu0
    %v352 = vadd.f32 %v256, %v351
    %v353 = vpop.f32.mrf.mxu0
    %354 = vdwg.mxu0
    %v355 = vld [vmem:[%s13] sm:$0xff]
    %v356 = vld [vmem:[%s13 + $0x8] sm:$0xff]
    %v357 = vld [vmem:[%s13 + $0x10] sm:$0xff]
    %v358 = vld [vmem:[%s13 + $0x18] sm:$0xff]
    %360 = vrot.lane.b32.xlu0 %v337, 96
    %v361 = vpop.permute.xlu0 %360
    %vm362 = vcmask 130048
    %v363 = vsel %vm362, %v337, 0
    %v365 = vsel %vm362, %v361, 0
    %367 = vmatprep.subr.mxu0 0.0
    %368 = vmatpush1.xpose.msra.mxu0 0.0
    %369 = vmatprep.subr.mxu0 0.0
    %370 = vmatpush1.xpose.msra.mxu0 0.0
    %371 = vmatprep.subr.mxu0 0.0
    %372 = vmatpush1.xpose.msra.mxu0 0.0
    %373 = vmatprep.subr.mxu0 0.0
    %374 = vmatpush1.xpose.msra.mxu0 0.0
    %375 = vmatprep.subr.mxu0 0.0
    %376 = vmatpush1.xpose.msra.mxu0 0.0
    %377 = vmatprep.subr.mxu0 0.0
    %378 = vmatpush1.xpose.msra.mxu0 0.0
    %379 = vmatprep.subr.mxu0 0.0
    %380 = vmatpush1.xpose.msra.mxu0 0.0
    %381 = vmatprep.subr.mxu0 0.0
    %382 = vmatpush1.xpose.msra.mxu0 0.0
    %383 = vmatprep.subr.mxu0 0.0
    %384 = vmatpush1.xpose.msra.mxu0 0.0
    %385 = vmatprep.subr.mxu0 0.0
    %386 = vmatpush1.xpose.msra.mxu0 0.0
    %387 = vmatprep.subr.mxu0 0.0
    %388 = vmatpush1.xpose.msra.mxu0 0.0
    %389 = vmatprep.subr.mxu0 0.0
    %390 = vmatpush1.xpose.msra.mxu0 0.0
    %391 = vmatprep.subr.mxu0 0.0
    %392 = vmatpush1.xpose.msra.mxu0 0.0
    %393 = vmatprep.subr.mxu0 0.0
    %394 = vmatpush1.xpose.msra.mxu0 0.0
    %395 = vmatprep.subr.mxu0 0.0
    %396 = vmatpush1.xpose.msra.mxu0 0.0
    %397 = vmatprep.subr.mxu0 0.0
    %398 = vmatpush1.xpose.msra.mxu0 %v365
    %399 = vmatprep.subr.mxu0 0.0
    %400 = vmatpush2.xpose.msra.mxu0 0.0
    %401 = vmatprep.subr.mxu0 0.0
    %402 = vmatpush2.xpose.msra.mxu0 0.0
    %403 = vmatprep.subr.mxu0 0.0
    %404 = vmatpush2.xpose.msra.mxu0 0.0
    %405 = vmatprep.subr.mxu0 0.0
    %406 = vmatpush2.xpose.msra.mxu0 0.0
    %407 = vmatprep.subr.mxu0 0.0
    %408 = vmatpush2.xpose.msra.mxu0 0.0
    %409 = vmatprep.subr.mxu0 0.0
    %410 = vmatpush2.xpose.msra.mxu0 0.0
    %411 = vmatprep.subr.mxu0 0.0
    %412 = vmatpush2.xpose.msra.mxu0 0.0
    %413 = vmatprep.subr.mxu0 0.0
    %414 = vmatpush2.xpose.msra.mxu0 0.0
    %415 = vmatprep.subr.mxu0 0.0
    %416 = vmatpush2.xpose.msra.mxu0 0.0
    %417 = vmatprep.subr.mxu0 0.0
    %418 = vmatpush2.xpose.msra.mxu0 0.0
    %419 = vmatprep.subr.mxu0 0.0
    %420 = vmatpush2.xpose.msra.mxu0 0.0
    %421 = vmatprep.subr.mxu0 0.0
    %422 = vmatpush2.xpose.msra.mxu0 0.0
    %423 = vmatprep.subr.mxu0 0.0
    %424 = vmatpush2.xpose.msra.mxu0 0.0
    %425 = vmatprep.subr.mxu0 0.0
    %426 = vmatpush2.xpose.msra.mxu0 0.0
    %427 = vmatprep.subr.mxu0 0.0
    %428 = vmatpush2.xpose.msra.mxu0 0.0
    %429 = vmatprep.subr.mxu0 0.0
    %430 = vmatpush2.xpose.msra.mxu0 0.0
    %431 = vmatprep.mubr.f32.mxu0 0.0
    %432 = vmatmul.mubr.f32.gmra.mxu0 %v363
    %v433 = vpop.f32.mrf.mxu0
    %v434 = vadd.f32 0.0, %v433
    %v435 = vpop.f32.mrf.mxu0
    %436 = vdwg.mxu0
    %438 = vrot.lane.b32.xlu0 %v342, 96
    %v439 = vpop.permute.xlu0 %438
    %v440 = vsel %vm362, %v342, 0
    %v442 = vsel %vm362, %v439, 0
    %444 = vmatprep.subr.mxu0 0.0
    %445 = vmatpush1.xpose.msra.mxu0 0.0
    %446 = vmatprep.subr.mxu0 0.0
    %447 = vmatpush1.xpose.msra.mxu0 0.0
    %448 = vmatprep.subr.mxu0 0.0
    %449 = vmatpush1.xpose.msra.mxu0 0.0
    %450 = vmatprep.subr.mxu0 0.0
    %451 = vmatpush1.xpose.msra.mxu0 0.0
    %452 = vmatprep.subr.mxu0 0.0
    %453 = vmatpush1.xpose.msra.mxu0 0.0
    %454 = vmatprep.subr.mxu0 0.0
    %455 = vmatpush1.xpose.msra.mxu0 0.0
    %456 = vmatprep.subr.mxu0 0.0
    %457 = vmatpush1.xpose.msra.mxu0 0.0
    %458 = vmatprep.subr.mxu0 0.0
    %459 = vmatpush1.xpose.msra.mxu0 0.0
    %460 = vmatprep.subr.mxu0 0.0
    %461 = vmatpush1.xpose.msra.mxu0 0.0
    %462 = vmatprep.subr.mxu0 0.0
    %463 = vmatpush1.xpose.msra.mxu0 0.0
    %464 = vmatprep.subr.mxu0 0.0
    %465 = vmatpush1.xpose.msra.mxu0 0.0
    %466 = vmatprep.subr.mxu0 0.0
    %467 = vmatpush1.xpose.msra.mxu0 0.0
    %468 = vmatprep.subr.mxu0 0.0
    %469 = vmatpush1.xpose.msra.mxu0 0.0
    %470 = vmatprep.subr.mxu0 0.0
    %471 = vmatpush1.xpose.msra.mxu0 0.0
    %472 = vmatprep.subr.mxu0 0.0
    %473 = vmatpush1.xpose.msra.mxu0 0.0
    %474 = vmatprep.subr.mxu0 0.0
    %475 = vmatpush1.xpose.msra.mxu0 %v442
    %476 = vmatprep.subr.mxu0 0.0
    %477 = vmatpush2.xpose.msra.mxu0 0.0
    %478 = vmatprep.subr.mxu0 0.0
    %479 = vmatpush2.xpose.msra.mxu0 0.0
    %480 = vmatprep.subr.mxu0 0.0
    %481 = vmatpush2.xpose.msra.mxu0 0.0
    %482 = vmatprep.subr.mxu0 0.0
    %483 = vmatpush2.xpose.msra.mxu0 0.0
    %484 = vmatprep.subr.mxu0 0.0
    %485 = vmatpush2.xpose.msra.mxu0 0.0
    %486 = vmatprep.subr.mxu0 0.0
    %487 = vmatpush2.xpose.msra.mxu0 0.0
    %488 = vmatprep.subr.mxu0 0.0
    %489 = vmatpush2.xpose.msra.mxu0 0.0
    %490 = vmatprep.subr.mxu0 0.0
    %491 = vmatpush2.xpose.msra.mxu0 0.0
    %492 = vmatprep.subr.mxu0 0.0
    %493 = vmatpush2.xpose.msra.mxu0 0.0
    %494 = vmatprep.subr.mxu0 0.0
    %495 = vmatpush2.xpose.msra.mxu0 0.0
    %496 = vmatprep.subr.mxu0 0.0
    %497 = vmatpush2.xpose.msra.mxu0 0.0
    %498 = vmatprep.subr.mxu0 0.0
    %499 = vmatpush2.xpose.msra.mxu0 0.0
    %500 = vmatprep.subr.mxu0 0.0
    %501 = vmatpush2.xpose.msra.mxu0 0.0
    %502 = vmatprep.subr.mxu0 0.0
    %503 = vmatpush2.xpose.msra.mxu0 0.0
    %504 = vmatprep.subr.mxu0 0.0
    %505 = vmatpush2.xpose.msra.mxu0 0.0
    %506 = vmatprep.subr.mxu0 0.0
    %507 = vmatpush2.xpose.msra.mxu0 0.0
    %508 = vmatprep.mubr.f32.mxu0 0.0
    %509 = vmatmul.mubr.f32.gmra.mxu0 %v440
    %v510 = vpop.f32.mrf.mxu0
    %v511 = vadd.f32 0.0, %v510
    %v512 = vpop.f32.mrf.mxu0
    %513 = vdwg.mxu0
    %515 = vrot.lane.b32.xlu0 %v347, 96
    %v516 = vpop.permute.xlu0 %515
    %v517 = vsel %vm362, %v347, 0
    %v519 = vsel %vm362, %v516, 0
    %521 = vmatprep.subr.mxu0 0.0
    %522 = vmatpush1.xpose.msra.mxu0 0.0
    %523 = vmatprep.subr.mxu0 0.0
    %524 = vmatpush1.xpose.msra.mxu0 0.0
    %525 = vmatprep.subr.mxu0 0.0
    %526 = vmatpush1.xpose.msra.mxu0 0.0
    %527 = vmatprep.subr.mxu0 0.0
    %528 = vmatpush1.xpose.msra.mxu0 0.0
    %529 = vmatprep.subr.mxu0 0.0
    %530 = vmatpush1.xpose.msra.mxu0 0.0
    %531 = vmatprep.subr.mxu0 0.0
    %532 = vmatpush1.xpose.msra.mxu0 0.0
    %533 = vmatprep.subr.mxu0 0.0
    %534 = vmatpush1.xpose.msra.mxu0 0.0
    %535 = vmatprep.subr.mxu0 0.0
    %536 = vmatpush1.xpose.msra.mxu0 0.0
    %537 = vmatprep.subr.mxu0 0.0
    %538 = vmatpush1.xpose.msra.mxu0 0.0
    %539 = vmatprep.subr.mxu0 0.0
    %540 = vmatpush1.xpose.msra.mxu0 0.0
    %541 = vmatprep.subr.mxu0 0.0
    %542 = vmatpush1.xpose.msra.mxu0 0.0
    %543 = vmatprep.subr.mxu0 0.0
    %544 = vmatpush1.xpose.msra.mxu0 0.0
    %545 = vmatprep.subr.mxu0 0.0
    %546 = vmatpush1.xpose.msra.mxu0 0.0
    %547 = vmatprep.subr.mxu0 0.0
    %548 = vmatpush1.xpose.msra.mxu0 0.0
    %549 = vmatprep.subr.mxu0 0.0
    %550 = vmatpush1.xpose.msra.mxu0 0.0
    %551 = vmatprep.subr.mxu0 0.0
    %552 = vmatpush1.xpose.msra.mxu0 %v519
    %553 = vmatprep.subr.mxu0 0.0
    %554 = vmatpush2.xpose.msra.mxu0 0.0
    %555 = vmatprep.subr.mxu0 0.0
    %556 = vmatpush2.xpose.msra.mxu0 0.0
    %557 = vmatprep.subr.mxu0 0.0
    %558 = vmatpush2.xpose.msra.mxu0 0.0
    %559 = vmatprep.subr.mxu0 0.0
    %560 = vmatpush2.xpose.msra.mxu0 0.0
    %561 = vmatprep.subr.mxu0 0.0
    %562 = vmatpush2.xpose.msra.mxu0 0.0
    %563 = vmatprep.subr.mxu0 0.0
    %564 = vmatpush2.xpose.msra.mxu0 0.0
    %565 = vmatprep.subr.mxu0 0.0
    %566 = vmatpush2.xpose.msra.mxu0 0.0
    %567 = vmatprep.subr.mxu0 0.0
    %568 = vmatpush2.xpose.msra.mxu0 0.0
    %569 = vmatprep.subr.mxu0 0.0
    %570 = vmatpush2.xpose.msra.mxu0 0.0
    %571 = vmatprep.subr.mxu0 0.0
    %572 = vmatpush2.xpose.msra.mxu0 0.0
    %573 = vmatprep.subr.mxu0 0.0
    %574 = vmatpush2.xpose.msra.mxu0 0.0
    %575 = vmatprep.subr.mxu0 0.0
    %576 = vmatpush2.xpose.msra.mxu0 0.0
    %577 = vmatprep.subr.mxu0 0.0
    %578 = vmatpush2.xpose.msra.mxu0 0.0
    %579 = vmatprep.subr.mxu0 0.0
    %580 = vmatpush2.xpose.msra.mxu0 0.0
    %581 = vmatprep.subr.mxu0 0.0
    %582 = vmatpush2.xpose.msra.mxu0 0.0
    %583 = vmatprep.subr.mxu0 0.0
    %584 = vmatpush2.xpose.msra.mxu0 0.0
    %585 = vmatprep.mubr.f32.mxu0 0.0
    %586 = vmatmul.mubr.f32.gmra.mxu0 %v517
    %v587 = vpop.f32.mrf.mxu0
    %v588 = vadd.f32 0.0, %v587
    %v589 = vpop.f32.mrf.mxu0
    %590 = vdwg.mxu0
    %592 = vrot.lane.b32.xlu0 %v352, 96
    %v593 = vpop.permute.xlu0 %592
    %v594 = vsel %vm362, %v352, 0
    %v596 = vsel %vm362, %v593, 0
    %598 = vmatprep.subr.mxu0 0.0
    %599 = vmatpush1.xpose.msra.mxu0 0.0
    %600 = vmatprep.subr.mxu0 0.0
    %601 = vmatpush1.xpose.msra.mxu0 0.0
    %602 = vmatprep.subr.mxu0 0.0
    %603 = vmatpush1.xpose.msra.mxu0 0.0
    %604 = vmatprep.subr.mxu0 0.0
    %605 = vmatpush1.xpose.msra.mxu0 0.0
    %606 = vmatprep.subr.mxu0 0.0
    %607 = vmatpush1.xpose.msra.mxu0 0.0
    %608 = vmatprep.subr.mxu0 0.0
    %609 = vmatpush1.xpose.msra.mxu0 0.0
    %610 = vmatprep.subr.mxu0 0.0
    %611 = vmatpush1.xpose.msra.mxu0 0.0
    %612 = vmatprep.subr.mxu0 0.0
    %613 = vmatpush1.xpose.msra.mxu0 0.0
    %614 = vmatprep.subr.mxu0 0.0
    %615 = vmatpush1.xpose.msra.mxu0 0.0
    %616 = vmatprep.subr.mxu0 0.0
    %617 = vmatpush1.xpose.msra.mxu0 0.0
    %618 = vmatprep.subr.mxu0 0.0
    %619 = vmatpush1.xpose.msra.mxu0 0.0
    %620 = vmatprep.subr.mxu0 0.0
    %621 = vmatpush1.xpose.msra.mxu0 0.0
    %622 = vmatprep.subr.mxu0 0.0
    %623 = vmatpush1.xpose.msra.mxu0 0.0
    %624 = vmatprep.subr.mxu0 0.0
    %625 = vmatpush1.xpose.msra.mxu0 0.0
    %626 = vmatprep.subr.mxu0 0.0
    %627 = vmatpush1.xpose.msra.mxu0 0.0
    %628 = vmatprep.subr.mxu0 0.0
    %629 = vmatpush1.xpose.msra.mxu0 %v596
    %630 = vmatprep.subr.mxu0 0.0
    %631 = vmatpush2.xpose.msra.mxu0 0.0
    %632 = vmatprep.subr.mxu0 0.0
    %633 = vmatpush2.xpose.msra.mxu0 0.0
    %634 = vmatprep.subr.mxu0 0.0
    %635 = vmatpush2.xpose.msra.mxu0 0.0
    %636 = vmatprep.subr.mxu0 0.0
    %637 = vmatpush2.xpose.msra.mxu0 0.0
    %638 = vmatprep.subr.mxu0 0.0
    %639 = vmatpush2.xpose.msra.mxu0 0.0
    %640 = vmatprep.subr.mxu0 0.0
    %641 = vmatpush2.xpose.msra.mxu0 0.0
    %642 = vmatprep.subr.mxu0 0.0
    %643 = vmatpush2.xpose.msra.mxu0 0.0
    %644 = vmatprep.subr.mxu0 0.0
    %645 = vmatpush2.xpose.msra.mxu0 0.0
    %646 = vmatprep.subr.mxu0 0.0
    %647 = vmatpush2.xpose.msra.mxu0 0.0
    %648 = vmatprep.subr.mxu0 0.0
    %649 = vmatpush2.xpose.msra.mxu0 0.0
    %650 = vmatprep.subr.mxu0 0.0
    %651 = vmatpush2.xpose.msra.mxu0 0.0
    %652 = vmatprep.subr.mxu0 0.0
    %653 = vmatpush2.xpose.msra.mxu0 0.0
    %654 = vmatprep.subr.mxu0 0.0
    %655 = vmatpush2.xpose.msra.mxu0 0.0
    %656 = vmatprep.subr.mxu0 0.0
    %657 = vmatpush2.xpose.msra.mxu0 0.0
    %658 = vmatprep.subr.mxu0 0.0
    %659 = vmatpush2.xpose.msra.mxu0 0.0
    %660 = vmatprep.subr.mxu0 0.0
    %661 = vmatpush2.xpose.msra.mxu0 0.0
    %662 = vmatprep.mubr.f32.mxu0 0.0
    %663 = vmatmul.mubr.f32.gmra.mxu0 %v594
    %v664 = vpop.f32.mrf.mxu0
    %v665 = vadd.f32 0.0, %v664
    %v666 = vpop.f32.mrf.mxu0
    %667 = vdwg.mxu0
    %v668 = vmul.f32 %v434, 0.25
    %v669 = vmul.f32 %v511, 0.25
    %v670 = vmul.f32 %v588, 0.25
    %v671 = vmul.f32 %v665, 0.25
    %v672 = vlaneseq
    %v673 = vshrl.u32 %v672, 7
    %v674 = vsub.s32 0, %v673
    %v675 = vrot.slane %v237, %v674
    %v676 = vlaneseq
    %v677 = vshrl.u32 %v676, 7
    %v678 = vsub.s32 0, %v677
    %v679 = vrot.slane %v244, %v678
    %v680 = vlaneseq
    %v681 = vshrl.u32 %v680, 7
    %v682 = vsub.s32 0, %v681
    %v683 = vrot.slane %v245, %v682
    %v684 = vlaneseq
    %v685 = vshrl.u32 %v684, 7
    %v686 = vsub.s32 0, %v685
    %v687 = vrot.slane %v246, %v686
    %v692 = vadd.f32 %v668, %v675
    %v693 = vadd.f32 %v669, %v679
    %v694 = vadd.f32 %v670, %v683
    %v695 = vadd.f32 %v671, %v687
    %vm696 = vcmask 64512
    %v697 = vsel %vm696, %v692, -inf
    %698 = vmax.xlane.f32.xlu0 %v697
    %v699 = vpop.xlane.xlu0 %698
    %v700 = vsel %vm696, %v693, -inf
    %701 = vmax.xlane.f32.xlu0 %v700
    %v702 = vpop.xlane.xlu0 %701
    %v703 = vsel %vm696, %v694, -inf
    %704 = vmax.xlane.f32.xlu0 %v703
    %v705 = vpop.xlane.xlu0 %704
    %v706 = vsel %vm696, %v695, -inf
    %707 = vmax.xlane.f32.xlu0 %v706
    %v708 = vpop.xlane.xlu0 %707
    %v709 = vsub.f32 %v692, %v699
    %v710 = vsub.f32 %v693, %v702
    %v711 = vsub.f32 %v694, %v705
    %v712 = vsub.f32 %v695, %v708
    %v713 = vmul.f32 %v709, 1.442695
    %v714 = vpow.pop %v713
    %v715 = vmul.f32 %v710, 1.442695
    %v716 = vpow.pop %v715
    %v717 = vmul.f32 %v711, 1.442695
    %v718 = vpow.pop %v717
    %v719 = vmul.f32 %v712, 1.442695
    %v720 = vpow.pop %v719
    %v721 = vsel %vm696, %v714, 0.0
    %722 = vadd.xlane.f32.xlu0 %v721
    %v723 = vpop.xlane.xlu0 %722
    %v724 = vsel %vm696, %v716, 0.0
    %725 = vadd.xlane.f32.xlu0 %v724
    %v726 = vpop.xlane.xlu0 %725
    %v727 = vsel %vm696, %v718, 0.0
    %728 = vadd.xlane.f32.xlu0 %v727
    %v729 = vpop.xlane.xlu0 %728
    %v730 = vsel %vm696, %v720, 0.0
    %731 = vadd.xlane.f32.xlu0 %v730
    %v732 = vpop.xlane.xlu0 %731
    %v733 = vrcp.pop %v723
    %v734 = vrcp.pop %v726
    %v735 = vrcp.pop %v729
    %v736 = vrcp.pop %v732
    %v737 = vmul.f32 %v714, %v733
    %v738 = vmul.f32 %v716, %v734
    %v739 = vmul.f32 %v718, %v735
    %v740 = vmul.f32 %v720, %v736
    %741 = vrot.lane.b32.xlu0 %v337, 64
    %v742 = vpop.permute.xlu0 %741
    %v745 = vsel %vm696, %v737, 0
    %747 = vmatprep.subr.mxu0 0.0
    %748 = vmatpush1.msra.mxu0 0.0
    %749 = vmatprep.subr.mxu0 0.0
    %750 = vmatpush1.msra.mxu0 0.0
    %751 = vmatprep.subr.mxu0 0.0
    %752 = vmatpush1.msra.mxu0 0.0
    %753 = vmatprep.subr.mxu0 0.0
    %754 = vmatpush1.msra.mxu0 0.0
    %755 = vmatprep.subr.mxu0 0.0
    %756 = vmatpush1.msra.mxu0 0.0
    %757 = vmatprep.subr.mxu0 0.0
    %758 = vmatpush1.msra.mxu0 0.0
    %759 = vmatprep.subr.mxu0 0.0
    %760 = vmatpush1.msra.mxu0 0.0
    %761 = vmatprep.subr.mxu0 0.0
    %762 = vmatpush1.msra.mxu0 0.0
    %763 = vmatprep.subr.mxu0 0.0
    %764 = vmatpush1.msra.mxu0 0.0
    %765 = vmatprep.subr.mxu0 0.0
    %766 = vmatpush1.msra.mxu0 0.0
    %767 = vmatprep.subr.mxu0 0.0
    %768 = vmatpush1.msra.mxu0 0.0
    %769 = vmatprep.subr.mxu0 0.0
    %770 = vmatpush1.msra.mxu0 0.0
    %771 = vmatprep.subr.mxu0 0.0
    %772 = vmatpush1.msra.mxu0 0.0
    %773 = vmatprep.subr.mxu0 0.0
    %774 = vmatpush1.msra.mxu0 0.0
    %775 = vmatprep.subr.mxu0 0.0
    %776 = vmatpush1.msra.mxu0 0.0
    %777 = vmatprep.subr.mxu0 0.0
    %778 = vmatpush1.msra.mxu0 %v742
    %779 = vmatprep.subr.mxu0 0.0
    %780 = vmatpush2.msra.mxu0 0.0
    %781 = vmatprep.subr.mxu0 0.0
    %782 = vmatpush2.msra.mxu0 0.0
    %783 = vmatprep.subr.mxu0 0.0
    %784 = vmatpush2.msra.mxu0 0.0
    %785 = vmatprep.subr.mxu0 0.0
    %786 = vmatpush2.msra.mxu0 0.0
    %787 = vmatprep.subr.mxu0 0.0
    %788 = vmatpush2.msra.mxu0 0.0
    %789 = vmatprep.subr.mxu0 0.0
    %790 = vmatpush2.msra.mxu0 0.0
    %791 = vmatprep.subr.mxu0 0.0
    %792 = vmatpush2.msra.mxu0 0.0
    %793 = vmatprep.subr.mxu0 0.0
    %794 = vmatpush2.msra.mxu0 0.0
    %795 = vmatprep.subr.mxu0 0.0
    %796 = vmatpush2.msra.mxu0 0.0
    %797 = vmatprep.subr.mxu0 0.0
    %798 = vmatpush2.msra.mxu0 0.0
    %799 = vmatprep.subr.mxu0 0.0
    %800 = vmatpush2.msra.mxu0 0.0
    %801 = vmatprep.subr.mxu0 0.0
    %802 = vmatpush2.msra.mxu0 0.0
    %803 = vmatprep.subr.mxu0 0.0
    %804 = vmatpush2.msra.mxu0 0.0
    %805 = vmatprep.subr.mxu0 0.0
    %806 = vmatpush2.msra.mxu0 0.0
    %807 = vmatprep.subr.mxu0 0.0
    %808 = vmatpush2.msra.mxu0 0.0
    %809 = vmatprep.subr.mxu0 0.0
    %810 = vmatpush2.msra.mxu0 0.0
    %811 = vmatprep.mubr.f32.mxu0 0.0
    %812 = vmatmul.mubr.f32.gmra.mxu0 %v745
    %v813 = vpop.f32.mrf.mxu0
    %v814 = vadd.f32 0.0, %v813
    %v815 = vpop.f32.mrf.mxu0
    %816 = vdwg.mxu0
    %817 = vrot.lane.b32.xlu0 %v342, 64
    %v818 = vpop.permute.xlu0 %817
    %v821 = vsel %vm696, %v738, 0
    %823 = vmatprep.subr.mxu0 0.0
    %824 = vmatpush1.msra.mxu0 0.0
    %825 = vmatprep.subr.mxu0 0.0
    %826 = vmatpush1.msra.mxu0 0.0
    %827 = vmatprep.subr.mxu0 0.0
    %828 = vmatpush1.msra.mxu0 0.0
    %829 = vmatprep.subr.mxu0 0.0
    %830 = vmatpush1.msra.mxu0 0.0
    %831 = vmatprep.subr.mxu0 0.0
    %832 = vmatpush1.msra.mxu0 0.0
    %833 = vmatprep.subr.mxu0 0.0
    %834 = vmatpush1.msra.mxu0 0.0
    %835 = vmatprep.subr.mxu0 0.0
    %836 = vmatpush1.msra.mxu0 0.0
    %837 = vmatprep.subr.mxu0 0.0
    %838 = vmatpush1.msra.mxu0 0.0
    %839 = vmatprep.subr.mxu0 0.0
    %840 = vmatpush1.msra.mxu0 0.0
    %841 = vmatprep.subr.mxu0 0.0
    %842 = vmatpush1.msra.mxu0 0.0
    %843 = vmatprep.subr.mxu0 0.0
    %844 = vmatpush1.msra.mxu0 0.0
    %845 = vmatprep.subr.mxu0 0.0
    %846 = vmatpush1.msra.mxu0 0.0
    %847 = vmatprep.subr.mxu0 0.0
    %848 = vmatpush1.msra.mxu0 0.0
    %849 = vmatprep.subr.mxu0 0.0
    %850 = vmatpush1.msra.mxu0 0.0
    %851 = vmatprep.subr.mxu0 0.0
    %852 = vmatpush1.msra.mxu0 0.0
    %853 = vmatprep.subr.mxu0 0.0
    %854 = vmatpush1.msra.mxu0 %v818
    %855 = vmatprep.subr.mxu0 0.0
    %856 = vmatpush2.msra.mxu0 0.0
    %857 = vmatprep.subr.mxu0 0.0
    %858 = vmatpush2.msra.mxu0 0.0
    %859 = vmatprep.subr.mxu0 0.0
    %860 = vmatpush2.msra.mxu0 0.0
    %861 = vmatprep.subr.mxu0 0.0
    %862 = vmatpush2.msra.mxu0 0.0
    %863 = vmatprep.subr.mxu0 0.0
    %864 = vmatpush2.msra.mxu0 0.0
    %865 = vmatprep.subr.mxu0 0.0
    %866 = vmatpush2.msra.mxu0 0.0
    %867 = vmatprep.subr.mxu0 0.0
    %868 = vmatpush2.msra.mxu0 0.0
    %869 = vmatprep.subr.mxu0 0.0
    %870 = vmatpush2.msra.mxu0 0.0
    %871 = vmatprep.subr.mxu0 0.0
    %872 = vmatpush2.msra.mxu0 0.0
    %873 = vmatprep.subr.mxu0 0.0
    %874 = vmatpush2.msra.mxu0 0.0
    %875 = vmatprep.subr.mxu0 0.0
    %876 = vmatpush2.msra.mxu0 0.0
    %877 = vmatprep.subr.mxu0 0.0
    %878 = vmatpush2.msra.mxu0 0.0
    %879 = vmatprep.subr.mxu0 0.0
    %880 = vmatpush2.msra.mxu0 0.0
    %881 = vmatprep.subr.mxu0 0.0
    %882 = vmatpush2.msra.mxu0 0.0
    %883 = vmatprep.subr.mxu0 0.0
    %884 = vmatpush2.msra.mxu0 0.0
    %885 = vmatprep.subr.mxu0 0.0
    %886 = vmatpush2.msra.mxu0 0.0
    %887 = vmatprep.mubr.f32.mxu0 0.0
    %888 = vmatmul.mubr.f32.gmra.mxu0 %v821
    %v889 = vpop.f32.mrf.mxu0
    %v890 = vadd.f32 0.0, %v889
    %v891 = vpop.f32.mrf.mxu0
    %892 = vdwg.mxu0
    %893 = vrot.lane.b32.xlu0 %v347, 64
    %v894 = vpop.permute.xlu0 %893
    %v897 = vsel %vm696, %v739, 0
    %899 = vmatprep.subr.mxu0 0.0
    %900 = vmatpush1.msra.mxu0 0.0
    %901 = vmatprep.subr.mxu0 0.0
    %902 = vmatpush1.msra.mxu0 0.0
    %903 = vmatprep.subr.mxu0 0.0
    %904 = vmatpush1.msra.mxu0 0.0
    %905 = vmatprep.subr.mxu0 0.0
    %906 = vmatpush1.msra.mxu0 0.0
    %907 = vmatprep.subr.mxu0 0.0
    %908 = vmatpush1.msra.mxu0 0.0
    %909 = vmatprep.subr.mxu0 0.0
    %910 = vmatpush1.msra.mxu0 0.0
    %911 = vmatprep.subr.mxu0 0.0
    %912 = vmatpush1.msra.mxu0 0.0
    %913 = vmatprep.subr.mxu0 0.0
    %914 = vmatpush1.msra.mxu0 0.0
    %915 = vmatprep.subr.mxu0 0.0
    %916 = vmatpush1.msra.mxu0 0.0
    %917 = vmatprep.subr.mxu0 0.0
    %918 = vmatpush1.msra.mxu0 0.0
    %919 = vmatprep.subr.mxu0 0.0
    %920 = vmatpush1.msra.mxu0 0.0
    %921 = vmatprep.subr.mxu0 0.0
    %922 = vmatpush1.msra.mxu0 0.0
    %923 = vmatprep.subr.mxu0 0.0
    %924 = vmatpush1.msra.mxu0 0.0
    %925 = vmatprep.subr.mxu0 0.0
    %926 = vmatpush1.msra.mxu0 0.0
    %927 = vmatprep.subr.mxu0 0.0
    %928 = vmatpush1.msra.mxu0 0.0
    %929 = vmatprep.subr.mxu0 0.0
    %930 = vmatpush1.msra.mxu0 %v894
    %931 = vmatprep.subr.mxu0 0.0
    %932 = vmatpush2.msra.mxu0 0.0
    %933 = vmatprep.subr.mxu0 0.0
    %934 = vmatpush2.msra.mxu0 0.0
    %935 = vmatprep.subr.mxu0 0.0
    %936 = vmatpush2.msra.mxu0 0.0
    %937 = vmatprep.subr.mxu0 0.0
    %938 = vmatpush2.msra.mxu0 0.0
    %939 = vmatprep.subr.mxu0 0.0
    %940 = vmatpush2.msra.mxu0 0.0
    %941 = vmatprep.subr.mxu0 0.0
    %942 = vmatpush2.msra.mxu0 0.0
    %943 = vmatprep.subr.mxu0 0.0
    %944 = vmatpush2.msra.mxu0 0.0
    %945 = vmatprep.subr.mxu0 0.0
    %946 = vmatpush2.msra.mxu0 0.0
    %947 = vmatprep.subr.mxu0 0.0
    %948 = vmatpush2.msra.mxu0 0.0
    %949 = vmatprep.subr.mxu0 0.0
    %950 = vmatpush2.msra.mxu0 0.0
    %951 = vmatprep.subr.mxu0 0.0
    %952 = vmatpush2.msra.mxu0 0.0
    %953 = vmatprep.subr.mxu0 0.0
    %954 = vmatpush2.msra.mxu0 0.0
    %955 = vmatprep.subr.mxu0 0.0
    %956 = vmatpush2.msra.mxu0 0.0
    %957 = vmatprep.subr.mxu0 0.0
    %958 = vmatpush2.msra.mxu0 0.0
    %959 = vmatprep.subr.mxu0 0.0
    %960 = vmatpush2.msra.mxu0 0.0
    %961 = vmatprep.subr.mxu0 0.0
    %962 = vmatpush2.msra.mxu0 0.0
    %963 = vmatprep.mubr.f32.mxu0 0.0
    %964 = vmatmul.mubr.f32.gmra.mxu0 %v897
    %v965 = vpop.f32.mrf.mxu0
    %v966 = vadd.f32 0.0, %v965
    %v967 = vpop.f32.mrf.mxu0
    %968 = vdwg.mxu0
    %969 = vrot.lane.b32.xlu0 %v352, 64
    %v970 = vpop.permute.xlu0 %969
    %v973 = vsel %vm696, %v740, 0
    %975 = vmatprep.subr.mxu0 0.0
    %976 = vmatpush1.msra.mxu0 0.0
    %977 = vmatprep.subr.mxu0 0.0
    %978 = vmatpush1.msra.mxu0 0.0
    %979 = vmatprep.subr.mxu0 0.0
    %980 = vmatpush1.msra.mxu0 0.0
    %981 = vmatprep.subr.mxu0 0.0
    %982 = vmatpush1.msra.mxu0 0.0
    %983 = vmatprep.subr.mxu0 0.0
    %984 = vmatpush1.msra.mxu0 0.0
    %985 = vmatprep.subr.mxu0 0.0
    %986 = vmatpush1.msra.mxu0 0.0
    %987 = vmatprep.subr.mxu0 0.0
    %988 = vmatpush1.msra.mxu0 0.0
    %989 = vmatprep.subr.mxu0 0.0
    %990 = vmatpush1.msra.mxu0 0.0
    %991 = vmatprep.subr.mxu0 0.0
    %992 = vmatpush1.msra.mxu0 0.0
    %993 = vmatprep.subr.mxu0 0.0
    %994 = vmatpush1.msra.mxu0 0.0
    %995 = vmatprep.subr.mxu0 0.0
    %996 = vmatpush1.msra.mxu0 0.0
    %997 = vmatprep.subr.mxu0 0.0
    %998 = vmatpush1.msra.mxu0 0.0
    %999 = vmatprep.subr.mxu0 0.0
    %1000 = vmatpush1.msra.mxu0 0.0
    %1001 = vmatprep.subr.mxu0 0.0
    %1002 = vmatpush1.msra.mxu0 0.0
    %1003 = vmatprep.subr.mxu0 0.0
    %1004 = vmatpush1.msra.mxu0 0.0
    %1005 = vmatprep.subr.mxu0 0.0
    %1006 = vmatpush1.msra.mxu0 %v970
    %1007 = vmatprep.subr.mxu0 0.0
    %1008 = vmatpush2.msra.mxu0 0.0
    %1009 = vmatprep.subr.mxu0 0.0
    %1010 = vmatpush2.msra.mxu0 0.0
    %1011 = vmatprep.subr.mxu0 0.0
    %1012 = vmatpush2.msra.mxu0 0.0
    %1013 = vmatprep.subr.mxu0 0.0
    %1014 = vmatpush2.msra.mxu0 0.0
    %1015 = vmatprep.subr.mxu0 0.0
    %1016 = vmatpush2.msra.mxu0 0.0
    %1017 = vmatprep.subr.mxu0 0.0
    %1018 = vmatpush2.msra.mxu0 0.0
    %1019 = vmatprep.subr.mxu0 0.0
    %1020 = vmatpush2.msra.mxu0 0.0
    %1021 = vmatprep.subr.mxu0 0.0
    %1022 = vmatpush2.msra.mxu0 0.0
    %1023 = vmatprep.subr.mxu0 0.0
    %1024 = vmatpush2.msra.mxu0 0.0
    %1025 = vmatprep.subr.mxu0 0.0
    %1026 = vmatpush2.msra.mxu0 0.0
    %1027 = vmatprep.subr.mxu0 0.0
    %1028 = vmatpush2.msra.mxu0 0.0
    %1029 = vmatprep.subr.mxu0 0.0
    %1030 = vmatpush2.msra.mxu0 0.0
    %1031 = vmatprep.subr.mxu0 0.0
    %1032 = vmatpush2.msra.mxu0 0.0
    %1033 = vmatprep.subr.mxu0 0.0
    %1034 = vmatpush2.msra.mxu0 0.0
    %1035 = vmatprep.subr.mxu0 0.0
    %1036 = vmatpush2.msra.mxu0 0.0
    %1037 = vmatprep.subr.mxu0 0.0
    %1038 = vmatpush2.msra.mxu0 0.0
    %1039 = vmatprep.mubr.f32.mxu0 0.0
    %1040 = vmatmul.mubr.f32.gmra.mxu0 %v973
    %v1041 = vpop.f32.mrf.mxu0
    %v1042 = vadd.f32 0.0, %v1041
    %v1043 = vpop.f32.mrf.mxu0
    %1044 = vdwg.mxu0
    %1045 = vrot.lane.b32.xlu0 %v337, 112
    %v1046 = vpop.permute.xlu0 %1045
    %1047 = vrot.lane.b32.xlu0 %v337, 80
    %v1048 = vpop.permute.xlu0 %1047
    %v1049 = vsel %vm362, %v1046, 0
    %v1051 = vsel %vm362, %v1048, 0
    %1053 = vmatprep.subr.mxu0 0.0
    %1054 = vmatpush1.xpose.msra.mxu0 0.0
    %1055 = vmatprep.subr.mxu0 0.0
    %1056 = vmatpush1.xpose.msra.mxu0 0.0
    %1057 = vmatprep.subr.mxu0 0.0
    %1058 = vmatpush1.xpose.msra.mxu0 0.0
    %1059 = vmatprep.subr.mxu0 0.0
    %1060 = vmatpush1.xpose.msra.mxu0 0.0
    %1061 = vmatprep.subr.mxu0 0.0
    %1062 = vmatpush1.xpose.msra.mxu0 0.0
    %1063 = vmatprep.subr.mxu0 0.0
    %1064 = vmatpush1.xpose.msra.mxu0 0.0
    %1065 = vmatprep.subr.mxu0 0.0
    %1066 = vmatpush1.xpose.msra.mxu0 0.0
    %1067 = vmatprep.subr.mxu0 0.0
    %1068 = vmatpush1.xpose.msra.mxu0 0.0
    %1069 = vmatprep.subr.mxu0 0.0
    %1070 = vmatpush1.xpose.msra.mxu0 0.0
    %1071 = vmatprep.subr.mxu0 0.0
    %1072 = vmatpush1.xpose.msra.mxu0 0.0
    %1073 = vmatprep.subr.mxu0 0.0
    %1074 = vmatpush1.xpose.msra.mxu0 0.0
    %1075 = vmatprep.subr.mxu0 0.0
    %1076 = vmatpush1.xpose.msra.mxu0 0.0
    %1077 = vmatprep.subr.mxu0 0.0
    %1078 = vmatpush1.xpose.msra.mxu0 0.0
    %1079 = vmatprep.subr.mxu0 0.0
    %1080 = vmatpush1.xpose.msra.mxu0 0.0
    %1081 = vmatprep.subr.mxu0 0.0
    %1082 = vmatpush1.xpose.msra.mxu0 0.0
    %1083 = vmatprep.subr.mxu0 0.0
    %1084 = vmatpush1.xpose.msra.mxu0 %v1051
    %1085 = vmatprep.subr.mxu0 0.0
    %1086 = vmatpush2.xpose.msra.mxu0 0.0
    %1087 = vmatprep.subr.mxu0 0.0
    %1088 = vmatpush2.xpose.msra.mxu0 0.0
    %1089 = vmatprep.subr.mxu0 0.0
    %1090 = vmatpush2.xpose.msra.mxu0 0.0
    %1091 = vmatprep.subr.mxu0 0.0
    %1092 = vmatpush2.xpose.msra.mxu0 0.0
    %1093 = vmatprep.subr.mxu0 0.0
    %1094 = vmatpush2.xpose.msra.mxu0 0.0
    %1095 = vmatprep.subr.mxu0 0.0
    %1096 = vmatpush2.xpose.msra.mxu0 0.0
    %1097 = vmatprep.subr.mxu0 0.0
    %1098 = vmatpush2.xpose.msra.mxu0 0.0
    %1099 = vmatprep.subr.mxu0 0.0
    %1100 = vmatpush2.xpose.msra.mxu0 0.0
    %1101 = vmatprep.subr.mxu0 0.0
    %1102 = vmatpush2.xpose.msra.mxu0 0.0
    %1103 = vmatprep.subr.mxu0 0.0
    %1104 = vmatpush2.xpose.msra.mxu0 0.0
    %1105 = vmatprep.subr.mxu0 0.0
    %1106 = vmatpush2.xpose.msra.mxu0 0.0
    %1107 = vmatprep.subr.mxu0 0.0
    %1108 = vmatpush2.xpose.msra.mxu0 0.0
    %1109 = vmatprep.subr.mxu0 0.0
    %1110 = vmatpush2.xpose.msra.mxu0 0.0
    %1111 = vmatprep.subr.mxu0 0.0
    %1112 = vmatpush2.xpose.msra.mxu0 0.0
    %1113 = vmatprep.subr.mxu0 0.0
    %1114 = vmatpush2.xpose.msra.mxu0 0.0
    %1115 = vmatprep.subr.mxu0 0.0
    %1116 = vmatpush2.xpose.msra.mxu0 0.0
    %1117 = vmatprep.mubr.f32.mxu0 0.0
    %1118 = vmatmul.mubr.f32.gmra.mxu0 %v1049
    %v1119 = vpop.f32.mrf.mxu0
    %v1120 = vadd.f32 0.0, %v1119
    %v1121 = vpop.f32.mrf.mxu0
    %1122 = vdwg.mxu0
    %1123 = vrot.lane.b32.xlu0 %v342, 112
    %v1124 = vpop.permute.xlu0 %1123
    %1125 = vrot.lane.b32.xlu0 %v342, 80
    %v1126 = vpop.permute.xlu0 %1125
    %v1127 = vsel %vm362, %v1124, 0
    %v1129 = vsel %vm362, %v1126, 0
    %1131 = vmatprep.subr.mxu0 0.0
    %1132 = vmatpush1.xpose.msra.mxu0 0.0
    %1133 = vmatprep.subr.mxu0 0.0
    %1134 = vmatpush1.xpose.msra.mxu0 0.0
    %1135 = vmatprep.subr.mxu0 0.0
    %1136 = vmatpush1.xpose.msra.mxu0 0.0
    %1137 = vmatprep.subr.mxu0 0.0
    %1138 = vmatpush1.xpose.msra.mxu0 0.0
    %1139 = vmatprep.subr.mxu0 0.0
    %1140 = vmatpush1.xpose.msra.mxu0 0.0
    %1141 = vmatprep.subr.mxu0 0.0
    %1142 = vmatpush1.xpose.msra.mxu0 0.0
    %1143 = vmatprep.subr.mxu0 0.0
    %1144 = vmatpush1.xpose.msra.mxu0 0.0
    %1145 = vmatprep.subr.mxu0 0.0
    %1146 = vmatpush1.xpose.msra.mxu0 0.0
    %1147 = vmatprep.subr.mxu0 0.0
    %1148 = vmatpush1.xpose.msra.mxu0 0.0
    %1149 = vmatprep.subr.mxu0 0.0
    %1150 = vmatpush1.xpose.msra.mxu0 0.0
    %1151 = vmatprep.subr.mxu0 0.0
    %1152 = vmatpush1.xpose.msra.mxu0 0.0
    %1153 = vmatprep.subr.mxu0 0.0
    %1154 = vmatpush1.xpose.msra.mxu0 0.0
    %1155 = vmatprep.subr.mxu0 0.0
    %1156 = vmatpush1.xpose.msra.mxu0 0.0
    %1157 = vmatprep.subr.mxu0 0.0
    %1158 = vmatpush1.xpose.msra.mxu0 0.0
    %1159 = vmatprep.subr.mxu0 0.0
    %1160 = vmatpush1.xpose.msra.mxu0 0.0
    %1161 = vmatprep.subr.mxu0 0.0
    %1162 = vmatpush1.xpose.msra.mxu0 %v1129
    %1163 = vmatprep.subr.mxu0 0.0
    %1164 = vmatpush2.xpose.msra.mxu0 0.0
    %1165 = vmatprep.subr.mxu0 0.0
    %1166 = vmatpush2.xpose.msra.mxu0 0.0
    %1167 = vmatprep.subr.mxu0 0.0
    %1168 = vmatpush2.xpose.msra.mxu0 0.0
    %1169 = vmatprep.subr.mxu0 0.0
    %1170 = vmatpush2.xpose.msra.mxu0 0.0
    %1171 = vmatprep.subr.mxu0 0.0
    %1172 = vmatpush2.xpose.msra.mxu0 0.0
    %1173 = vmatprep.subr.mxu0 0.0
    %1174 = vmatpush2.xpose.msra.mxu0 0.0
    %1175 = vmatprep.subr.mxu0 0.0
    %1176 = vmatpush2.xpose.msra.mxu0 0.0
    %1177 = vmatprep.subr.mxu0 0.0
    %1178 = vmatpush2.xpose.msra.mxu0 0.0
    %1179 = vmatprep.subr.mxu0 0.0
    %1180 = vmatpush2.xpose.msra.mxu0 0.0
    %1181 = vmatprep.subr.mxu0 0.0
    %1182 = vmatpush2.xpose.msra.mxu0 0.0
    %1183 = vmatprep.subr.mxu0 0.0
    %1184 = vmatpush2.xpose.msra.mxu0 0.0
    %1185 = vmatprep.subr.mxu0 0.0
    %1186 = vmatpush2.xpose.msra.mxu0 0.0
    %1187 = vmatprep.subr.mxu0 0.0
    %1188 = vmatpush2.xpose.msra.mxu0 0.0
    %1189 = vmatprep.subr.mxu0 0.0
    %1190 = vmatpush2.xpose.msra.mxu0 0.0
    %1191 = vmatprep.subr.mxu0 0.0
    %1192 = vmatpush2.xpose.msra.mxu0 0.0
    %1193 = vmatprep.subr.mxu0 0.0
    %1194 = vmatpush2.xpose.msra.mxu0 0.0
    %1195 = vmatprep.mubr.f32.mxu0 0.0
    %1196 = vmatmul.mubr.f32.gmra.mxu0 %v1127
    %v1197 = vpop.f32.mrf.mxu0
    %v1198 = vadd.f32 0.0, %v1197
    %v1199 = vpop.f32.mrf.mxu0
    %1200 = vdwg.mxu0
    %1201 = vrot.lane.b32.xlu0 %v347, 112
    %v1202 = vpop.permute.xlu0 %1201
    %1203 = vrot.lane.b32.xlu0 %v347, 80
    %v1204 = vpop.permute.xlu0 %1203
    %v1205 = vsel %vm362, %v1202, 0
    %v1207 = vsel %vm362, %v1204, 0
    %1209 = vmatprep.subr.mxu0 0.0
    %1210 = vmatpush1.xpose.msra.mxu0 0.0
    %1211 = vmatprep.subr.mxu0 0.0
    %1212 = vmatpush1.xpose.msra.mxu0 0.0
    %1213 = vmatprep.subr.mxu0 0.0
    %1214 = vmatpush1.xpose.msra.mxu0 0.0
    %1215 = vmatprep.subr.mxu0 0.0
    %1216 = vmatpush1.xpose.msra.mxu0 0.0
    %1217 = vmatprep.subr.mxu0 0.0
    %1218 = vmatpush1.xpose.msra.mxu0 0.0
    %1219 = vmatprep.subr.mxu0 0.0
    %1220 = vmatpush1.xpose.msra.mxu0 0.0
    %1221 = vmatprep.subr.mxu0 0.0
    %1222 = vmatpush1.xpose.msra.mxu0 0.0
    %1223 = vmatprep.subr.mxu0 0.0
    %1224 = vmatpush1.xpose.msra.mxu0 0.0
    %1225 = vmatprep.subr.mxu0 0.0
    %1226 = vmatpush1.xpose.msra.mxu0 0.0
    %1227 = vmatprep.subr.mxu0 0.0
    %1228 = vmatpush1.xpose.msra.mxu0 0.0
    %1229 = vmatprep.subr.mxu0 0.0
    %1230 = vmatpush1.xpose.msra.mxu0 0.0
    %1231 = vmatprep.subr.mxu0 0.0
    %1232 = vmatpush1.xpose.msra.mxu0 0.0
    %1233 = vmatprep.subr.mxu0 0.0
    %1234 = vmatpush1.xpose.msra.mxu0 0.0
    %1235 = vmatprep.subr.mxu0 0.0
    %1236 = vmatpush1.xpose.msra.mxu0 0.0
    %1237 = vmatprep.subr.mxu0 0.0
    %1238 = vmatpush1.xpose.msra.mxu0 0.0
    %1239 = vmatprep.subr.mxu0 0.0
    %1240 = vmatpush1.xpose.msra.mxu0 %v1207
    %1241 = vmatprep.subr.mxu0 0.0
    %1242 = vmatpush2.xpose.msra.mxu0 0.0
    %1243 = vmatprep.subr.mxu0 0.0
    %1244 = vmatpush2.xpose.msra.mxu0 0.0
    %1245 = vmatprep.subr.mxu0 0.0
    %1246 = vmatpush2.xpose.msra.mxu0 0.0
    %1247 = vmatprep.subr.mxu0 0.0
    %1248 = vmatpush2.xpose.msra.mxu0 0.0
    %1249 = vmatprep.subr.mxu0 0.0
    %1250 = vmatpush2.xpose.msra.mxu0 0.0
    %1251 = vmatprep.subr.mxu0 0.0
    %1252 = vmatpush2.xpose.msra.mxu0 0.0
    %1253 = vmatprep.subr.mxu0 0.0
    %1254 = vmatpush2.xpose.msra.mxu0 0.0
    %1255 = vmatprep.subr.mxu0 0.0
    %1256 = vmatpush2.xpose.msra.mxu0 0.0
    %1257 = vmatprep.subr.mxu0 0.0
    %1258 = vmatpush2.xpose.msra.mxu0 0.0
    %1259 = vmatprep.subr.mxu0 0.0
    %1260 = vmatpush2.xpose.msra.mxu0 0.0
    %1261 = vmatprep.subr.mxu0 0.0
    %1262 = vmatpush2.xpose.msra.mxu0 0.0
    %1263 = vmatprep.subr.mxu0 0.0
    %1264 = vmatpush2.xpose.msra.mxu0 0.0
    %1265 = vmatprep.subr.mxu0 0.0
    %1266 = vmatpush2.xpose.msra.mxu0 0.0
    %1267 = vmatprep.subr.mxu0 0.0
    %1268 = vmatpush2.xpose.msra.mxu0 0.0
    %1269 = vmatprep.subr.mxu0 0.0
    %1270 = vmatpush2.xpose.msra.mxu0 0.0
    %1271 = vmatprep.subr.mxu0 0.0
    %1272 = vmatpush2.xpose.msra.mxu0 0.0
    %1273 = vmatprep.mubr.f32.mxu0 0.0
    %1274 = vmatmul.mubr.f32.gmra.mxu0 %v1205
    %v1275 = vpop.f32.mrf.mxu0
    %v1276 = vadd.f32 0.0, %v1275
    %v1277 = vpop.f32.mrf.mxu0
    %1278 = vdwg.mxu0
    %1279 = vrot.lane.b32.xlu0 %v352, 112
    %v1280 = vpop.permute.xlu0 %1279
    %1281 = vrot.lane.b32.xlu0 %v352, 80
    %v1282 = vpop.permute.xlu0 %1281
    %v1283 = vsel %vm362, %v1280, 0
    %v1285 = vsel %vm362, %v1282, 0
    %1287 = vmatprep.subr.mxu0 0.0
    %1288 = vmatpush1.xpose.msra.mxu0 0.0
    %1289 = vmatprep.subr.mxu0 0.0
    %1290 = vmatpush1.xpose.msra.mxu0 0.0
    %1291 = vmatprep.subr.mxu0 0.0
    %1292 = vmatpush1.xpose.msra.mxu0 0.0
    %1293 = vmatprep.subr.mxu0 0.0
    %1294 = vmatpush1.xpose.msra.mxu0 0.0
    %1295 = vmatprep.subr.mxu0 0.0
    %1296 = vmatpush1.xpose.msra.mxu0 0.0
    %1297 = vmatprep.subr.mxu0 0.0
    %1298 = vmatpush1.xpose.msra.mxu0 0.0
    %1299 = vmatprep.subr.mxu0 0.0
    %1300 = vmatpush1.xpose.msra.mxu0 0.0
    %1301 = vmatprep.subr.mxu0 0.0
    %1302 = vmatpush1.xpose.msra.mxu0 0.0
    %1303 = vmatprep.subr.mxu0 0.0
    %1304 = vmatpush1.xpose.msra.mxu0 0.0
    %1305 = vmatprep.subr.mxu0 0.0
    %1306 = vmatpush1.xpose.msra.mxu0 0.0
    %1307 = vmatprep.subr.mxu0 0.0
    %1308 = vmatpush1.xpose.msra.mxu0 0.0
    %1309 = vmatprep.subr.mxu0 0.0
    %1310 = vmatpush1.xpose.msra.mxu0 0.0
    %1311 = vmatprep.subr.mxu0 0.0
    %1312 = vmatpush1.xpose.msra.mxu0 0.0
    %1313 = vmatprep.subr.mxu0 0.0
    %1314 = vmatpush1.xpose.msra.mxu0 0.0
    %1315 = vmatprep.subr.mxu0 0.0
    %1316 = vmatpush1.xpose.msra.mxu0 0.0
    %1317 = vmatprep.subr.mxu0 0.0
    %1318 = vmatpush1.xpose.msra.mxu0 %v1285
    %1319 = vmatprep.subr.mxu0 0.0
    %1320 = vmatpush2.xpose.msra.mxu0 0.0
    %1321 = vmatprep.subr.mxu0 0.0
    %1322 = vmatpush2.xpose.msra.mxu0 0.0
    %1323 = vmatprep.subr.mxu0 0.0
    %1324 = vmatpush2.xpose.msra.mxu0 0.0
    %1325 = vmatprep.subr.mxu0 0.0
    %1326 = vmatpush2.xpose.msra.mxu0 0.0
    %1327 = vmatprep.subr.mxu0 0.0
    %1328 = vmatpush2.xpose.msra.mxu0 0.0
    %1329 = vmatprep.subr.mxu0 0.0
    %1330 = vmatpush2.xpose.msra.mxu0 0.0
    %1331 = vmatprep.subr.mxu0 0.0
    %1332 = vmatpush2.xpose.msra.mxu0 0.0
    %1333 = vmatprep.subr.mxu0 0.0
    %1334 = vmatpush2.xpose.msra.mxu0 0.0
    %1335 = vmatprep.subr.mxu0 0.0
    %1336 = vmatpush2.xpose.msra.mxu0 0.0
    %1337 = vmatprep.subr.mxu0 0.0
    %1338 = vmatpush2.xpose.msra.mxu0 0.0
    %1339 = vmatprep.subr.mxu0 0.0
    %1340 = vmatpush2.xpose.msra.mxu0 0.0
    %1341 = vmatprep.subr.mxu0 0.0
    %1342 = vmatpush2.xpose.msra.mxu0 0.0
    %1343 = vmatprep.subr.mxu0 0.0
    %1344 = vmatpush2.xpose.msra.mxu0 0.0
    %1345 = vmatprep.subr.mxu0 0.0
    %1346 = vmatpush2.xpose.msra.mxu0 0.0
    %1347 = vmatprep.subr.mxu0 0.0
    %1348 = vmatpush2.xpose.msra.mxu0 0.0
    %1349 = vmatprep.subr.mxu0 0.0
    %1350 = vmatpush2.xpose.msra.mxu0 0.0
    %1351 = vmatprep.mubr.f32.mxu0 0.0
    %1352 = vmatmul.mubr.f32.gmra.mxu0 %v1283
    %v1353 = vpop.f32.mrf.mxu0
    %v1354 = vadd.f32 0.0, %v1353
    %v1355 = vpop.f32.mrf.mxu0
    %1356 = vdwg.mxu0
    %v1357 = vmul.f32 %v1120, 0.25
    %v1358 = vmul.f32 %v1198, 0.25
    %v1359 = vmul.f32 %v1276, 0.25
    %v1360 = vmul.f32 %v1354, 0.25
    %v1361 = vadd.f32 %v1357, %v675
    %v1362 = vadd.f32 %v1358, %v679
    %v1363 = vadd.f32 %v1359, %v683
    %v1364 = vadd.f32 %v1360, %v687
    %v1365 = vsel %vm696, %v1361, -inf
    %1366 = vmax.xlane.f32.xlu0 %v1365
    %v1367 = vpop.xlane.xlu0 %1366
    %v1368 = vsel %vm696, %v1362, -inf
    %1369 = vmax.xlane.f32.xlu0 %v1368
    %v1370 = vpop.xlane.xlu0 %1369
    %v1371 = vsel %vm696, %v1363, -inf
    %1372 = vmax.xlane.f32.xlu0 %v1371
    %v1373 = vpop.xlane.xlu0 %1372
    %v1374 = vsel %vm696, %v1364, -inf
    %1375 = vmax.xlane.f32.xlu0 %v1374
    %v1376 = vpop.xlane.xlu0 %1375
    %v1377 = vsub.f32 %v1361, %v1367
    %v1378 = vsub.f32 %v1362, %v1370
    %v1379 = vsub.f32 %v1363, %v1373
    %v1380 = vsub.f32 %v1364, %v1376
    %v1381 = vmul.f32 %v1377, 1.442695
    %v1382 = vpow.pop %v1381
    %v1383 = vmul.f32 %v1378, 1.442695
    %v1384 = vpow.pop %v1383
    %v1385 = vmul.f32 %v1379, 1.442695
    %v1386 = vpow.pop %v1385
    %v1387 = vmul.f32 %v1380, 1.442695
    %v1388 = vpow.pop %v1387
    %v1389 = vsel %vm696, %v1382, 0.0
    %1390 = vadd.xlane.f32.xlu0 %v1389
    %v1391 = vpop.xlane.xlu0 %1390
    %v1392 = vsel %vm696, %v1384, 0.0
    %1393 = vadd.xlane.f32.xlu0 %v1392
    %v1394 = vpop.xlane.xlu0 %1393
    %v1395 = vsel %vm696, %v1386, 0.0
    %1396 = vadd.xlane.f32.xlu0 %v1395
    %v1397 = vpop.xlane.xlu0 %1396
    %v1398 = vsel %vm696, %v1388, 0.0
    %1399 = vadd.xlane.f32.xlu0 %v1398
    %v1400 = vpop.xlane.xlu0 %1399
    %v1401 = vrcp.pop %v1391
    %v1402 = vrcp.pop %v1394
    %v1403 = vrcp.pop %v1397
    %v1404 = vrcp.pop %v1400
    %v1405 = vmul.f32 %v1382, %v1401
    %v1406 = vmul.f32 %v1384, %v1402
    %v1407 = vmul.f32 %v1386, %v1403
    %v1408 = vmul.f32 %v1388, %v1404
    %1409 = vrot.lane.b32.xlu0 %v337, 48
    %v1410 = vpop.permute.xlu0 %1409
    %v1413 = vsel %vm696, %v1405, 0
    %1415 = vmatprep.subr.mxu0 0.0
    %1416 = vmatpush1.msra.mxu0 0.0
    %1417 = vmatprep.subr.mxu0 0.0
    %1418 = vmatpush1.msra.mxu0 0.0
    %1419 = vmatprep.subr.mxu0 0.0
    %1420 = vmatpush1.msra.mxu0 0.0
    %1421 = vmatprep.subr.mxu0 0.0
    %1422 = vmatpush1.msra.mxu0 0.0
    %1423 = vmatprep.subr.mxu0 0.0
    %1424 = vmatpush1.msra.mxu0 0.0
    %1425 = vmatprep.subr.mxu0 0.0
    %1426 = vmatpush1.msra.mxu0 0.0
    %1427 = vmatprep.subr.mxu0 0.0
    %1428 = vmatpush1.msra.mxu0 0.0
    %1429 = vmatprep.subr.mxu0 0.0
    %1430 = vmatpush1.msra.mxu0 0.0
    %1431 = vmatprep.subr.mxu0 0.0
    %1432 = vmatpush1.msra.mxu0 0.0
    %1433 = vmatprep.subr.mxu0 0.0
    %1434 = vmatpush1.msra.mxu0 0.0
    %1435 = vmatprep.subr.mxu0 0.0
    %1436 = vmatpush1.msra.mxu0 0.0
    %1437 = vmatprep.subr.mxu0 0.0
    %1438 = vmatpush1.msra.mxu0 0.0
    %1439 = vmatprep.subr.mxu0 0.0
    %1440 = vmatpush1.msra.mxu0 0.0
    %1441 = vmatprep.subr.mxu0 0.0
    %1442 = vmatpush1.msra.mxu0 0.0
    %1443 = vmatprep.subr.mxu0 0.0
    %1444 = vmatpush1.msra.mxu0 0.0
    %1445 = vmatprep.subr.mxu0 0.0
    %1446 = vmatpush1.msra.mxu0 %v1410
    %1447 = vmatprep.subr.mxu0 0.0
    %1448 = vmatpush2.msra.mxu0 0.0
    %1449 = vmatprep.subr.mxu0 0.0
    %1450 = vmatpush2.msra.mxu0 0.0
    %1451 = vmatprep.subr.mxu0 0.0
    %1452 = vmatpush2.msra.mxu0 0.0
    %1453 = vmatprep.subr.mxu0 0.0
    %1454 = vmatpush2.msra.mxu0 0.0
    %1455 = vmatprep.subr.mxu0 0.0
    %1456 = vmatpush2.msra.mxu0 0.0
    %1457 = vmatprep.subr.mxu0 0.0
    %1458 = vmatpush2.msra.mxu0 0.0
    %1459 = vmatprep.subr.mxu0 0.0
    %1460 = vmatpush2.msra.mxu0 0.0
    %1461 = vmatprep.subr.mxu0 0.0
    %1462 = vmatpush2.msra.mxu0 0.0
    %1463 = vmatprep.subr.mxu0 0.0
    %1464 = vmatpush2.msra.mxu0 0.0
    %1465 = vmatprep.subr.mxu0 0.0
    %1466 = vmatpush2.msra.mxu0 0.0
    %1467 = vmatprep.subr.mxu0 0.0
    %1468 = vmatpush2.msra.mxu0 0.0
    %1469 = vmatprep.subr.mxu0 0.0
    %1470 = vmatpush2.msra.mxu0 0.0
    %1471 = vmatprep.subr.mxu0 0.0
    %1472 = vmatpush2.msra.mxu0 0.0
    %1473 = vmatprep.subr.mxu0 0.0
    %1474 = vmatpush2.msra.mxu0 0.0
    %1475 = vmatprep.subr.mxu0 0.0
    %1476 = vmatpush2.msra.mxu0 0.0
    %1477 = vmatprep.subr.mxu0 0.0
    %1478 = vmatpush2.msra.mxu0 0.0
    %1479 = vmatprep.mubr.f32.mxu0 0.0
    %1480 = vmatmul.mubr.f32.gmra.mxu0 %v1413
    %v1481 = vpop.f32.mrf.mxu0
    %v1482 = vadd.f32 0.0, %v1481
    %v1483 = vpop.f32.mrf.mxu0
    %1484 = vdwg.mxu0
    %1485 = vrot.lane.b32.xlu0 %v342, 48
    %v1486 = vpop.permute.xlu0 %1485
    %v1489 = vsel %vm696, %v1406, 0
    %1491 = vmatprep.subr.mxu0 0.0
    %1492 = vmatpush1.msra.mxu0 0.0
    %1493 = vmatprep.subr.mxu0 0.0
    %1494 = vmatpush1.msra.mxu0 0.0
    %1495 = vmatprep.subr.mxu0 0.0
    %1496 = vmatpush1.msra.mxu0 0.0
    %1497 = vmatprep.subr.mxu0 0.0
    %1498 = vmatpush1.msra.mxu0 0.0
    %1499 = vmatprep.subr.mxu0 0.0
    %1500 = vmatpush1.msra.mxu0 0.0
    %1501 = vmatprep.subr.mxu0 0.0
    %1502 = vmatpush1.msra.mxu0 0.0
    %1503 = vmatprep.subr.mxu0 0.0
    %1504 = vmatpush1.msra.mxu0 0.0
    %1505 = vmatprep.subr.mxu0 0.0
    %1506 = vmatpush1.msra.mxu0 0.0
    %1507 = vmatprep.subr.mxu0 0.0
    %1508 = vmatpush1.msra.mxu0 0.0
    %1509 = vmatprep.subr.mxu0 0.0
    %1510 = vmatpush1.msra.mxu0 0.0
    %1511 = vmatprep.subr.mxu0 0.0
    %1512 = vmatpush1.msra.mxu0 0.0
    %1513 = vmatprep.subr.mxu0 0.0
    %1514 = vmatpush1.msra.mxu0 0.0
    %1515 = vmatprep.subr.mxu0 0.0
    %1516 = vmatpush1.msra.mxu0 0.0
    %1517 = vmatprep.subr.mxu0 0.0
    %1518 = vmatpush1.msra.mxu0 0.0
    %1519 = vmatprep.subr.mxu0 0.0
    %1520 = vmatpush1.msra.mxu0 0.0
    %1521 = vmatprep.subr.mxu0 0.0
    %1522 = vmatpush1.msra.mxu0 %v1486
    %1523 = vmatprep.subr.mxu0 0.0
    %1524 = vmatpush2.msra.mxu0 0.0
    %1525 = vmatprep.subr.mxu0 0.0
    %1526 = vmatpush2.msra.mxu0 0.0
    %1527 = vmatprep.subr.mxu0 0.0
    %1528 = vmatpush2.msra.mxu0 0.0
    %1529 = vmatprep.subr.mxu0 0.0
    %1530 = vmatpush2.msra.mxu0 0.0
    %1531 = vmatprep.subr.mxu0 0.0
    %1532 = vmatpush2.msra.mxu0 0.0
    %1533 = vmatprep.subr.mxu0 0.0
    %1534 = vmatpush2.msra.mxu0 0.0
    %1535 = vmatprep.subr.mxu0 0.0
    %1536 = vmatpush2.msra.mxu0 0.0
    %1537 = vmatprep.subr.mxu0 0.0
    %1538 = vmatpush2.msra.mxu0 0.0
    %1539 = vmatprep.subr.mxu0 0.0
    %1540 = vmatpush2.msra.mxu0 0.0
    %1541 = vmatprep.subr.mxu0 0.0
    %1542 = vmatpush2.msra.mxu0 0.0
    %1543 = vmatprep.subr.mxu0 0.0
    %1544 = vmatpush2.msra.mxu0 0.0
    %1545 = vmatprep.subr.mxu0 0.0
    %1546 = vmatpush2.msra.mxu0 0.0
    %1547 = vmatprep.subr.mxu0 0.0
    %1548 = vmatpush2.msra.mxu0 0.0
    %1549 = vmatprep.subr.mxu0 0.0
    %1550 = vmatpush2.msra.mxu0 0.0
    %1551 = vmatprep.subr.mxu0 0.0
    %1552 = vmatpush2.msra.mxu0 0.0
    %1553 = vmatprep.subr.mxu0 0.0
    %1554 = vmatpush2.msra.mxu0 0.0
    %1555 = vmatprep.mubr.f32.mxu0 0.0
    %1556 = vmatmul.mubr.f32.gmra.mxu0 %v1489
    %v1557 = vpop.f32.mrf.mxu0
    %v1558 = vadd.f32 0.0, %v1557
    %v1559 = vpop.f32.mrf.mxu0
    %1560 = vdwg.mxu0
    %1561 = vrot.lane.b32.xlu0 %v347, 48
    %v1562 = vpop.permute.xlu0 %1561
    %v1565 = vsel %vm696, %v1407, 0
    %1567 = vmatprep.subr.mxu0 0.0
    %1568 = vmatpush1.msra.mxu0 0.0
    %1569 = vmatprep.subr.mxu0 0.0
    %1570 = vmatpush1.msra.mxu0 0.0
    %1571 = vmatprep.subr.mxu0 0.0
    %1572 = vmatpush1.msra.mxu0 0.0
    %1573 = vmatprep.subr.mxu0 0.0
    %1574 = vmatpush1.msra.mxu0 0.0
    %1575 = vmatprep.subr.mxu0 0.0
    %1576 = vmatpush1.msra.mxu0 0.0
    %1577 = vmatprep.subr.mxu0 0.0
    %1578 = vmatpush1.msra.mxu0 0.0
    %1579 = vmatprep.subr.mxu0 0.0
    %1580 = vmatpush1.msra.mxu0 0.0
    %1581 = vmatprep.subr.mxu0 0.0
    %1582 = vmatpush1.msra.mxu0 0.0
    %1583 = vmatprep.subr.mxu0 0.0
    %1584 = vmatpush1.msra.mxu0 0.0
    %1585 = vmatprep.subr.mxu0 0.0
    %1586 = vmatpush1.msra.mxu0 0.0
    %1587 = vmatprep.subr.mxu0 0.0
    %1588 = vmatpush1.msra.mxu0 0.0
    %1589 = vmatprep.subr.mxu0 0.0
    %1590 = vmatpush1.msra.mxu0 0.0
    %1591 = vmatprep.subr.mxu0 0.0
    %1592 = vmatpush1.msra.mxu0 0.0
    %1593 = vmatprep.subr.mxu0 0.0
    %1594 = vmatpush1.msra.mxu0 0.0
    %1595 = vmatprep.subr.mxu0 0.0
    %1596 = vmatpush1.msra.mxu0 0.0
    %1597 = vmatprep.subr.mxu0 0.0
    %1598 = vmatpush1.msra.mxu0 %v1562
    %1599 = vmatprep.subr.mxu0 0.0
    %1600 = vmatpush2.msra.mxu0 0.0
    %1601 = vmatprep.subr.mxu0 0.0
    %1602 = vmatpush2.msra.mxu0 0.0
    %1603 = vmatprep.subr.mxu0 0.0
    %1604 = vmatpush2.msra.mxu0 0.0
    %1605 = vmatprep.subr.mxu0 0.0
    %1606 = vmatpush2.msra.mxu0 0.0
    %1607 = vmatprep.subr.mxu0 0.0
    %1608 = vmatpush2.msra.mxu0 0.0
    %1609 = vmatprep.subr.mxu0 0.0
    %1610 = vmatpush2.msra.mxu0 0.0
    %1611 = vmatprep.subr.mxu0 0.0
    %1612 = vmatpush2.msra.mxu0 0.0
    %1613 = vmatprep.subr.mxu0 0.0
    %1614 = vmatpush2.msra.mxu0 0.0
    %1615 = vmatprep.subr.mxu0 0.0
    %1616 = vmatpush2.msra.mxu0 0.0
    %1617 = vmatprep.subr.mxu0 0.0
    %1618 = vmatpush2.msra.mxu0 0.0
    %1619 = vmatprep.subr.mxu0 0.0
    %1620 = vmatpush2.msra.mxu0 0.0
    %1621 = vmatprep.subr.mxu0 0.0
    %1622 = vmatpush2.msra.mxu0 0.0
    %1623 = vmatprep.subr.mxu0 0.0
    %1624 = vmatpush2.msra.mxu0 0.0
    %1625 = vmatprep.subr.mxu0 0.0
    %1626 = vmatpush2.msra.mxu0 0.0
    %1627 = vmatprep.subr.mxu0 0.0
    %1628 = vmatpush2.msra.mxu0 0.0
    %1629 = vmatprep.subr.mxu0 0.0
    %1630 = vmatpush2.msra.mxu0 0.0
    %1631 = vmatprep.mubr.f32.mxu0 0.0
    %1632 = vmatmul.mubr.f32.gmra.mxu0 %v1565
    %v1633 = vpop.f32.mrf.mxu0
    %v1634 = vadd.f32 0.0, %v1633
    %v1635 = vpop.f32.mrf.mxu0
    %1636 = vdwg.mxu0
    %1637 = vrot.lane.b32.xlu0 %v352, 48
    %v1638 = vpop.permute.xlu0 %1637
    %v1641 = vsel %vm696, %v1408, 0
    %1643 = vmatprep.subr.mxu0 0.0
    %1644 = vmatpush1.msra.mxu0 0.0
    %1645 = vmatprep.subr.mxu0 0.0
    %1646 = vmatpush1.msra.mxu0 0.0
    %1647 = vmatprep.subr.mxu0 0.0
    %1648 = vmatpush1.msra.mxu0 0.0
    %1649 = vmatprep.subr.mxu0 0.0
    %1650 = vmatpush1.msra.mxu0 0.0
    %1651 = vmatprep.subr.mxu0 0.0
    %1652 = vmatpush1.msra.mxu0 0.0
    %1653 = vmatprep.subr.mxu0 0.0
    %1654 = vmatpush1.msra.mxu0 0.0
    %1655 = vmatprep.subr.mxu0 0.0
    %1656 = vmatpush1.msra.mxu0 0.0
    %1657 = vmatprep.subr.mxu0 0.0
    %1658 = vmatpush1.msra.mxu0 0.0
    %1659 = vmatprep.subr.mxu0 0.0
    %1660 = vmatpush1.msra.mxu0 0.0
    %1661 = vmatprep.subr.mxu0 0.0
    %1662 = vmatpush1.msra.mxu0 0.0
    %1663 = vmatprep.subr.mxu0 0.0
    %1664 = vmatpush1.msra.mxu0 0.0
    %1665 = vmatprep.subr.mxu0 0.0
    %1666 = vmatpush1.msra.mxu0 0.0
    %1667 = vmatprep.subr.mxu0 0.0
    %1668 = vmatpush1.msra.mxu0 0.0
    %1669 = vmatprep.subr.mxu0 0.0
    %1670 = vmatpush1.msra.mxu0 0.0
    %1671 = vmatprep.subr.mxu0 0.0
    %1672 = vmatpush1.msra.mxu0 0.0
    %1673 = vmatprep.subr.mxu0 0.0
    %1674 = vmatpush1.msra.mxu0 %v1638
    %1675 = vmatprep.subr.mxu0 0.0
    %1676 = vmatpush2.msra.mxu0 0.0
    %1677 = vmatprep.subr.mxu0 0.0
    %1678 = vmatpush2.msra.mxu0 0.0
    %1679 = vmatprep.subr.mxu0 0.0
    %1680 = vmatpush2.msra.mxu0 0.0
    %1681 = vmatprep.subr.mxu0 0.0
    %1682 = vmatpush2.msra.mxu0 0.0
    %1683 = vmatprep.subr.mxu0 0.0
    %1684 = vmatpush2.msra.mxu0 0.0
    %1685 = vmatprep.subr.mxu0 0.0
    %1686 = vmatpush2.msra.mxu0 0.0
    %1687 = vmatprep.subr.mxu0 0.0
    %1688 = vmatpush2.msra.mxu0 0.0
    %1689 = vmatprep.subr.mxu0 0.0
    %1690 = vmatpush2.msra.mxu0 0.0
    %1691 = vmatprep.subr.mxu0 0.0
    %1692 = vmatpush2.msra.mxu0 0.0
    %1693 = vmatprep.subr.mxu0 0.0
    %1694 = vmatpush2.msra.mxu0 0.0
    %1695 = vmatprep.subr.mxu0 0.0
    %1696 = vmatpush2.msra.mxu0 0.0
    %1697 = vmatprep.subr.mxu0 0.0
    %1698 = vmatpush2.msra.mxu0 0.0
    %1699 = vmatprep.subr.mxu0 0.0
    %1700 = vmatpush2.msra.mxu0 0.0
    %1701 = vmatprep.subr.mxu0 0.0
    %1702 = vmatpush2.msra.mxu0 0.0
    %1703 = vmatprep.subr.mxu0 0.0
    %1704 = vmatpush2.msra.mxu0 0.0
    %1705 = vmatprep.subr.mxu0 0.0
    %1706 = vmatpush2.msra.mxu0 0.0
    %1707 = vmatprep.mubr.f32.mxu0 0.0
    %1708 = vmatmul.mubr.f32.gmra.mxu0 %v1641
    %v1709 = vpop.f32.mrf.mxu0
    %v1710 = vadd.f32 0.0, %v1709
    %v1711 = vpop.f32.mrf.mxu0
    %1712 = vdwg.mxu0
    %v1714 = vsel %vm362, %v1482, 0
    %v1717 = vsel %vm362, %v1558, 0
    %v1720 = vsel %vm362, %v1634, 0
    %v1723 = vsel %vm362, %v1710, 0
    %1725 = vmatprep.subr.mxu0 0.0
    %1726 = vmatpush1.msra.mxu0 0.0
    %1727 = vmatprep.subr.mxu0 0.0
    %1728 = vmatpush1.msra.mxu0 0.0
    %1729 = vmatprep.subr.mxu0 0.0
    %1730 = vmatpush1.msra.mxu0 0.0
    %1731 = vmatprep.subr.mxu0 0.0
    %1732 = vmatpush1.msra.mxu0 0.0
    %1733 = vmatprep.subr.mxu0 0.0
    %1734 = vmatpush1.msra.mxu0 0.0
    %1735 = vmatprep.subr.mxu0 0.0
    %1736 = vmatpush1.msra.mxu0 0.0
    %1737 = vmatprep.subr.mxu0 0.0
    %1738 = vmatpush1.msra.mxu0 0.0
    %1739 = vmatprep.subr.mxu0 0.0
    %1740 = vmatpush1.msra.mxu0 0.0
    %1741 = vmatprep.subr.mxu0 0.0
    %1742 = vmatpush1.msra.mxu0 0.0
    %1743 = vmatprep.subr.mxu0 0.0
    %1744 = vmatpush1.msra.mxu0 0.0
    %1745 = vmatprep.subr.mxu0 0.0
    %1746 = vmatpush1.msra.mxu0 0.0
    %1747 = vmatprep.subr.mxu0 0.0
    %1748 = vmatpush1.msra.mxu0 0.0
    %1749 = vmatprep.subr.mxu0 0.0
    %1750 = vmatpush1.msra.mxu0 0.0
    %1751 = vmatprep.subr.mxu0 0.0
    %1752 = vmatpush1.msra.mxu0 0.0
    %1753 = vmatprep.subr.mxu0 0.0
    %1754 = vmatpush1.msra.mxu0 %v358
    %1755 = vmatprep.subr.mxu0 0.0
    %1756 = vmatpush1.msra.mxu0 %v357
    %1757 = vmatprep.subr.mxu0 0.0
    %1758 = vmatpush2.msra.mxu0 0.0
    %1759 = vmatprep.subr.mxu0 0.0
    %1760 = vmatpush2.msra.mxu0 0.0
    %1761 = vmatprep.subr.mxu0 0.0
    %1762 = vmatpush2.msra.mxu0 0.0
    %1763 = vmatprep.subr.mxu0 0.0
    %1764 = vmatpush2.msra.mxu0 0.0
    %1765 = vmatprep.subr.mxu0 0.0
    %1766 = vmatpush2.msra.mxu0 0.0
    %1767 = vmatprep.subr.mxu0 0.0
    %1768 = vmatpush2.msra.mxu0 0.0
    %1769 = vmatprep.subr.mxu0 0.0
    %1770 = vmatpush2.msra.mxu0 0.0
    %1771 = vmatprep.subr.mxu0 0.0
    %1772 = vmatpush2.msra.mxu0 0.0
    %1773 = vmatprep.subr.mxu0 0.0
    %1774 = vmatpush2.msra.mxu0 0.0
    %1775 = vmatprep.subr.mxu0 0.0
    %1776 = vmatpush2.msra.mxu0 0.0
    %1777 = vmatprep.subr.mxu0 0.0
    %1778 = vmatpush2.msra.mxu0 0.0
    %1779 = vmatprep.subr.mxu0 0.0
    %1780 = vmatpush2.msra.mxu0 0.0
    %1781 = vmatprep.subr.mxu0 0.0
    %1782 = vmatpush2.msra.mxu0 0.0
    %1783 = vmatprep.subr.mxu0 0.0
    %1784 = vmatpush2.msra.mxu0 0.0
    %1785 = vmatprep.subr.mxu0 0.0
    %1786 = vmatpush2.msra.mxu0 0.0
    %1787 = vmatprep.subr.mxu0 0.0
    %1788 = vmatpush2.msra.mxu0 0.0
    %1789 = vmatprep.mubr.f32.mxu0 0.0
    %1790 = vmatmul.mubr.f32.gmra.mxu0 %v1714
    %v1791 = vpop.f32.mrf.mxu0
    %v1792 = vadd.f32 0.0, %v1791
    %v1793 = vpop.f32.mrf.mxu0
    %1794 = vmatprep.mubr.f32.mxu0 0.0
    %1795 = vmatmul.mubr.f32.gmra.mxu0 %v1717
    %v1796 = vpop.f32.mrf.mxu0
    %v1797 = vadd.f32 0.0, %v1796
    %v1798 = vpop.f32.mrf.mxu0
    %1799 = vmatprep.mubr.f32.mxu0 0.0
    %1800 = vmatmul.mubr.f32.gmra.mxu0 %v1720
    %v1801 = vpop.f32.mrf.mxu0
    %v1802 = vadd.f32 0.0, %v1801
    %v1803 = vpop.f32.mrf.mxu0
    %1804 = vmatprep.mubr.f32.mxu0 0.0
    %1805 = vmatmul.mubr.f32.gmra.mxu0 %v1723
    %v1806 = vpop.f32.mrf.mxu0
    %v1807 = vadd.f32 0.0, %v1806
    %v1808 = vpop.f32.mrf.mxu0
    %1809 = vdwg.mxu0
    %v1811 = vsel %vm362, %v814, 0
    %v1814 = vsel %vm362, %v890, 0
    %v1817 = vsel %vm362, %v966, 0
    %v1820 = vsel %vm362, %v1042, 0
    %1822 = vmatprep.subr.mxu0 0.0
    %1823 = vmatpush1.msra.mxu0 0.0
    %1824 = vmatprep.subr.mxu0 0.0
    %1825 = vmatpush1.msra.mxu0 0.0
    %1826 = vmatprep.subr.mxu0 0.0
    %1827 = vmatpush1.msra.mxu0 0.0
    %1828 = vmatprep.subr.mxu0 0.0
    %1829 = vmatpush1.msra.mxu0 0.0
    %1830 = vmatprep.subr.mxu0 0.0
    %1831 = vmatpush1.msra.mxu0 0.0
    %1832 = vmatprep.subr.mxu0 0.0
    %1833 = vmatpush1.msra.mxu0 0.0
    %1834 = vmatprep.subr.mxu0 0.0
    %1835 = vmatpush1.msra.mxu0 0.0
    %1836 = vmatprep.subr.mxu0 0.0
    %1837 = vmatpush1.msra.mxu0 0.0
    %1838 = vmatprep.subr.mxu0 0.0
    %1839 = vmatpush1.msra.mxu0 0.0
    %1840 = vmatprep.subr.mxu0 0.0
    %1841 = vmatpush1.msra.mxu0 0.0
    %1842 = vmatprep.subr.mxu0 0.0
    %1843 = vmatpush1.msra.mxu0 0.0
    %1844 = vmatprep.subr.mxu0 0.0
    %1845 = vmatpush1.msra.mxu0 0.0
    %1846 = vmatprep.subr.mxu0 0.0
    %1847 = vmatpush1.msra.mxu0 0.0
    %1848 = vmatprep.subr.mxu0 0.0
    %1849 = vmatpush1.msra.mxu0 0.0
    %1850 = vmatprep.subr.mxu0 0.0
    %1851 = vmatpush1.msra.mxu0 %v356
    %1852 = vmatprep.subr.mxu0 0.0
    %1853 = vmatpush1.msra.mxu0 %v355
    %1854 = vmatprep.subr.mxu0 0.0
    %1855 = vmatpush2.msra.mxu0 0.0
    %1856 = vmatprep.subr.mxu0 0.0
    %1857 = vmatpush2.msra.mxu0 0.0
    %1858 = vmatprep.subr.mxu0 0.0
    %1859 = vmatpush2.msra.mxu0 0.0
    %1860 = vmatprep.subr.mxu0 0.0
    %1861 = vmatpush2.msra.mxu0 0.0
    %1862 = vmatprep.subr.mxu0 0.0
    %1863 = vmatpush2.msra.mxu0 0.0
    %1864 = vmatprep.subr.mxu0 0.0
    %1865 = vmatpush2.msra.mxu0 0.0
    %1866 = vmatprep.subr.mxu0 0.0
    %1867 = vmatpush2.msra.mxu0 0.0
    %1868 = vmatprep.subr.mxu0 0.0
    %1869 = vmatpush2.msra.mxu0 0.0
    %1870 = vmatprep.subr.mxu0 0.0
    %1871 = vmatpush2.msra.mxu0 0.0
    %1872 = vmatprep.subr.mxu0 0.0
    %1873 = vmatpush2.msra.mxu0 0.0
    %1874 = vmatprep.subr.mxu0 0.0
    %1875 = vmatpush2.msra.mxu0 0.0
    %1876 = vmatprep.subr.mxu0 0.0
    %1877 = vmatpush2.msra.mxu0 0.0
    %1878 = vmatprep.subr.mxu0 0.0
    %1879 = vmatpush2.msra.mxu0 0.0
    %1880 = vmatprep.subr.mxu0 0.0
    %1881 = vmatpush2.msra.mxu0 0.0
    %1882 = vmatprep.subr.mxu0 0.0
    %1883 = vmatpush2.msra.mxu0 0.0
    %1884 = vmatprep.subr.mxu0 0.0
    %1885 = vmatpush2.msra.mxu0 0.0
    %1886 = vmatprep.mubr.f32.mxu0 0.0
    %1887 = vmatmul.mubr.f32.gmra.mxu0 %v1811
    %v1888 = vpop.f32.mrf.mxu0
    %v1889 = vadd.f32 %v1792, %v1888
    %v1890 = vpop.f32.mrf.mxu0
    %1891 = vmatprep.mubr.f32.mxu0 0.0
    %1892 = vmatmul.mubr.f32.gmra.mxu0 %v1814
    %v1893 = vpop.f32.mrf.mxu0
    %v1894 = vadd.f32 %v1797, %v1893
    %v1895 = vpop.f32.mrf.mxu0
    %1896 = vmatprep.mubr.f32.mxu0 0.0
    %1897 = vmatmul.mubr.f32.gmra.mxu0 %v1817
    %v1898 = vpop.f32.mrf.mxu0
    %v1899 = vadd.f32 %v1802, %v1898
    %v1900 = vpop.f32.mrf.mxu0
    %1901 = vmatprep.mubr.f32.mxu0 0.0
    %1902 = vmatmul.mubr.f32.gmra.mxu0 %v1820
    %v1903 = vpop.f32.mrf.mxu0
    %v1904 = vadd.f32 %v1807, %v1903
    %v1905 = vpop.f32.mrf.mxu0
    %1906 = vdwg.mxu0
    %v1907 = vadd.f32 %v215, %v1889
    %v1908 = vadd.f32 %v216, %v1894
    %v1909 = vadd.f32 %v217, %v1899
    %v1910 = vadd.f32 %v218, %v1904
    %v1911 = vld [vmem:[%s15] sm:$0x1]
    %v1913 = vlaneseq
    %v1914 = vshrl.u32 %v1913, 7
    %v1915 = vsub.s32 0, %v1914
    %v1916 = vrot.slane %v1911, %v1915
    %v1918 = vadd.f32 %v1907, %v1916
    %v1919 = vadd.f32 %v1908, %v1916
    %v1920 = vadd.f32 %v1909, %v1916
    %v1921 = vadd.f32 %v1910, %v1916
    %v1922 = vld [vmem:[%s17] sm:$0x1]
    %v1923 = vld [vmem:[%s19] sm:$0x1]
    %v1924 = vsel %vm145, %v1918, 0.0
    %1925 = vadd.xlane.f32.xlu0 %v1924
    %v1926 = vpop.xlane.xlu0 %1925
    %v1927 = vsel %vm145, %v1919, 0.0
    %1928 = vadd.xlane.f32.xlu0 %v1927
    %v1929 = vpop.xlane.xlu0 %1928
    %v1930 = vsel %vm145, %v1920, 0.0
    %1931 = vadd.xlane.f32.xlu0 %v1930
    %v1932 = vpop.xlane.xlu0 %1931
    %v1933 = vsel %vm145, %v1921, 0.0
    %1934 = vadd.xlane.f32.xlu0 %v1933
    %v1935 = vpop.xlane.xlu0 %1934
    %v1936 = vmul.f32 %v1926, %v158
    %v1937 = vmul.f32 %v1929, %v158
    %v1938 = vmul.f32 %v1932, %v158
    %v1939 = vmul.f32 %v1935, %v158
    %v1940 = vsub.f32 %v1918, %v1936
    %v1941 = vsub.f32 %v1919, %v1937
    %v1942 = vsub.f32 %v1920, %v1938
    %v1943 = vsub.f32 %v1921, %v1939
    %v1944 = vmul.f32 %v1940, %v1940
    %v1945 = vmul.f32 %v1941, %v1941
    %v1946 = vmul.f32 %v1942, %v1942
    %v1947 = vmul.f32 %v1943, %v1943
    %v1948 = vsel %vm145, %v1944, 0.0
    %1949 = vadd.xlane.f32.xlu0 %v1948
    %v1950 = vpop.xlane.xlu0 %1949
    %v1951 = vsel %vm145, %v1945, 0.0
    %1952 = vadd.xlane.f32.xlu0 %v1951
    %v1953 = vpop.xlane.xlu0 %1952
    %v1954 = vsel %vm145, %v1946, 0.0
    %1955 = vadd.xlane.f32.xlu0 %v1954
    %v1956 = vpop.xlane.xlu0 %1955
    %v1957 = vsel %vm145, %v1947, 0.0
    %1958 = vadd.xlane.f32.xlu0 %v1957
    %v1959 = vpop.xlane.xlu0 %1958
    %v1960 = vmul.f32 %v1950, %v158
    %v1961 = vmul.f32 %v1953, %v158
    %v1962 = vmul.f32 %v1956, %v158
    %v1963 = vmul.f32 %v1959, %v158
    %v1964 = vadd.f32 %v1960, 1e-12
    %v1965 = vadd.f32 %v1961, 1e-12
    %v1966 = vadd.f32 %v1962, 1e-12
    %v1967 = vadd.f32 %v1963, 1e-12
    %v1968 = vrsqrt.pop %v1964
    %v1969 = vrsqrt.pop %v1965
    %v1970 = vrsqrt.pop %v1966
    %v1971 = vrsqrt.pop %v1967
    %v1972 = vmul.f32 %v1940, %v1968
    %v1973 = vmul.f32 %v1941, %v1969
    %v1974 = vmul.f32 %v1942, %v1970
    %v1975 = vmul.f32 %v1943, %v1971
    %v1977 = vlaneseq
    %v1978 = vshrl.u32 %v1977, 7
    %v1979 = vsub.s32 0, %v1978
    %v1980 = vrot.slane %v1922, %v1979
    %v1982 = vmul.f32 %v1972, %v1980
    %v1983 = vmul.f32 %v1973, %v1980
    %v1984 = vmul.f32 %v1974, %v1980
    %v1985 = vmul.f32 %v1975, %v1980
    %v1987 = vlaneseq
    %v1988 = vshrl.u32 %v1987, 7
    %v1989 = vsub.s32 0, %v1988
    %v1990 = vrot.slane %v1923, %v1989
    %v1992 = vadd.f32 %v1982, %v1990
    %v1993 = vadd.f32 %v1983, %v1990
    %v1994 = vadd.f32 %v1984, %v1990
    %v1995 = vadd.f32 %v1985, %v1990
    %v1996 = vld [vmem:[%s21] sm:$0xff]
    %v1997 = vld [vmem:[%s21 + $0x8] sm:$0xff]
    %v1998 = vld [vmem:[%s21 + $0x10] sm:$0xff]
    %v1999 = vld [vmem:[%s21 + $0x18] sm:$0xff]
    %v2000 = vld [vmem:[%s23] sm:$0x1]
    %v2002 = vlaneseq
    %v2003 = vshrl.u32 %v2002, 7
    %v2004 = vsub.s32 0, %v2003
    %v2005 = vrot.slane %v2000, %v2004
    %v2008 = vsel %vm145, %v1992, 0
    %v2011 = vsel %vm145, %v1993, 0
    %v2014 = vsel %vm145, %v1994, 0
    %v2017 = vsel %vm145, %v1995, 0
    %2019 = vmatprep.subr.mxu0 0.0
    %2020 = vmatpush1.msra.mxu0 0.0
    %2021 = vmatprep.subr.mxu0 0.0
    %2022 = vmatpush1.msra.mxu0 0.0
    %2023 = vmatprep.subr.mxu0 0.0
    %2024 = vmatpush1.msra.mxu0 0.0
    %2025 = vmatprep.subr.mxu0 0.0
    %2026 = vmatpush1.msra.mxu0 0.0
    %2027 = vmatprep.subr.mxu0 0.0
    %2028 = vmatpush1.msra.mxu0 0.0
    %2029 = vmatprep.subr.mxu0 0.0
    %2030 = vmatpush1.msra.mxu0 0.0
    %2031 = vmatprep.subr.mxu0 0.0
    %2032 = vmatpush1.msra.mxu0 0.0
    %2033 = vmatprep.subr.mxu0 0.0
    %2034 = vmatpush1.msra.mxu0 0.0
    %2035 = vmatprep.subr.mxu0 0.0
    %2036 = vmatpush1.msra.mxu0 0.0
    %2037 = vmatprep.subr.mxu0 0.0
    %2038 = vmatpush1.msra.mxu0 0.0
    %2039 = vmatprep.subr.mxu0 0.0
    %2040 = vmatpush1.msra.mxu0 0.0
    %2041 = vmatprep.subr.mxu0 0.0
    %2042 = vmatpush1.msra.mxu0 0.0
    %2043 = vmatprep.subr.mxu0 0.0
    %2044 = vmatpush1.msra.mxu0 %v1999
    %2045 = vmatprep.subr.mxu0 0.0
    %2046 = vmatpush1.msra.mxu0 %v1998
    %2047 = vmatprep.subr.mxu0 0.0
    %2048 = vmatpush1.msra.mxu0 %v1997
    %2049 = vmatprep.subr.mxu0 0.0
    %2050 = vmatpush1.msra.mxu0 %v1996
    %2051 = vmatprep.subr.mxu0 0.0
    %2052 = vmatpush2.msra.mxu0 0.0
    %2053 = vmatprep.subr.mxu0 0.0
    %2054 = vmatpush2.msra.mxu0 0.0
    %2055 = vmatprep.subr.mxu0 0.0
    %2056 = vmatpush2.msra.mxu0 0.0
    %2057 = vmatprep.subr.mxu0 0.0
    %2058 = vmatpush2.msra.mxu0 0.0
    %2059 = vmatprep.subr.mxu0 0.0
    %2060 = vmatpush2.msra.mxu0 0.0
    %2061 = vmatprep.subr.mxu0 0.0
    %2062 = vmatpush2.msra.mxu0 0.0
    %2063 = vmatprep.subr.mxu0 0.0
    %2064 = vmatpush2.msra.mxu0 0.0
    %2065 = vmatprep.subr.mxu0 0.0
    %2066 = vmatpush2.msra.mxu0 0.0
    %2067 = vmatprep.subr.mxu0 0.0
    %2068 = vmatpush2.msra.mxu0 0.0
    %2069 = vmatprep.subr.mxu0 0.0
    %2070 = vmatpush2.msra.mxu0 0.0
    %2071 = vmatprep.subr.mxu0 0.0
    %2072 = vmatpush2.msra.mxu0 0.0
    %2073 = vmatprep.subr.mxu0 0.0
    %2074 = vmatpush2.msra.mxu0 0.0
    %2075 = vmatprep.subr.mxu0 0.0
    %2076 = vmatpush2.msra.mxu0 0.0
    %2077 = vmatprep.subr.mxu0 0.0
    %2078 = vmatpush2.msra.mxu0 0.0
    %2079 = vmatprep.subr.mxu0 0.0
    %2080 = vmatpush2.msra.mxu0 0.0
    %2081 = vmatprep.subr.mxu0 0.0
    %2082 = vmatpush2.msra.mxu0 0.0
    %2083 = vmatprep.mubr.f32.mxu0 0.0
    %2084 = vmatmul.mubr.f32.gmra.mxu0 %v2008
    %v2085 = vpop.f32.mrf.mxu0
    %v2086 = vadd.f32 %v2005, %v2085
    %v2087 = vpop.f32.mrf.mxu0
    %2088 = vmatprep.mubr.f32.mxu0 0.0
    %2089 = vmatmul.mubr.f32.gmra.mxu0 %v2011
    %v2090 = vpop.f32.mrf.mxu0
    %v2091 = vadd.f32 %v2005, %v2090
    %v2092 = vpop.f32.mrf.mxu0
    %2093 = vmatprep.mubr.f32.mxu0 0.0
    %2094 = vmatmul.mubr.f32.gmra.mxu0 %v2014
    %v2095 = vpop.f32.mrf.mxu0
    %v2096 = vadd.f32 %v2005, %v2095
    %v2097 = vpop.f32.mrf.mxu0
    %2098 = vmatprep.mubr.f32.mxu0 0.0
    %2099 = vmatmul.mubr.f32.gmra.mxu0 %v2017
    %v2100 = vpop.f32.mrf.mxu0
    %v2101 = vadd.f32 %v2005, %v2100
    %v2102 = vpop.f32.mrf.mxu0
    %2103 = vdwg.mxu0
    %v2104 = vmul.f32 %v2086, %v2086
    %v2105 = vmul.f32 %v2091, %v2091
    %v2106 = vmul.f32 %v2096, %v2096
    %v2107 = vmul.f32 %v2101, %v2101
    %v2108 = vmul.f32 %v2086, %v2104
    %v2109 = vmul.f32 %v2091, %v2105
    %v2110 = vmul.f32 %v2096, %v2106
    %v2111 = vmul.f32 %v2101, %v2107
    %v2112 = vmul.f32 %v2108, 0.044715
    %v2113 = vmul.f32 %v2109, 0.044715
    %v2114 = vmul.f32 %v2110, 0.044715
    %v2115 = vmul.f32 %v2111, 0.044715
    %v2116 = vadd.f32 %v2086, %v2112
    %v2117 = vadd.f32 %v2091, %v2113
    %v2118 = vadd.f32 %v2096, %v2114
    %v2119 = vadd.f32 %v2101, %v2115
    %v2120 = vmul.f32 %v2116, 0.7978846
    %v2121 = vmul.f32 %v2117, 0.7978846
    %v2122 = vmul.f32 %v2118, 0.7978846
    %v2123 = vmul.f32 %v2119, 0.7978846
    %v2124 = vtanh.pop %v2120
    %v2125 = vtanh.pop %v2121
    %v2126 = vtanh.pop %v2122
    %v2127 = vtanh.pop %v2123
    %v2128 = vadd.f32 %v2124, 1.0
    %v2129 = vadd.f32 %v2125, 1.0
    %v2130 = vadd.f32 %v2126, 1.0
    %v2131 = vadd.f32 %v2127, 1.0
    %v2132 = vmul.f32 %v2128, 0.5
    %v2133 = vmul.f32 %v2129, 0.5
    %v2134 = vmul.f32 %v2130, 0.5
    %v2135 = vmul.f32 %v2131, 0.5
    %v2136 = vmul.f32 %v2086, %v2132
    %v2137 = vmul.f32 %v2091, %v2133
    %v2138 = vmul.f32 %v2096, %v2134
    %v2139 = vmul.f32 %v2101, %v2135
    %v2140 = vld [vmem:[%s25] sm:$0xff]
    %v2141 = vld [vmem:[%s25 + $0x8] sm:$0xff]
    %v2142 = vld [vmem:[%s25 + $0x10] sm:$0xff]
    %v2143 = vld [vmem:[%s25 + $0x18] sm:$0xff]
    %v2144 = vld [vmem:[%s25 + $0x20] sm:$0xff]
    %v2145 = vld [vmem:[%s25 + $0x28] sm:$0xff]
    %v2146 = vld [vmem:[%s25 + $0x30] sm:$0xff]
    %v2147 = vld [vmem:[%s25 + $0x38] sm:$0xff]
    %vm2148 = vcmask 523264
    %v2150 = vsel %vm2148, %v2136, 0
    %v2153 = vsel %vm2148, %v2137, 0
    %v2156 = vsel %vm2148, %v2138, 0
    %v2159 = vsel %vm2148, %v2139, 0
    %2161 = vmatprep.subr.mxu0 0.0
    %2162 = vmatpush1.msra.mxu0 0.0
    %2163 = vmatprep.subr.mxu0 0.0
    %2164 = vmatpush1.msra.mxu0 0.0
    %2165 = vmatprep.subr.mxu0 0.0
    %2166 = vmatpush1.msra.mxu0 0.0
    %2167 = vmatprep.subr.mxu0 0.0
    %2168 = vmatpush1.msra.mxu0 0.0
    %2169 = vmatprep.subr.mxu0 0.0
    %2170 = vmatpush1.msra.mxu0 0.0
    %2171 = vmatprep.subr.mxu0 0.0
    %2172 = vmatpush1.msra.mxu0 0.0
    %2173 = vmatprep.subr.mxu0 0.0
    %2174 = vmatpush1.msra.mxu0 0.0
    %2175 = vmatprep.subr.mxu0 0.0
    %2176 = vmatpush1.msra.mxu0 0.0
    %2177 = vmatprep.subr.mxu0 0.0
    %2178 = vmatpush1.msra.mxu0 %v2147
    %2179 = vmatprep.subr.mxu0 0.0
    %2180 = vmatpush1.msra.mxu0 %v2146
    %2181 = vmatprep.subr.mxu0 0.0
    %2182 = vmatpush1.msra.mxu0 %v2145
    %2183 = vmatprep.subr.mxu0 0.0
    %2184 = vmatpush1.msra.mxu0 %v2144
    %2185 = vmatprep.subr.mxu0 0.0
    %2186 = vmatpush1.msra.mxu0 %v2143
    %2187 = vmatprep.subr.mxu0 0.0
    %2188 = vmatpush1.msra.mxu0 %v2142
    %2189 = vmatprep.subr.mxu0 0.0
    %2190 = vmatpush1.msra.mxu0 %v2141
    %2191 = vmatprep.subr.mxu0 0.0
    %2192 = vmatpush1.msra.mxu0 %v2140
    %2193 = vmatprep.subr.mxu0 0.0
    %2194 = vmatpush2.msra.mxu0 0.0
    %2195 = vmatprep.subr.mxu0 0.0
    %2196 = vmatpush2.msra.mxu0 0.0
    %2197 = vmatprep.subr.mxu0 0.0
    %2198 = vmatpush2.msra.mxu0 0.0
    %2199 = vmatprep.subr.mxu0 0.0
    %2200 = vmatpush2.msra.mxu0 0.0
    %2201 = vmatprep.subr.mxu0 0.0
    %2202 = vmatpush2.msra.mxu0 0.0
    %2203 = vmatprep.subr.mxu0 0.0
    %2204 = vmatpush2.msra.mxu0 0.0
    %2205 = vmatprep.subr.mxu0 0.0
    %2206 = vmatpush2.msra.mxu0 0.0
    %2207 = vmatprep.subr.mxu0 0.0
    %2208 = vmatpush2.msra.mxu0 0.0
    %2209 = vmatprep.subr.mxu0 0.0
    %2210 = vmatpush2.msra.mxu0 0.0
    %2211 = vmatprep.subr.mxu0 0.0
    %2212 = vmatpush2.msra.mxu0 0.0
    %2213 = vmatprep.subr.mxu0 0.0
    %2214 = vmatpush2.msra.mxu0 0.0
    %2215 = vmatprep.subr.mxu0 0.0
    %2216 = vmatpush2.msra.mxu0 0.0
    %2217 = vmatprep.subr.mxu0 0.0
    %2218 = vmatpush2.msra.mxu0 0.0
    %2219 = vmatprep.subr.mxu0 0.0
    %2220 = vmatpush2.msra.mxu0 0.0
    %2221 = vmatprep.subr.mxu0 0.0
    %2222 = vmatpush2.msra.mxu0 0.0
    %2223 = vmatprep.subr.mxu0 0.0
    %2224 = vmatpush2.msra.mxu0 0.0
    %2225 = vmatprep.mubr.f32.mxu0 0.0
    %2226 = vmatmul.mubr.f32.gmra.mxu0 %v2150
    %v2227 = vpop.f32.mrf.mxu0
    %v2228 = vadd.f32 0.0, %v2227
    %v2229 = vpop.f32.mrf.mxu0
    %2230 = vmatprep.mubr.f32.mxu0 0.0
    %2231 = vmatmul.mubr.f32.gmra.mxu0 %v2153
    %v2232 = vpop.f32.mrf.mxu0
    %v2233 = vadd.f32 0.0, %v2232
    %v2234 = vpop.f32.mrf.mxu0
    %2235 = vmatprep.mubr.f32.mxu0 0.0
    %2236 = vmatmul.mubr.f32.gmra.mxu0 %v2156
    %v2237 = vpop.f32.mrf.mxu0
    %v2238 = vadd.f32 0.0, %v2237
    %v2239 = vpop.f32.mrf.mxu0
    %2240 = vmatprep.mubr.f32.mxu0 0.0
    %2241 = vmatmul.mubr.f32.gmra.mxu0 %v2159
    %v2242 = vpop.f32.mrf.mxu0
    %v2243 = vadd.f32 0.0, %v2242
    %v2244 = vpop.f32.mrf.mxu0
    %2245 = vdwg.mxu0
    %v2246 = vadd.f32 %v1992, %v2228
    %v2247 = vadd.f32 %v1993, %v2233
    %v2248 = vadd.f32 %v1994, %v2238
    %v2249 = vadd.f32 %v1995, %v2243
    %v2250 = vld [vmem:[%s27] sm:$0x1]
    %v2252 = vlaneseq
    %v2253 = vshrl.u32 %v2252, 7
    %v2254 = vsub.s32 0, %v2253
    %v2255 = vrot.slane %v2250, %v2254
    %v2257 = vadd.f32 %v2246, %v2255
    %v2258 = vadd.f32 %v2247, %v2255
    %v2259 = vadd.f32 %v2248, %v2255
    %v2260 = vadd.f32 %v2249, %v2255
    %v2261 = vld [vmem:[%s29] sm:$0x1]
    %v2262 = vld [vmem:[%s31] sm:$0x1]
    %v2263 = vsel %vm145, %v2257, 0.0
    %2264 = vadd.xlane.f32.xlu0 %v2263
    %v2265 = vpop.xlane.xlu0 %2264
    %v2266 = vsel %vm145, %v2258, 0.0
    %2267 = vadd.xlane.f32.xlu0 %v2266
    %v2268 = vpop.xlane.xlu0 %2267
    %v2269 = vsel %vm145, %v2259, 0.0
    %2270 = vadd.xlane.f32.xlu0 %v2269
    %v2271 = vpop.xlane.xlu0 %2270
    %v2272 = vsel %vm145, %v2260, 0.0
    %2273 = vadd.xlane.f32.xlu0 %v2272
    %v2274 = vpop.xlane.xlu0 %2273
    %v2275 = vmul.f32 %v2265, %v158
    %v2276 = vmul.f32 %v2268, %v158
    %v2277 = vmul.f32 %v2271, %v158
    %v2278 = vmul.f32 %v2274, %v158
    %v2279 = vsub.f32 %v2257, %v2275
    %v2280 = vsub.f32 %v2258, %v2276
    %v2281 = vsub.f32 %v2259, %v2277
    %v2282 = vsub.f32 %v2260, %v2278
    %v2283 = vmul.f32 %v2279, %v2279
    %v2284 = vmul.f32 %v2280, %v2280
    %v2285 = vmul.f32 %v2281, %v2281
    %v2286 = vmul.f32 %v2282, %v2282
    %v2287 = vsel %vm145, %v2283, 0.0
    %2288 = vadd.xlane.f32.xlu0 %v2287
    %v2289 = vpop.xlane.xlu0 %2288
    %v2290 = vsel %vm145, %v2284, 0.0
    %2291 = vadd.xlane.f32.xlu0 %v2290
    %v2292 = vpop.xlane.xlu0 %2291
    %v2293 = vsel %vm145, %v2285, 0.0
    %2294 = vadd.xlane.f32.xlu0 %v2293
    %v2295 = vpop.xlane.xlu0 %2294
    %v2296 = vsel %vm145, %v2286, 0.0
    %2297 = vadd.xlane.f32.xlu0 %v2296
    %v2298 = vpop.xlane.xlu0 %2297
    %v2299 = vmul.f32 %v2289, %v158
    %v2300 = vmul.f32 %v2292, %v158
    %v2301 = vmul.f32 %v2295, %v158
    %v2302 = vmul.f32 %v2298, %v158
    %v2303 = vadd.f32 %v2299, 1e-12
    %v2304 = vadd.f32 %v2300, 1e-12
    %v2305 = vadd.f32 %v2301, 1e-12
    %v2306 = vadd.f32 %v2302, 1e-12
    %v2307 = vrsqrt.pop %v2303
    %v2308 = vrsqrt.pop %v2304
    %v2309 = vrsqrt.pop %v2305
    %v2310 = vrsqrt.pop %v2306
    %v2311 = vmul.f32 %v2279, %v2307
    %v2312 = vmul.f32 %v2280, %v2308
    %v2313 = vmul.f32 %v2281, %v2309
    %v2314 = vmul.f32 %v2282, %v2310
    %v2316 = vlaneseq
    %v2317 = vshrl.u32 %v2316, 7
    %v2318 = vsub.s32 0, %v2317
    %v2319 = vrot.slane %v2261, %v2318
    %v2321 = vmul.f32 %v2311, %v2319
    %v2322 = vmul.f32 %v2312, %v2319
    %v2323 = vmul.f32 %v2313, %v2319
    %v2324 = vmul.f32 %v2314, %v2319
    %v2326 = vlaneseq
    %v2327 = vshrl.u32 %v2326, 7
    %v2328 = vsub.s32 0, %v2327
    %v2329 = vrot.slane %v2262, %v2328
    %v2331 = vadd.f32 %v2321, %v2329
    %v2332 = vadd.f32 %v2322, %v2329
    %v2333 = vadd.f32 %v2323, %v2329
    %v2334 = vadd.f32 %v2324, %v2329
    %v2335 = vlaneseq
    %v2336 = vshrl.u32 %v2335, 7
    %v2337 = vlaneseq
    %v2338 = vand.u32 %v2337, 127
    %v2339 = vmul.u32 %v2336, 8
    %vm2340 = vcmp.eq.s32.totalorder %v2338, %v2339
    %v2341 = vsel %vm2340, 1, 0
    %v2342 = vcvt.s32.f32 %v2341
    %v2344 = vsel %vm145, %v2342, 0
    %2346 = vmatprep.subr.mxu0 0.0
    %2347 = vmatpush1.msra.mxu0 0.0
    %2348 = vmatprep.subr.mxu0 0.0
    %2349 = vmatpush1.msra.mxu0 0.0
    %2350 = vmatprep.subr.mxu0 0.0
    %2351 = vmatpush1.msra.mxu0 0.0
    %2352 = vmatprep.subr.mxu0 0.0
    %2353 = vmatpush1.msra.mxu0 0.0
    %2354 = vmatprep.subr.mxu0 0.0
    %2355 = vmatpush1.msra.mxu0 0.0
    %2356 = vmatprep.subr.mxu0 0.0
    %2357 = vmatpush1.msra.mxu0 0.0
    %2358 = vmatprep.subr.mxu0 0.0
    %2359 = vmatpush1.msra.mxu0 0.0
    %2360 = vmatprep.subr.mxu0 0.0
    %2361 = vmatpush1.msra.mxu0 0.0
    %2362 = vmatprep.subr.mxu0 0.0
    %2363 = vmatpush1.msra.mxu0 0.0
    %2364 = vmatprep.subr.mxu0 0.0
    %2365 = vmatpush1.msra.mxu0 0.0
    %2366 = vmatprep.subr.mxu0 0.0
    %2367 = vmatpush1.msra.mxu0 0.0
    %2368 = vmatprep.subr.mxu0 0.0
    %2369 = vmatpush1.msra.mxu0 0.0
    %2370 = vmatprep.subr.mxu0 0.0
    %2371 = vmatpush1.msra.mxu0 %v2334
    %2372 = vmatprep.subr.mxu0 0.0
    %2373 = vmatpush1.msra.mxu0 %v2333
    %2374 = vmatprep.subr.mxu0 0.0
    %2375 = vmatpush1.msra.mxu0 %v2332
    %2376 = vmatprep.subr.mxu0 0.0
    %2377 = vmatpush1.msra.mxu0 %v2331
    %2378 = vmatprep.subr.mxu0 0.0
    %2379 = vmatpush2.msra.mxu0 0.0
    %2380 = vmatprep.subr.mxu0 0.0
    %2381 = vmatpush2.msra.mxu0 0.0
    %2382 = vmatprep.subr.mxu0 0.0
    %2383 = vmatpush2.msra.mxu0 0.0
    %2384 = vmatprep.subr.mxu0 0.0
    %2385 = vmatpush2.msra.mxu0 0.0
    %2386 = vmatprep.subr.mxu0 0.0
    %2387 = vmatpush2.msra.mxu0 0.0
    %2388 = vmatprep.subr.mxu0 0.0
    %2389 = vmatpush2.msra.mxu0 0.0
    %2390 = vmatprep.subr.mxu0 0.0
    %2391 = vmatpush2.msra.mxu0 0.0
    %2392 = vmatprep.subr.mxu0 0.0
    %2393 = vmatpush2.msra.mxu0 0.0
    %2394 = vmatprep.subr.mxu0 0.0
    %2395 = vmatpush2.msra.mxu0 0.0
    %2396 = vmatprep.subr.mxu0 0.0
    %2397 = vmatpush2.msra.mxu0 0.0
    %2398 = vmatprep.subr.mxu0 0.0
    %2399 = vmatpush2.msra.mxu0 0.0
    %2400 = vmatprep.subr.mxu0 0.0
    %2401 = vmatpush2.msra.mxu0 0.0
    %2402 = vmatprep.subr.mxu0 0.0
    %2403 = vmatpush2.msra.mxu0 0.0
    %2404 = vmatprep.subr.mxu0 0.0
    %2405 = vmatpush2.msra.mxu0 0.0
    %2406 = vmatprep.subr.mxu0 0.0
    %2407 = vmatpush2.msra.mxu0 0.0
    %2408 = vmatprep.subr.mxu0 0.0
    %2409 = vmatpush2.msra.mxu0 0.0
    %2410 = vmatprep.mubr.f32.mxu0 0.0
    %2411 = vmatmul.mubr.f32.gmra.mxu0 %v2344
    %v2412 = vpop.f32.mrf.mxu0
    %v2413 = vadd.f32 0.0, %v2412
    %v2414 = vpop.f32.mrf.mxu0
    %2415 = vdwg.mxu0
    %v2416 = vld [vmem:[%s33] sm:$0xff]
    %v2417 = vld [vmem:[%s33 + $0x8] sm:$0xff]
    %v2418 = vld [vmem:[%s33 + $0x10] sm:$0xff]
    %v2419 = vld [vmem:[%s33 + $0x18] sm:$0xff]
    %v2420 = vld [vmem:[%s35] sm:$0x1]
    %v2422 = vlaneseq
    %v2423 = vshrl.u32 %v2422, 7
    %v2424 = vsub.s32 0, %v2423
    %v2425 = vrot.slane %v2420, %v2424
    %v2428 = vsel %vm145, %v2413, 0
    %2430 = vmatprep.subr.mxu0 0.0
    %2431 = vmatpush1.msra.mxu0 0.0
    %2432 = vmatprep.subr.mxu0 0.0
    %2433 = vmatpush1.msra.mxu0 0.0
    %2434 = vmatprep.subr.mxu0 0.0
    %2435 = vmatpush1.msra.mxu0 0.0
    %2436 = vmatprep.subr.mxu0 0.0
    %2437 = vmatpush1.msra.mxu0 0.0
    %2438 = vmatprep.subr.mxu0 0.0
    %2439 = vmatpush1.msra.mxu0 0.0
    %2440 = vmatprep.subr.mxu0 0.0
    %2441 = vmatpush1.msra.mxu0 0.0
    %2442 = vmatprep.subr.mxu0 0.0
    %2443 = vmatpush1.msra.mxu0 0.0
    %2444 = vmatprep.subr.mxu0 0.0
    %2445 = vmatpush1.msra.mxu0 0.0
    %2446 = vmatprep.subr.mxu0 0.0
    %2447 = vmatpush1.msra.mxu0 0.0
    %2448 = vmatprep.subr.mxu0 0.0
    %2449 = vmatpush1.msra.mxu0 0.0
    %2450 = vmatprep.subr.mxu0 0.0
    %2451 = vmatpush1.msra.mxu0 0.0
    %2452 = vmatprep.subr.mxu0 0.0
    %2453 = vmatpush1.msra.mxu0 0.0
    %2454 = vmatprep.subr.mxu0 0.0
    %2455 = vmatpush1.msra.mxu0 %v2419
    %2456 = vmatprep.subr.mxu0 0.0
    %2457 = vmatpush1.msra.mxu0 %v2418
    %2458 = vmatprep.subr.mxu0 0.0
    %2459 = vmatpush1.msra.mxu0 %v2417
    %2460 = vmatprep.subr.mxu0 0.0
    %2461 = vmatpush1.msra.mxu0 %v2416
    %2462 = vmatprep.subr.mxu0 0.0
    %2463 = vmatpush2.msra.mxu0 0.0
    %2464 = vmatprep.subr.mxu0 0.0
    %2465 = vmatpush2.msra.mxu0 0.0
    %2466 = vmatprep.subr.mxu0 0.0
    %2467 = vmatpush2.msra.mxu0 0.0
    %2468 = vmatprep.subr.mxu0 0.0
    %2469 = vmatpush2.msra.mxu0 0.0
    %2470 = vmatprep.subr.mxu0 0.0
    %2471 = vmatpush2.msra.mxu0 0.0
    %2472 = vmatprep.subr.mxu0 0.0
    %2473 = vmatpush2.msra.mxu0 0.0
    %2474 = vmatprep.subr.mxu0 0.0
    %2475 = vmatpush2.msra.mxu0 0.0
    %2476 = vmatprep.subr.mxu0 0.0
    %2477 = vmatpush2.msra.mxu0 0.0
    %2478 = vmatprep.subr.mxu0 0.0
    %2479 = vmatpush2.msra.mxu0 0.0
    %2480 = vmatprep.subr.mxu0 0.0
    %2481 = vmatpush2.msra.mxu0 0.0
    %2482 = vmatprep.subr.mxu0 0.0
    %2483 = vmatpush2.msra.mxu0 0.0
    %2484 = vmatprep.subr.mxu0 0.0
    %2485 = vmatpush2.msra.mxu0 0.0
    %2486 = vmatprep.subr.mxu0 0.0
    %2487 = vmatpush2.msra.mxu0 0.0
    %2488 = vmatprep.subr.mxu0 0.0
    %2489 = vmatpush2.msra.mxu0 0.0
    %2490 = vmatprep.subr.mxu0 0.0
    %2491 = vmatpush2.msra.mxu0 0.0
    %2492 = vmatprep.subr.mxu0 0.0
    %2493 = vmatpush2.msra.mxu0 0.0
    %2494 = vmatprep.mubr.f32.mxu0 0.0
    %2495 = vmatmul.mubr.f32.gmra.mxu0 %v2428
    %v2496 = vpop.f32.mrf.mxu0
    %v2497 = vadd.f32 %v2425, %v2496
    %v2498 = vpop.f32.mrf.mxu0
    %2499 = vdwg.mxu0
    %v2500 = vtanh.pop %v2497
    %v2501 = vld [vmem:[%s37] sm:$0xff]
    %v2502 = vld [vmem:[%s37 + $0x8] sm:$0xff]
    %v2503 = vld [vmem:[%s37 + $0x10] sm:$0xff]
    %v2504 = vld [vmem:[%s37 + $0x18] sm:$0xff]
    %v2505 = vld [vmem:[%s39] sm:$0x1]
    %v2507 = vlaneseq
    %v2508 = vshrl.u32 %v2507, 7
    %v2509 = vsub.s32 0, %v2508
    %v2510 = vrot.slane %v2505, %v2509
    %v2513 = vsel %vm145, %v2500, 0
    %2515 = vmatprep.subr.mxu0 0.0
    %2516 = vmatpush1.msra.mxu0 0.0
    %2517 = vmatprep.subr.mxu0 0.0
    %2518 = vmatpush1.msra.mxu0 0.0
    %2519 = vmatprep.subr.mxu0 0.0
    %2520 = vmatpush1.msra.mxu0 0.0
    %2521 = vmatprep.subr.mxu0 0.0
    %2522 = vmatpush1.msra.mxu0 0.0
    %2523 = vmatprep.subr.mxu0 0.0
    %2524 = vmatpush1.msra.mxu0 0.0
    %2525 = vmatprep.subr.mxu0 0.0
    %2526 = vmatpush1.msra.mxu0 0.0
    %2527 = vmatprep.subr.mxu0 0.0
    %2528 = vmatpush1.msra.mxu0 0.0
    %2529 = vmatprep.subr.mxu0 0.0
    %2530 = vmatpush1.msra.mxu0 0.0
    %2531 = vmatprep.subr.mxu0 0.0
    %2532 = vmatpush1.msra.mxu0 0.0
    %2533 = vmatprep.subr.mxu0 0.0
    %2534 = vmatpush1.msra.mxu0 0.0
    %2535 = vmatprep.subr.mxu0 0.0
    %2536 = vmatpush1.msra.mxu0 0.0
    %2537 = vmatprep.subr.mxu0 0.0
    %2538 = vmatpush1.msra.mxu0 0.0
    %2539 = vmatprep.subr.mxu0 0.0
    %2540 = vmatpush1.msra.mxu0 %v2504
    %2541 = vmatprep.subr.mxu0 0.0
    %2542 = vmatpush1.msra.mxu0 %v2503
    %2543 = vmatprep.subr.mxu0 0.0
    %2544 = vmatpush1.msra.mxu0 %v2502
    %2545 = vmatprep.subr.mxu0 0.0
    %2546 = vmatpush1.msra.mxu0 %v2501
    %2547 = vmatprep.subr.mxu0 0.0
    %2548 = vmatpush2.msra.mxu0 0.0
    %2549 = vmatprep.subr.mxu0 0.0
    %2550 = vmatpush2.msra.mxu0 0.0
    %2551 = vmatprep.subr.mxu0 0.0
    %2552 = vmatpush2.msra.mxu0 0.0
    %2553 = vmatprep.subr.mxu0 0.0
    %2554 = vmatpush2.msra.mxu0 0.0
    %2555 = vmatprep.subr.mxu0 0.0
    %2556 = vmatpush2.msra.mxu0 0.0
    %2557 = vmatprep.subr.mxu0 0.0
    %2558 = vmatpush2.msra.mxu0 0.0
    %2559 = vmatprep.subr.mxu0 0.0
    %2560 = vmatpush2.msra.mxu0 0.0
    %2561 = vmatprep.subr.mxu0 0.0
    %2562 = vmatpush2.msra.mxu0 0.0
    %2563 = vmatprep.subr.mxu0 0.0
    %2564 = vmatpush2.msra.mxu0 0.0
    %2565 = vmatprep.subr.mxu0 0.0
    %2566 = vmatpush2.msra.mxu0 0.0
    %2567 = vmatprep.subr.mxu0 0.0
    %2568 = vmatpush2.msra.mxu0 0.0
    %2569 = vmatprep.subr.mxu0 0.0
    %2570 = vmatpush2.msra.mxu0 0.0
    %2571 = vmatprep.subr.mxu0 0.0
    %2572 = vmatpush2.msra.mxu0 0.0
    %2573 = vmatprep.subr.mxu0 0.0
    %2574 = vmatpush2.msra.mxu0 0.0
    %2575 = vmatprep.subr.mxu0 0.0
    %2576 = vmatpush2.msra.mxu0 0.0
    %2577 = vmatprep.subr.mxu0 0.0
    %2578 = vmatpush2.msra.mxu0 0.0
    %2579 = vmatprep.mubr.f32.mxu0 0.0
    %2580 = vmatmul.mubr.f32.gmra.mxu0 %v2513
    %v2581 = vpop.f32.mrf.mxu0
    %v2582 = vadd.f32 %v2510, %v2581
    %v2583 = vpop.f32.mrf.mxu0
    %2584 = vdwg.mxu0
    %vm2585 = vcmask 41984
    %2586 = vst.msk [vmem:[#allocation3] sm:$0x3] %vm2585, %v2582
    %v2587 = vld [vmem:[%s41] sm:$0xff]
    %v2588 = vld [vmem:[%s41 + $0x8] sm:$0xff]
    %v2589 = vld [vmem:[%s41 + $0x10] sm:$0xff]
    %v2590 = vld [vmem:[%s41 + $0x18] sm:$0xff]
    %v2591 = vld [vmem:[%s43] sm:$0x1]
    %v2593 = vlaneseq
    %v2594 = vshrl.u32 %v2593, 7
    %v2595 = vsub.s32 0, %v2594
    %v2596 = vrot.slane %v2591, %v2595
    %2598 = vmatprep.subr.mxu0 0.0
    %2599 = vmatpush1.msra.mxu0 0.0
    %2600 = vmatprep.subr.mxu0 0.0
    %2601 = vmatpush1.msra.mxu0 0.0
    %2602 = vmatprep.subr.mxu0 0.0
    %2603 = vmatpush1.msra.mxu0 0.0
    %2604 = vmatprep.subr.mxu0 0.0
    %2605 = vmatpush1.msra.mxu0 0.0
    %2606 = vmatprep.subr.mxu0 0.0
    %2607 = vmatpush1.msra.mxu0 0.0
    %2608 = vmatprep.subr.mxu0 0.0
    %2609 = vmatpush1.msra.mxu0 0.0
    %2610 = vmatprep.subr.mxu0 0.0
    %2611 = vmatpush1.msra.mxu0 0.0
    %2612 = vmatprep.subr.mxu0 0.0
    %2613 = vmatpush1.msra.mxu0 0.0
    %2614 = vmatprep.subr.mxu0 0.0
    %2615 = vmatpush1.msra.mxu0 0.0
    %2616 = vmatprep.subr.mxu0 0.0
    %2617 = vmatpush1.msra.mxu0 0.0
    %2618 = vmatprep.subr.mxu0 0.0
    %2619 = vmatpush1.msra.mxu0 0.0
    %2620 = vmatprep.subr.mxu0 0.0
    %2621 = vmatpush1.msra.mxu0 0.0
    %2622 = vmatprep.subr.mxu0 0.0
    %2623 = vmatpush1.msra.mxu0 %v2590
    %2624 = vmatprep.subr.mxu0 0.0
    %2625 = vmatpush1.msra.mxu0 %v2589
    %2626 = vmatprep.subr.mxu0 0.0
    %2627 = vmatpush1.msra.mxu0 %v2588
    %2628 = vmatprep.subr.mxu0 0.0
    %2629 = vmatpush1.msra.mxu0 %v2587
    %2630 = vmatprep.subr.mxu0 0.0
    %2631 = vmatpush2.msra.mxu0 0.0
    %2632 = vmatprep.subr.mxu0 0.0
    %2633 = vmatpush2.msra.mxu0 0.0
    %2634 = vmatprep.subr.mxu0 0.0
    %2635 = vmatpush2.msra.mxu0 0.0
    %2636 = vmatprep.subr.mxu0 0.0
    %2637 = vmatpush2.msra.mxu0 0.0
    %2638 = vmatprep.subr.mxu0 0.0
    %2639 = vmatpush2.msra.mxu0 0.0
    %2640 = vmatprep.subr.mxu0 0.0
    %2641 = vmatpush2.msra.mxu0 0.0
    %2642 = vmatprep.subr.mxu0 0.0
    %2643 = vmatpush2.msra.mxu0 0.0
    %2644 = vmatprep.subr.mxu0 0.0
    %2645 = vmatpush2.msra.mxu0 0.0
    %2646 = vmatprep.subr.mxu0 0.0
    %2647 = vmatpush2.msra.mxu0 0.0
    %2648 = vmatprep.subr.mxu0 0.0
    %2649 = vmatpush2.msra.mxu0 0.0
    %2650 = vmatprep.subr.mxu0 0.0
    %2651 = vmatpush2.msra.mxu0 0.0
    %2652 = vmatprep.subr.mxu0 0.0
    %2653 = vmatpush2.msra.mxu0 0.0
    %2654 = vmatprep.subr.mxu0 0.0
    %2655 = vmatpush2.msra.mxu0 0.0
    %2656 = vmatprep.subr.mxu0 0.0
    %2657 = vmatpush2.msra.mxu0 0.0
    %2658 = vmatprep.subr.mxu0 0.0
    %2659 = vmatpush2.msra.mxu0 0.0
    %2660 = vmatprep.subr.mxu0 0.0
    %2661 = vmatpush2.msra.mxu0 0.0
    %2662 = vmatprep.mubr.f32.mxu0 0.0
    %2663 = vmatmul.mubr.f32.gmra.mxu0 %v2513
    %v2664 = vpop.f32.mrf.mxu0
    %v2665 = vadd.f32 %v2596, %v2664
    %v2666 = vpop.f32.mrf.mxu0
    %2667 = vdwg.mxu0
    %v2668 = vmul.f32 %v2665, %v2665
    %vm2669 = vcmask 125952
    %v2670 = vsel %vm2669, %v2668, 0.0
    %2671 = vadd.xlane.f32.xlu0 %v2670
    %v2672 = vpop.xlane.xlu0 %2671
    %v2673 = vrsqrt.pop %v2672
    %v2674 = vmul.f32 %v2672, %v2673
    %vm2675 = vcmp.eq.f32.partialorder %v2672, inf
    %v2676 = vsel %vm2675, %v2672, %v2674
    %vm2677 = vcmp.eq.f32.partialorder %v2672, 0.0
    %v2678 = vand.u32 %v2672, 2147483648
    %v2679 = vsel %vm2677, %v2678, %v2676
    %v2680 = vmax.f32 %v2679, 1e-12
    %v2681 = vrcp.pop %v2680
    %v2682 = vmul.f32 %v2665, %v2681
    %2683 = vst.msk [vmem:[%s67] sm:$0xf] %vm2669, %v2682
    %v2684 = vld [vmem:[%s45] sm:$0xff]
    %v2685 = vld [vmem:[%s45 + $0x8] sm:$0xff]
    %v2686 = vld [vmem:[%s45 + $0x10] sm:$0xff]
    %v2687 = vld [vmem:[%s45 + $0x18] sm:$0xff]
    %v2688 = vld [vmem:[%s47] sm:$0x1]
    %v2690 = vlaneseq
    %v2691 = vshrl.u32 %v2690, 7
    %v2692 = vsub.s32 0, %v2691
    %v2693 = vrot.slane %v2688, %v2692
    %v2696 = vsel %vm145, %v2331, 0
    %v2699 = vsel %vm145, %v2332, 0
    %2701 = vmatprep.subr.mxu0 0.0
    %2702 = vmatpush1.msra.mxu0 0.0
    %2703 = vmatprep.subr.mxu0 0.0
    %2704 = vmatpush1.msra.mxu0 0.0
    %2705 = vmatprep.subr.mxu0 0.0
    %2706 = vmatpush1.msra.mxu0 0.0
    %2707 = vmatprep.subr.mxu0 0.0
    %2708 = vmatpush1.msra.mxu0 0.0
    %2709 = vmatprep.subr.mxu0 0.0
    %2710 = vmatpush1.msra.mxu0 0.0
    %2711 = vmatprep.subr.mxu0 0.0
    %2712 = vmatpush1.msra.mxu0 0.0
    %2713 = vmatprep.subr.mxu0 0.0
    %2714 = vmatpush1.msra.mxu0 0.0
    %2715 = vmatprep.subr.mxu0 0.0
    %2716 = vmatpush1.msra.mxu0 0.0
    %2717 = vmatprep.subr.mxu0 0.0
    %2718 = vmatpush1.msra.mxu0 0.0
    %2719 = vmatprep.subr.mxu0 0.0
    %2720 = vmatpush1.msra.mxu0 0.0
    %2721 = vmatprep.subr.mxu0 0.0
    %2722 = vmatpush1.msra.mxu0 0.0
    %2723 = vmatprep.subr.mxu0 0.0
    %2724 = vmatpush1.msra.mxu0 0.0
    %2725 = vmatprep.subr.mxu0 0.0
    %2726 = vmatpush1.msra.mxu0 %v2687
    %2727 = vmatprep.subr.mxu0 0.0
    %2728 = vmatpush1.msra.mxu0 %v2686
    %2729 = vmatprep.subr.mxu0 0.0
    %2730 = vmatpush1.msra.mxu0 %v2685
    %2731 = vmatprep.subr.mxu0 0.0
    %2732 = vmatpush1.msra.mxu0 %v2684
    %2733 = vmatprep.subr.mxu0 0.0
    %2734 = vmatpush2.msra.mxu0 0.0
    %2735 = vmatprep.subr.mxu0 0.0
    %2736 = vmatpush2.msra.mxu0 0.0
    %2737 = vmatprep.subr.mxu0 0.0
    %2738 = vmatpush2.msra.mxu0 0.0
    %2739 = vmatprep.subr.mxu0 0.0
    %2740 = vmatpush2.msra.mxu0 0.0
    %2741 = vmatprep.subr.mxu0 0.0
    %2742 = vmatpush2.msra.mxu0 0.0
    %2743 = vmatprep.subr.mxu0 0.0
    %2744 = vmatpush2.msra.mxu0 0.0
    %2745 = vmatprep.subr.mxu0 0.0
    %2746 = vmatpush2.msra.mxu0 0.0
    %2747 = vmatprep.subr.mxu0 0.0
    %2748 = vmatpush2.msra.mxu0 0.0
    %2749 = vmatprep.subr.mxu0 0.0
    %2750 = vmatpush2.msra.mxu0 0.0
    %2751 = vmatprep.subr.mxu0 0.0
    %2752 = vmatpush2.msra.mxu0 0.0
    %2753 = vmatprep.subr.mxu0 0.0
    %2754 = vmatpush2.msra.mxu0 0.0
    %2755 = vmatprep.subr.mxu0 0.0
    %2756 = vmatpush2.msra.mxu0 0.0
    %2757 = vmatprep.subr.mxu0 0.0
    %2758 = vmatpush2.msra.mxu0 0.0
    %2759 = vmatprep.subr.mxu0 0.0
    %2760 = vmatpush2.msra.mxu0 0.0
    %2761 = vmatprep.subr.mxu0 0.0
    %2762 = vmatpush2.msra.mxu0 0.0
    %2763 = vmatprep.subr.mxu0 0.0
    %2764 = vmatpush2.msra.mxu0 0.0
    %2765 = vmatprep.mubr.f32.mxu0 0.0
    %2766 = vmatmul.mubr.f32.gmra.mxu0 %v2696
    %v2767 = vpop.f32.mrf.mxu0
    %v2768 = vadd.f32 %v2693, %v2767
    %v2769 = vpop.f32.mrf.mxu0
    %2770 = vmatprep.mubr.f32.mxu0 0.0
    %2771 = vmatmul.mubr.f32.gmra.mxu0 %v2699
    %v2772 = vpop.f32.mrf.mxu0
    %v2773 = vadd.f32 %v2693, %v2772
    %v2774 = vpop.f32.mrf.mxu0
    %2775 = vdwg.mxu0
    %v2776 = vld [vmem:[%s49] sm:$0xff]
    %v2777 = vld [vmem:[%s49 + $0x8] sm:$0xff]
    %v2778 = vld [vmem:[%s51] sm:$0x1]
    %v2779 = vld [vmem:[%s53] sm:$0xff]
    %v2780 = vld [vmem:[%s53 + $0x8] sm:$0xff]
    %v2781 = vld [vmem:[%s55] sm:$0x1]
    %v2783 = vlaneseq
    %v2784 = vshrl.u32 %v2783, 7
    %v2785 = vsub.s32 0, %v2784
    %v2786 = vrot.slane %v2778, %v2785
    %v2789 = vsel %vm362, 0.0, 0
    %2791 = vmatprep.subr.mxu0 0.0
    %2792 = vmatpush1.msra.mxu0 0.0
    %2793 = vmatprep.subr.mxu0 0.0
    %2794 = vmatpush1.msra.mxu0 0.0
    %2795 = vmatprep.subr.mxu0 0.0
    %2796 = vmatpush1.msra.mxu0 0.0
    %2797 = vmatprep.subr.mxu0 0.0
    %2798 = vmatpush1.msra.mxu0 0.0
    %2799 = vmatprep.subr.mxu0 0.0
    %2800 = vmatpush1.msra.mxu0 0.0
    %2801 = vmatprep.subr.mxu0 0.0
    %2802 = vmatpush1.msra.mxu0 0.0
    %2803 = vmatprep.subr.mxu0 0.0
    %2804 = vmatpush1.msra.mxu0 0.0
    %2805 = vmatprep.subr.mxu0 0.0
    %2806 = vmatpush1.msra.mxu0 0.0
    %2807 = vmatprep.subr.mxu0 0.0
    %2808 = vmatpush1.msra.mxu0 0.0
    %2809 = vmatprep.subr.mxu0 0.0
    %2810 = vmatpush1.msra.mxu0 0.0
    %2811 = vmatprep.subr.mxu0 0.0
    %2812 = vmatpush1.msra.mxu0 0.0
    %2813 = vmatprep.subr.mxu0 0.0
    %2814 = vmatpush1.msra.mxu0 0.0
    %2815 = vmatprep.subr.mxu0 0.0
    %2816 = vmatpush1.msra.mxu0 0.0
    %2817 = vmatprep.subr.mxu0 0.0
    %2818 = vmatpush1.msra.mxu0 0.0
    %2819 = vmatprep.subr.mxu0 0.0
    %2820 = vmatpush1.msra.mxu0 %v2777
    %2821 = vmatprep.subr.mxu0 0.0
    %2822 = vmatpush1.msra.mxu0 %v2776
    %2823 = vmatprep.subr.mxu0 0.0
    %2824 = vmatpush2.msra.mxu0 0.0
    %2825 = vmatprep.subr.mxu0 0.0
    %2826 = vmatpush2.msra.mxu0 0.0
    %2827 = vmatprep.subr.mxu0 0.0
    %2828 = vmatpush2.msra.mxu0 0.0
    %2829 = vmatprep.subr.mxu0 0.0
    %2830 = vmatpush2.msra.mxu0 0.0
    %2831 = vmatprep.subr.mxu0 0.0
    %2832 = vmatpush2.msra.mxu0 0.0
    %2833 = vmatprep.subr.mxu0 0.0
    %2834 = vmatpush2.msra.mxu0 0.0
    %2835 = vmatprep.subr.mxu0 0.0
    %2836 = vmatpush2.msra.mxu0 0.0
    %2837 = vmatprep.subr.mxu0 0.0
    %2838 = vmatpush2.msra.mxu0 0.0
    %2839 = vmatprep.subr.mxu0 0.0
    %2840 = vmatpush2.msra.mxu0 0.0
    %2841 = vmatprep.subr.mxu0 0.0
    %2842 = vmatpush2.msra.mxu0 0.0
    %2843 = vmatprep.subr.mxu0 0.0
    %2844 = vmatpush2.msra.mxu0 0.0
    %2845 = vmatprep.subr.mxu0 0.0
    %2846 = vmatpush2.msra.mxu0 0.0
    %2847 = vmatprep.subr.mxu0 0.0
    %2848 = vmatpush2.msra.mxu0 0.0
    %2849 = vmatprep.subr.mxu0 0.0
    %2850 = vmatpush2.msra.mxu0 0.0
    %2851 = vmatprep.subr.mxu0 0.0
    %2852 = vmatpush2.msra.mxu0 0.0
    %2853 = vmatprep.subr.mxu0 0.0
    %2854 = vmatpush2.msra.mxu0 0.0
    %2855 = vmatprep.mubr.f32.mxu0 0.0
    %2856 = vmatmul.mubr.f32.gmra.mxu0 %v2789
    %v2857 = vpop.f32.mrf.mxu0
    %v2858 = vadd.f32 %v2786, %v2857
    %v2859 = vpop.f32.mrf.mxu0
    %2860 = vdwg.mxu0
    %v2861 = vadd.f32 %v2768, %v2858
    %v2862 = vxor.u32 %v2861, 2147483648
    %v2863 = vmul.f32 %v2862, 1.442695
    %v2864 = vpow.pop %v2863
    %v2865 = vadd.f32 %v2864, 1.0
    %v2866 = vrcp.pop %v2865
    %v2867 = vmul.f32 1.0, %v2866
    %2869 = vrot.lane.b32.xlu0 %v2858, 96
    %v2870 = vpop.permute.xlu0 %2869
    %v2872 = vmul.f32 %v2867, %v2870
    %2874 = vrot.lane.b32.xlu0 %v2872, 32
    %v2875 = vpop.permute.xlu0 %2874
    %v2877 = vadd.f32 %v2768, %v2875
    %v2878 = vtanh.pop %v2877
    %v2879 = vsub.f32 1.0, %v2867
    %2881 = vrot.lane.b32.xlu0 %v2878, 112
    %v2882 = vpop.permute.xlu0 %2881
    %v2884 = vmul.f32 %v2879, %v2882
    %v2885 = vmul.f32 %v2867, 0.0
    %v2886 = vadd.f32 %v2884, %v2885
    %2888 = vrot.lane.b32.xlu0 %v2886, 112
    %v2889 = vpop.permute.xlu0 %2888
    %v2890 = vsel %vm362, %v2889, 0
    %2892 = vmatprep.subr.mxu0 0.0
    %2893 = vmatpush1.msra.mxu0 0.0
    %2894 = vmatprep.subr.mxu0 0.0
    %2895 = vmatpush1.msra.mxu0 0.0
    %2896 = vmatprep.subr.mxu0 0.0
    %2897 = vmatpush1.msra.mxu0 0.0
    %2898 = vmatprep.subr.mxu0 0.0
    %2899 = vmatpush1.msra.mxu0 0.0
    %2900 = vmatprep.subr.mxu0 0.0
    %2901 = vmatpush1.msra.mxu0 0.0
    %2902 = vmatprep.subr.mxu0 0.0
    %2903 = vmatpush1.msra.mxu0 0.0
    %2904 = vmatprep.subr.mxu0 0.0
    %2905 = vmatpush1.msra.mxu0 0.0
    %2906 = vmatprep.subr.mxu0 0.0
    %2907 = vmatpush1.msra.mxu0 0.0
    %2908 = vmatprep.subr.mxu0 0.0
    %2909 = vmatpush1.msra.mxu0 0.0
    %2910 = vmatprep.subr.mxu0 0.0
    %2911 = vmatpush1.msra.mxu0 0.0
    %2912 = vmatprep.subr.mxu0 0.0
    %2913 = vmatpush1.msra.mxu0 0.0
    %2914 = vmatprep.subr.mxu0 0.0
    %2915 = vmatpush1.msra.mxu0 0.0
    %2916 = vmatprep.subr.mxu0 0.0
    %2917 = vmatpush1.msra.mxu0 0.0
    %2918 = vmatprep.subr.mxu0 0.0
    %2919 = vmatpush1.msra.mxu0 0.0
    %2920 = vmatprep.subr.mxu0 0.0
    %2921 = vmatpush1.msra.mxu0 %v2777
    %2922 = vmatprep.subr.mxu0 0.0
    %2923 = vmatpush1.msra.mxu0 %v2776
    %2924 = vmatprep.subr.mxu0 0.0
    %2925 = vmatpush2.msra.mxu0 0.0
    %2926 = vmatprep.subr.mxu0 0.0
    %2927 = vmatpush2.msra.mxu0 0.0
    %2928 = vmatprep.subr.mxu0 0.0
    %2929 = vmatpush2.msra.mxu0 0.0
    %2930 = vmatprep.subr.mxu0 0.0
    %2931 = vmatpush2.msra.mxu0 0.0
    %2932 = vmatprep.subr.mxu0 0.0
    %2933 = vmatpush2.msra.mxu0 0.0
    %2934 = vmatprep.subr.mxu0 0.0
    %2935 = vmatpush2.msra.mxu0 0.0
    %2936 = vmatprep.subr.mxu0 0.0
    %2937 = vmatpush2.msra.mxu0 0.0
    %2938 = vmatprep.subr.mxu0 0.0
    %2939 = vmatpush2.msra.mxu0 0.0
    %2940 = vmatprep.subr.mxu0 0.0
    %2941 = vmatpush2.msra.mxu0 0.0
    %2942 = vmatprep.subr.mxu0 0.0
    %2943 = vmatpush2.msra.mxu0 0.0
    %2944 = vmatprep.subr.mxu0 0.0
    %2945 = vmatpush2.msra.mxu0 0.0
    %2946 = vmatprep.subr.mxu0 0.0
    %2947 = vmatpush2.msra.mxu0 0.0
    %2948 = vmatprep.subr.mxu0 0.0
    %2949 = vmatpush2.msra.mxu0 0.0
    %2950 = vmatprep.subr.mxu0 0.0
    %2951 = vmatpush2.msra.mxu0 0.0
    %2952 = vmatprep.subr.mxu0 0.0
    %2953 = vmatpush2.msra.mxu0 0.0
    %2954 = vmatprep.subr.mxu0 0.0
    %2955 = vmatpush2.msra.mxu0 0.0
    %2956 = vmatprep.mubr.f32.mxu0 0.0
    %2957 = vmatmul.mubr.f32.gmra.mxu0 %v2890
    %v2958 = vpop.f32.mrf.mxu0
    %v2959 = vadd.f32 %v2786, %v2958
    %v2960 = vpop.f32.mrf.mxu0
    %2961 = vdwg.mxu0
    %v2962 = vadd.f32 %v2773, %v2959
    %v2963 = vxor.u32 %v2962, 2147483648
    %v2964 = vmul.f32 %v2963, 1.442695
    %v2965 = vpow.pop %v2964
    %v2966 = vadd.f32 %v2965, 1.0
    %v2967 = vrcp.pop %v2966
    %v2968 = vmul.f32 1.0, %v2967
    %2970 = vrot.lane.b32.xlu0 %v2959, 96
    %v2971 = vpop.permute.xlu0 %2970
    %v2973 = vmul.f32 %v2968, %v2971
    %2975 = vrot.lane.b32.xlu0 %v2973, 32
    %v2976 = vpop.permute.xlu0 %2975
    %v2978 = vadd.f32 %v2773, %v2976
    %v2979 = vtanh.pop %v2978
    %v2980 = vsub.f32 1.0, %v2968
    %2982 = vrot.lane.b32.xlu0 %v2979, 112
    %v2983 = vpop.permute.xlu0 %2982
    %v2985 = vmul.f32 %v2980, %v2983
    %v2986 = vmul.f32 %v2968, %v2886
    %v2987 = vadd.f32 %v2985, %v2986
    %v2989 = vlaneseq
    %v2990 = vshrl.u32 %v2989, 7
    %v2991 = vsub.s32 0, %v2990
    %v2992 = vrot.slane %v2781, %v2991
    %2994 = vmatprep.subr.mxu0 0.0
    %2995 = vmatpush1.msra.mxu0 0.0
    %2996 = vmatprep.subr.mxu0 0.0
    %2997 = vmatpush1.msra.mxu0 0.0
    %2998 = vmatprep.subr.mxu0 0.0
    %2999 = vmatpush1.msra.mxu0 0.0
    %3000 = vmatprep.subr.mxu0 0.0
    %3001 = vmatpush1.msra.mxu0 0.0
    %3002 = vmatprep.subr.mxu0 0.0
    %3003 = vmatpush1.msra.mxu0 0.0
    %3004 = vmatprep.subr.mxu0 0.0
    %3005 = vmatpush1.msra.mxu0 0.0
    %3006 = vmatprep.subr.mxu0 0.0
    %3007 = vmatpush1.msra.mxu0 0.0
    %3008 = vmatprep.subr.mxu0 0.0
    %3009 = vmatpush1.msra.mxu0 0.0
    %3010 = vmatprep.subr.mxu0 0.0
    %3011 = vmatpush1.msra.mxu0 0.0
    %3012 = vmatprep.subr.mxu0 0.0
    %3013 = vmatpush1.msra.mxu0 0.0
    %3014 = vmatprep.subr.mxu0 0.0
    %3015 = vmatpush1.msra.mxu0 0.0
    %3016 = vmatprep.subr.mxu0 0.0
    %3017 = vmatpush1.msra.mxu0 0.0
    %3018 = vmatprep.subr.mxu0 0.0
    %3019 = vmatpush1.msra.mxu0 0.0
    %3020 = vmatprep.subr.mxu0 0.0
    %3021 = vmatpush1.msra.mxu0 0.0
    %3022 = vmatprep.subr.mxu0 0.0
    %3023 = vmatpush1.msra.mxu0 %v2780
    %3024 = vmatprep.subr.mxu0 0.0
    %3025 = vmatpush1.msra.mxu0 %v2779
    %3026 = vmatprep.subr.mxu0 0.0
    %3027 = vmatpush2.msra.mxu0 0.0
    %3028 = vmatprep.subr.mxu0 0.0
    %3029 = vmatpush2.msra.mxu0 0.0
    %3030 = vmatprep.subr.mxu0 0.0
    %3031 = vmatpush2.msra.mxu0 0.0
    %3032 = vmatprep.subr.mxu0 0.0
    %3033 = vmatpush2.msra.mxu0 0.0
    %3034 = vmatprep.subr.mxu0 0.0
    %3035 = vmatpush2.msra.mxu0 0.0
    %3036 = vmatprep.subr.mxu0 0.0
    %3037 = vmatpush2.msra.mxu0 0.0
    %3038 = vmatprep.subr.mxu0 0.0
    %3039 = vmatpush2.msra.mxu0 0.0
    %3040 = vmatprep.subr.mxu0 0.0
    %3041 = vmatpush2.msra.mxu0 0.0
    %3042 = vmatprep.subr.mxu0 0.0
    %3043 = vmatpush2.msra.mxu0 0.0
    %3044 = vmatprep.subr.mxu0 0.0
    %3045 = vmatpush2.msra.mxu0 0.0
    %3046 = vmatprep.subr.mxu0 0.0
    %3047 = vmatpush2.msra.mxu0 0.0
    %3048 = vmatprep.subr.mxu0 0.0
    %3049 = vmatpush2.msra.mxu0 0.0
    %3050 = vmatprep.subr.mxu0 0.0
    %3051 = vmatpush2.msra.mxu0 0.0
    %3052 = vmatprep.subr.mxu0 0.0
    %3053 = vmatpush2.msra.mxu0 0.0
    %3054 = vmatprep.subr.mxu0 0.0
    %3055 = vmatpush2.msra.mxu0 0.0
    %3056 = vmatprep.subr.mxu0 0.0
    %3057 = vmatpush2.msra.mxu0 0.0
    %3058 = vmatprep.mubr.f32.mxu0 0.0
    %3059 = vmatmul.mubr.f32.gmra.mxu0 %v2789
    %v3060 = vpop.f32.mrf.mxu0
    %v3061 = vadd.f32 %v2992, %v3060
    %v3062 = vpop.f32.mrf.mxu0
    %3063 = vdwg.mxu0
    %3065 = vrot.lane.b32.xlu0 %v3061, 48
    %v3066 = vpop.permute.xlu0 %3065
    %v3068 = vadd.f32 %v2773, %v3066
    %v3069 = vxor.u32 %v3068, 2147483648
    %v3070 = vmul.f32 %v3069, 1.442695
    %v3071 = vpow.pop %v3070
    %v3072 = vadd.f32 %v3071, 1.0
    %v3073 = vrcp.pop %v3072
    %v3074 = vmul.f32 1.0, %v3073
    %3075 = vrot.lane.b32.xlu0 %v3061, 16
    %v3076 = vpop.permute.xlu0 %3075
    %v3078 = vmul.f32 %v3074, %v3076
    %3080 = vrot.lane.b32.xlu0 %v3078, 32
    %v3081 = vpop.permute.xlu0 %3080
    %v3083 = vadd.f32 %v2773, %v3081
    %v3084 = vtanh.pop %v3083
    %v3085 = vsub.f32 1.0, %v3074
    %3087 = vrot.lane.b32.xlu0 %v3084, 112
    %v3088 = vpop.permute.xlu0 %3087
    %v3090 = vmul.f32 %v3085, %v3088
    %v3091 = vmul.f32 %v3074, 0.0
    %v3092 = vadd.f32 %v3090, %v3091
    %3094 = vrot.lane.b32.xlu0 %v3092, 64
    %v3095 = vpop.permute.xlu0 %3094
    %v3096 = vsel %vm362, %v3095, 0
    %3098 = vmatprep.subr.mxu0 0.0
    %3099 = vmatpush1.msra.mxu0 0.0
    %3100 = vmatprep.subr.mxu0 0.0
    %3101 = vmatpush1.msra.mxu0 0.0
    %3102 = vmatprep.subr.mxu0 0.0
    %3103 = vmatpush1.msra.mxu0 0.0
    %3104 = vmatprep.subr.mxu0 0.0
    %3105 = vmatpush1.msra.mxu0 0.0
    %3106 = vmatprep.subr.mxu0 0.0
    %3107 = vmatpush1.msra.mxu0 0.0
    %3108 = vmatprep.subr.mxu0 0.0
    %3109 = vmatpush1.msra.mxu0 0.0
    %3110 = vmatprep.subr.mxu0 0.0
    %3111 = vmatpush1.msra.mxu0 0.0
    %3112 = vmatprep.subr.mxu0 0.0
    %3113 = vmatpush1.msra.mxu0 0.0
    %3114 = vmatprep.subr.mxu0 0.0
    %3115 = vmatpush1.msra.mxu0 0.0
    %3116 = vmatprep.subr.mxu0 0.0
    %3117 = vmatpush1.msra.mxu0 0.0
    %3118 = vmatprep.subr.mxu0 0.0
    %3119 = vmatpush1.msra.mxu0 0.0
    %3120 = vmatprep.subr.mxu0 0.0
    %3121 = vmatpush1.msra.mxu0 0.0
    %3122 = vmatprep.subr.mxu0 0.0
    %3123 = vmatpush1.msra.mxu0 0.0
    %3124 = vmatprep.subr.mxu0 0.0
    %3125 = vmatpush1.msra.mxu0 0.0
    %3126 = vmatprep.subr.mxu0 0.0
    %3127 = vmatpush1.msra.mxu0 %v2780
    %3128 = vmatprep.subr.mxu0 0.0
    %3129 = vmatpush1.msra.mxu0 %v2779
    %3130 = vmatprep.subr.mxu0 0.0
    %3131 = vmatpush2.msra.mxu0 0.0
    %3132 = vmatprep.subr.mxu0 0.0
    %3133 = vmatpush2.msra.mxu0 0.0
    %3134 = vmatprep.subr.mxu0 0.0
    %3135 = vmatpush2.msra.mxu0 0.0
    %3136 = vmatprep.subr.mxu0 0.0
    %3137 = vmatpush2.msra.mxu0 0.0
    %3138 = vmatprep.subr.mxu0 0.0
    %3139 = vmatpush2.msra.mxu0 0.0
    %3140 = vmatprep.subr.mxu0 0.0
    %3141 = vmatpush2.msra.mxu0 0.0
    %3142 = vmatprep.subr.mxu0 0.0
    %3143 = vmatpush2.msra.mxu0 0.0
    %3144 = vmatprep.subr.mxu0 0.0
    %3145 = vmatpush2.msra.mxu0 0.0
    %3146 = vmatprep.subr.mxu0 0.0
    %3147 = vmatpush2.msra.mxu0 0.0
    %3148 = vmatprep.subr.mxu0 0.0
    %3149 = vmatpush2.msra.mxu0 0.0
    %3150 = vmatprep.subr.mxu0 0.0
    %3151 = vmatpush2.msra.mxu0 0.0
    %3152 = vmatprep.subr.mxu0 0.0
    %3153 = vmatpush2.msra.mxu0 0.0
    %3154 = vmatprep.subr.mxu0 0.0
    %3155 = vmatpush2.msra.mxu0 0.0
    %3156 = vmatprep.subr.mxu0 0.0
    %3157 = vmatpush2.msra.mxu0 0.0
    %3158 = vmatprep.subr.mxu0 0.0
    %3159 = vmatpush2.msra.mxu0 0.0
    %3160 = vmatprep.subr.mxu0 0.0
    %3161 = vmatpush2.msra.mxu0 0.0
    %3162 = vmatprep.mubr.f32.mxu0 0.0
    %3163 = vmatmul.mubr.f32.gmra.mxu0 %v3096
    %v3164 = vpop.f32.mrf.mxu0
    %v3165 = vadd.f32 %v2992, %v3164
    %v3166 = vpop.f32.mrf.mxu0
    %3167 = vdwg.mxu0
    %3169 = vrot.lane.b32.xlu0 %v3165, 48
    %v3170 = vpop.permute.xlu0 %3169
    %v3172 = vadd.f32 %v2768, %v3170
    %v3173 = vxor.u32 %v3172, 2147483648
    %v3174 = vmul.f32 %v3173, 1.442695
    %v3175 = vpow.pop %v3174
    %v3176 = vadd.f32 %v3175, 1.0
    %v3177 = vrcp.pop %v3176
    %v3178 = vmul.f32 1.0, %v3177
    %3179 = vrot.lane.b32.xlu0 %v3165, 16
    %v3180 = vpop.permute.xlu0 %3179
    %v3182 = vmul.f32 %v3178, %v3180
    %3184 = vrot.lane.b32.xlu0 %v3182, 32
    %v3185 = vpop.permute.xlu0 %3184
    %v3187 = vadd.f32 %v2768, %v3185
    %v3188 = vtanh.pop %v3187
    %v3189 = vsub.f32 1.0, %v3178
    %3191 = vrot.lane.b32.xlu0 %v3188, 112
    %v3192 = vpop.permute.xlu0 %3191
    %v3194 = vmul.f32 %v3189, %v3192
    %v3195 = vmul.f32 %v3178, %v3092
    %v3196 = vadd.f32 %v3194, %v3195
    %v3197 = vld [vmem:[%s57] sm:$0x1]
    %v3198 = vld [vmem:[%s59] sm:$0x1]
    %v3199 = vld [vmem:[#allocation2] sm:$0x1]
    %3201 = vrot.lane.b32.xlu0 %v3196, 64
    %v3202 = vpop.permute.xlu0 %3201
    %v3204 = vsel %vm362, %v3198, 0
    %v3206 = vsel %vm362, %v3202, 0
    %3208 = vmatprep.subr.mxu0 0.0
    %3209 = vmatpush1.xpose.msra.mxu0 0.0
    %3210 = vmatprep.subr.mxu0 0.0
    %3211 = vmatpush1.xpose.msra.mxu0 0.0
    %3212 = vmatprep.subr.mxu0 0.0
    %3213 = vmatpush1.xpose.msra.mxu0 0.0
    %3214 = vmatprep.subr.mxu0 0.0
    %3215 = vmatpush1.xpose.msra.mxu0 0.0
    %3216 = vmatprep.subr.mxu0 0.0
    %3217 = vmatpush1.xpose.msra.mxu0 0.0
    %3218 = vmatprep.subr.mxu0 0.0
    %3219 = vmatpush1.xpose.msra.mxu0 0.0
    %3220 = vmatprep.subr.mxu0 0.0
    %3221 = vmatpush1.xpose.msra.mxu0 0.0
    %3222 = vmatprep.subr.mxu0 0.0
    %3223 = vmatpush1.xpose.msra.mxu0 0.0
    %3224 = vmatprep.subr.mxu0 0.0
    %3225 = vmatpush1.xpose.msra.mxu0 0.0
    %3226 = vmatprep.subr.mxu0 0.0
    %3227 = vmatpush1.xpose.msra.mxu0 0.0
    %3228 = vmatprep.subr.mxu0 0.0
    %3229 = vmatpush1.xpose.msra.mxu0 0.0
    %3230 = vmatprep.subr.mxu0 0.0
    %3231 = vmatpush1.xpose.msra.mxu0 0.0
    %3232 = vmatprep.subr.mxu0 0.0
    %3233 = vmatpush1.xpose.msra.mxu0 0.0
    %3234 = vmatprep.subr.mxu0 0.0
    %3235 = vmatpush1.xpose.msra.mxu0 0.0
    %3236 = vmatprep.subr.mxu0 0.0
    %3237 = vmatpush1.xpose.msra.mxu0 0.0
    %3238 = vmatprep.subr.mxu0 0.0
    %3239 = vmatpush1.xpose.msra.mxu0 %v3206
    %3240 = vmatprep.subr.mxu0 0.0
    %3241 = vmatpush2.xpose.msra.mxu0 0.0
    %3242 = vmatprep.subr.mxu0 0.0
    %3243 = vmatpush2.xpose.msra.mxu0 0.0
    %3244 = vmatprep.subr.mxu0 0.0
    %3245 = vmatpush2.xpose.msra.mxu0 0.0
    %3246 = vmatprep.subr.mxu0 0.0
    %3247 = vmatpush2.xpose.msra.mxu0 0.0
    %3248 = vmatprep.subr.mxu0 0.0
    %3249 = vmatpush2.xpose.msra.mxu0 0.0
    %3250 = vmatprep.subr.mxu0 0.0
    %3251 = vmatpush2.xpose.msra.mxu0 0.0
    %3252 = vmatprep.subr.mxu0 0.0
    %3253 = vmatpush2.xpose.msra.mxu0 0.0
    %3254 = vmatprep.subr.mxu0 0.0
    %3255 = vmatpush2.xpose.msra.mxu0 0.0
    %3256 = vmatprep.subr.mxu0 0.0
    %3257 = vmatpush2.xpose.msra.mxu0 0.0
    %3258 = vmatprep.subr.mxu0 0.0
    %3259 = vmatpush2.xpose.msra.mxu0 0.0
    %3260 = vmatprep.subr.mxu0 0.0
    %3261 = vmatpush2.xpose.msra.mxu0 0.0
    %3262 = vmatprep.subr.mxu0 0.0
    %3263 = vmatpush2.xpose.msra.mxu0 0.0
    %3264 = vmatprep.subr.mxu0 0.0
    %3265 = vmatpush2.xpose.msra.mxu0 0.0
    %3266 = vmatprep.subr.mxu0 0.0
    %3267 = vmatpush2.xpose.msra.mxu0 0.0
    %3268 = vmatprep.subr.mxu0 0.0
    %3269 = vmatpush2.xpose.msra.mxu0 0.0
    %3270 = vmatprep.subr.mxu0 0.0
    %3271 = vmatpush2.xpose.msra.mxu0 0.0
    %3272 = vmatprep.mubr.f32.mxu0 0.0
    %3273 = vmatmul.mubr.f32.gmra.mxu0 %v3204
    %v3274 = vpop.f32.mrf.mxu0
    %v3275 = vadd.f32 0.0, %v3274
    %v3276 = vpop.f32.mrf.mxu0
    %3277 = vdwg.mxu0
    %v3279 = vsel %vm362, %v3197, 0
    %3281 = vmatprep.subr.mxu0 0.0
    %3282 = vmatpush1.xpose.msra.mxu0 0.0
    %3283 = vmatprep.subr.mxu0 0.0
    %3284 = vmatpush1.xpose.msra.mxu0 0.0
    %3285 = vmatprep.subr.mxu0 0.0
    %3286 = vmatpush1.xpose.msra.mxu0 0.0
    %3287 = vmatprep.subr.mxu0 0.0
    %3288 = vmatpush1.xpose.msra.mxu0 0.0
    %3289 = vmatprep.subr.mxu0 0.0
    %3290 = vmatpush1.xpose.msra.mxu0 0.0
    %3291 = vmatprep.subr.mxu0 0.0
    %3292 = vmatpush1.xpose.msra.mxu0 0.0
    %3293 = vmatprep.subr.mxu0 0.0
    %3294 = vmatpush1.xpose.msra.mxu0 0.0
    %3295 = vmatprep.subr.mxu0 0.0
    %3296 = vmatpush1.xpose.msra.mxu0 0.0
    %3297 = vmatprep.subr.mxu0 0.0
    %3298 = vmatpush1.xpose.msra.mxu0 0.0
    %3299 = vmatprep.subr.mxu0 0.0
    %3300 = vmatpush1.xpose.msra.mxu0 0.0
    %3301 = vmatprep.subr.mxu0 0.0
    %3302 = vmatpush1.xpose.msra.mxu0 0.0
    %3303 = vmatprep.subr.mxu0 0.0
    %3304 = vmatpush1.xpose.msra.mxu0 0.0
    %3305 = vmatprep.subr.mxu0 0.0
    %3306 = vmatpush1.xpose.msra.mxu0 0.0
    %3307 = vmatprep.subr.mxu0 0.0
    %3308 = vmatpush1.xpose.msra.mxu0 0.0
    %3309 = vmatprep.subr.mxu0 0.0
    %3310 = vmatpush1.xpose.msra.mxu0 0.0
    %3311 = vmatprep.subr.mxu0 0.0
    %3312 = vmatpush1.xpose.msra.mxu0 %v2890
    %3313 = vmatprep.subr.mxu0 0.0
    %3314 = vmatpush2.xpose.msra.mxu0 0.0
    %3315 = vmatprep.subr.mxu0 0.0
    %3316 = vmatpush2.xpose.msra.mxu0 0.0
    %3317 = vmatprep.subr.mxu0 0.0
    %3318 = vmatpush2.xpose.msra.mxu0 0.0
    %3319 = vmatprep.subr.mxu0 0.0
    %3320 = vmatpush2.xpose.msra.mxu0 0.0
    %3321 = vmatprep.subr.mxu0 0.0
    %3322 = vmatpush2.xpose.msra.mxu0 0.0
    %3323 = vmatprep.subr.mxu0 0.0
    %3324 = vmatpush2.xpose.msra.mxu0 0.0
    %3325 = vmatprep.subr.mxu0 0.0
    %3326 = vmatpush2.xpose.msra.mxu0 0.0
    %3327 = vmatprep.subr.mxu0 0.0
    %3328 = vmatpush2.xpose.msra.mxu0 0.0
    %3329 = vmatprep.subr.mxu0 0.0
    %3330 = vmatpush2.xpose.msra.mxu0 0.0
    %3331 = vmatprep.subr.mxu0 0.0
    %3332 = vmatpush2.xpose.msra.mxu0 0.0
    %3333 = vmatprep.subr.mxu0 0.0
    %3334 = vmatpush2.xpose.msra.mxu0 0.0
    %3335 = vmatprep.subr.mxu0 0.0
    %3336 = vmatpush2.xpose.msra.mxu0 0.0
    %3337 = vmatprep.subr.mxu0 0.0
    %3338 = vmatpush2.xpose.msra.mxu0 0.0
    %3339 = vmatprep.subr.mxu0 0.0
    %3340 = vmatpush2.xpose.msra.mxu0 0.0
    %3341 = vmatprep.subr.mxu0 0.0
    %3342 = vmatpush2.xpose.msra.mxu0 0.0
    %3343 = vmatprep.subr.mxu0 0.0
    %3344 = vmatpush2.xpose.msra.mxu0 0.0
    %3345 = vmatprep.mubr.f32.mxu0 0.0
    %3346 = vmatmul.mubr.f32.gmra.mxu0 %v3279
    %v3347 = vpop.f32.mrf.mxu0
    %v3348 = vadd.f32 %v3275, %v3347
    %v3349 = vpop.f32.mrf.mxu0
    %3350 = vdwg.mxu0
    %3352 = vset.pattern.permute.xlu0 0
    %3353 = vperm.xlu0 %3352, %v3199
    %v3354 = vpop.permute.xlu0 %3353
    %v3356 = vlaneseq
    %v3357 = vshrl.u32 %v3356, 7
    %v3358 = vsub.s32 0, %v3357
    %v3359 = vrot.slane %v3354, %v3358
    %v3360 = vadd.f32 %v3348, %v3359
    %v3361 = vxor.u32 %v3360, 2147483648
    %v3362 = vmul.f32 %v3361, 1.442695
    %v3363 = vpow.pop %v3362
    %v3364 = vadd.f32 %v3363, 1.0
    %v3365 = vrcp.pop %v3364
    %v3366 = vmul.f32 1.0, %v3365
    %v3367 = vmul.f32 %v3366, %v219
    %3368 = vmatprep.subr.mxu0 0.0
    %3369 = vmatpush1.xpose.msra.mxu0 0.0
    %3370 = vmatprep.subr.mxu0 0.0
    %3371 = vmatpush1.xpose.msra.mxu0 0.0
    %3372 = vmatprep.subr.mxu0 0.0
    %3373 = vmatpush1.xpose.msra.mxu0 0.0
    %3374 = vmatprep.subr.mxu0 0.0
    %3375 = vmatpush1.xpose.msra.mxu0 0.0
    %3376 = vmatprep.subr.mxu0 0.0
    %3377 = vmatpush1.xpose.msra.mxu0 0.0
    %3378 = vmatprep.subr.mxu0 0.0
    %3379 = vmatpush1.xpose.msra.mxu0 0.0
    %3380 = vmatprep.subr.mxu0 0.0
    %3381 = vmatpush1.xpose.msra.mxu0 0.0
    %3382 = vmatprep.subr.mxu0 0.0
    %3383 = vmatpush1.xpose.msra.mxu0 0.0
    %3384 = vmatprep.subr.mxu0 0.0
    %3385 = vmatpush1.xpose.msra.mxu0 0.0
    %3386 = vmatprep.subr.mxu0 0.0
    %3387 = vmatpush1.xpose.msra.mxu0 0.0
    %3388 = vmatprep.subr.mxu0 0.0
    %3389 = vmatpush1.xpose.msra.mxu0 0.0
    %3390 = vmatprep.subr.mxu0 0.0
    %3391 = vmatpush1.xpose.msra.mxu0 0.0
    %3392 = vmatprep.subr.mxu0 0.0
    %3393 = vmatpush1.xpose.msra.mxu0 0.0
    %3394 = vmatprep.subr.mxu0 0.0
    %3395 = vmatpush1.xpose.msra.mxu0 0.0
    %3396 = vmatprep.subr.mxu0 0.0
    %3397 = vmatpush1.xpose.msra.mxu0 0.0
    %3398 = vmatprep.subr.mxu0 0.0
    %3399 = vmatpush1.xpose.msra.mxu0 %v3096
    %3400 = vmatprep.subr.mxu0 0.0
    %3401 = vmatpush2.xpose.msra.mxu0 0.0
    %3402 = vmatprep.subr.mxu0 0.0
    %3403 = vmatpush2.xpose.msra.mxu0 0.0
    %3404 = vmatprep.subr.mxu0 0.0
    %3405 = vmatpush2.xpose.msra.mxu0 0.0
    %3406 = vmatprep.subr.mxu0 0.0
    %3407 = vmatpush2.xpose.msra.mxu0 0.0
    %3408 = vmatprep.subr.mxu0 0.0
    %3409 = vmatpush2.xpose.msra.mxu0 0.0
    %3410 = vmatprep.subr.mxu0 0.0
    %3411 = vmatpush2.xpose.msra.mxu0 0.0
    %3412 = vmatprep.subr.mxu0 0.0
    %3413 = vmatpush2.xpose.msra.mxu0 0.0
    %3414 = vmatprep.subr.mxu0 0.0
    %3415 = vmatpush2.xpose.msra.mxu0 0.0
    %3416 = vmatprep.subr.mxu0 0.0
    %3417 = vmatpush2.xpose.msra.mxu0 0.0
    %3418 = vmatprep.subr.mxu0 0.0
    %3419 = vmatpush2.xpose.msra.mxu0 0.0
    %3420 = vmatprep.subr.mxu0 0.0
    %3421 = vmatpush2.xpose.msra.mxu0 0.0
    %3422 = vmatprep.subr.mxu0 0.0
    %3423 = vmatpush2.xpose.msra.mxu0 0.0
    %3424 = vmatprep.subr.mxu0 0.0
    %3425 = vmatpush2.xpose.msra.mxu0 0.0
    %3426 = vmatprep.subr.mxu0 0.0
    %3427 = vmatpush2.xpose.msra.mxu0 0.0
    %3428 = vmatprep.subr.mxu0 0.0
    %3429 = vmatpush2.xpose.msra.mxu0 0.0
    %3430 = vmatprep.subr.mxu0 0.0
    %3431 = vmatpush2.xpose.msra.mxu0 0.0
    %3432 = vmatprep.mubr.f32.mxu0 0.0
    %3433 = vmatmul.mubr.f32.gmra.mxu0 %v3204
    %v3434 = vpop.f32.mrf.mxu0
    %v3435 = vadd.f32 0.0, %v3434
    %v3436 = vpop.f32.mrf.mxu0
    %3437 = vdwg.mxu0
    %3439 = vrot.lane.b32.xlu0 %v2987, 112
    %v3440 = vpop.permute.xlu0 %3439
    %v3441 = vsel %vm362, %v3440, 0
    %3443 = vmatprep.subr.mxu0 0.0
    %3444 = vmatpush1.xpose.msra.mxu0 0.0
    %3445 = vmatprep.subr.mxu0 0.0
    %3446 = vmatpush1.xpose.msra.mxu0 0.0
    %3447 = vmatprep.subr.mxu0 0.0
    %3448 = vmatpush1.xpose.msra.mxu0 0.0
    %3449 = vmatprep.subr.mxu0 0.0
    %3450 = vmatpush1.xpose.msra.mxu0 0.0
    %3451 = vmatprep.subr.mxu0 0.0
    %3452 = vmatpush1.xpose.msra.mxu0 0.0
    %3453 = vmatprep.subr.mxu0 0.0
    %3454 = vmatpush1.xpose.msra.mxu0 0.0
    %3455 = vmatprep.subr.mxu0 0.0
    %3456 = vmatpush1.xpose.msra.mxu0 0.0
    %3457 = vmatprep.subr.mxu0 0.0
    %3458 = vmatpush1.xpose.msra.mxu0 0.0
    %3459 = vmatprep.subr.mxu0 0.0
    %3460 = vmatpush1.xpose.msra.mxu0 0.0
    %3461 = vmatprep.subr.mxu0 0.0
    %3462 = vmatpush1.xpose.msra.mxu0 0.0
    %3463 = vmatprep.subr.mxu0 0.0
    %3464 = vmatpush1.xpose.msra.mxu0 0.0
    %3465 = vmatprep.subr.mxu0 0.0
    %3466 = vmatpush1.xpose.msra.mxu0 0.0
    %3467 = vmatprep.subr.mxu0 0.0
    %3468 = vmatpush1.xpose.msra.mxu0 0.0
    %3469 = vmatprep.subr.mxu0 0.0
    %3470 = vmatpush1.xpose.msra.mxu0 0.0
    %3471 = vmatprep.subr.mxu0 0.0
    %3472 = vmatpush1.xpose.msra.mxu0 0.0
    %3473 = vmatprep.subr.mxu0 0.0
    %3474 = vmatpush1.xpose.msra.mxu0 %v3441
    %3475 = vmatprep.subr.mxu0 0.0
    %3476 = vmatpush2.xpose.msra.mxu0 0.0
    %3477 = vmatprep.subr.mxu0 0.0
    %3478 = vmatpush2.xpose.msra.mxu0 0.0
    %3479 = vmatprep.subr.mxu0 0.0
    %3480 = vmatpush2.xpose.msra.mxu0 0.0
    %3481 = vmatprep.subr.mxu0 0.0
    %3482 = vmatpush2.xpose.msra.mxu0 0.0
    %3483 = vmatprep.subr.mxu0 0.0
    %3484 = vmatpush2.xpose.msra.mxu0 0.0
    %3485 = vmatprep.subr.mxu0 0.0
    %3486 = vmatpush2.xpose.msra.mxu0 0.0
    %3487 = vmatprep.subr.mxu0 0.0
    %3488 = vmatpush2.xpose.msra.mxu0 0.0
    %3489 = vmatprep.subr.mxu0 0.0
    %3490 = vmatpush2.xpose.msra.mxu0 0.0
    %3491 = vmatprep.subr.mxu0 0.0
    %3492 = vmatpush2.xpose.msra.mxu0 0.0
    %3493 = vmatprep.subr.mxu0 0.0
    %3494 = vmatpush2.xpose.msra.mxu0 0.0
    %3495 = vmatprep.subr.mxu0 0.0
    %3496 = vmatpush2.xpose.msra.mxu0 0.0
    %3497 = vmatprep.subr.mxu0 0.0
    %3498 = vmatpush2.xpose.msra.mxu0 0.0
    %3499 = vmatprep.subr.mxu0 0.0
    %3500 = vmatpush2.xpose.msra.mxu0 0.0
    %3501 = vmatprep.subr.mxu0 0.0
    %3502 = vmatpush2.xpose.msra.mxu0 0.0
    %3503 = vmatprep.subr.mxu0 0.0
    %3504 = vmatpush2.xpose.msra.mxu0 0.0
    %3505 = vmatprep.subr.mxu0 0.0
    %3506 = vmatpush2.xpose.msra.mxu0 0.0
    %3507 = vmatprep.mubr.f32.mxu0 0.0
    %3508 = vmatmul.mubr.f32.gmra.mxu0 %v3279
    %v3509 = vpop.f32.mrf.mxu0
    %v3510 = vadd.f32 %v3435, %v3509
    %v3511 = vpop.f32.mrf.mxu0
    %3512 = vdwg.mxu0
    %v3513 = vadd.f32 %v3510, %v3359
    %v3514 = vxor.u32 %v3513, 2147483648
    %v3515 = vmul.f32 %v3514, 1.442695
    %v3516 = vpow.pop %v3515
    %v3517 = vadd.f32 %v3516, 1.0
    %v3518 = vrcp.pop %v3517
    %v3519 = vmul.f32 1.0, %v3518
    %v3521 = vrot.slane %v219, 1
    %v3523 = vmul.f32 %v3519, %v3521
    %v3525 = vrot.slane %v3523, 7
    %vm3527 = vcmask 1040384
    %v3528 = vsel %vm3527, %v3367, %v3525
    %vm3529 = vcmask 58368
    %3530 = vst.msk [vmem:[#allocation5] sm:$0x3] %vm3529, %v3528
    // Predicated region
    $region126: #{rac_forward.1} parent=1 // pred_check
      _
    $region127: #{rac_forward.1} parent=1 // pred_check_branch
      %3532 = sbr.rel (0) target = $region129
    $region128: #{rac_forward.1} parent=1 // pred_region
      %s3534 = ssub.s32 32, 32
      %3535 = vsyncadd [#allocation4], %s3534
      %s3537 = sshll.u32 [#allocation3], 4
      %s3538 = int_to_ptr.vmem [resolvable:$true] %s3537
      %3540 = dma.vmem_to_hbm [thread:$0]  %s3538, 32, %s63, [#allocation4]
    $region129: #{rac_forward.1} parent=1 // pred_fallthru
      _
    // Predicated region
    $region130: #{rac_forward.1} parent=1 // pred_check
      _
    $region131: #{rac_forward.1} parent=1 // pred_check_branch
      %3542 = sbr.rel (0) target = $region133
    $region132: #{rac_forward.1} parent=1 // pred_region
      %s3544 = ssub.s32 32, 32
      %3545 = vsyncadd [#allocation6], %s3544
      %s3547 = sshll.u32 [#allocation5], 4
      %s3548 = int_to_ptr.vmem [resolvable:$true] %s3547
      %3550 = dma.vmem_to_hbm [thread:$0]  %s3548, 32, %s65, [#allocation6]
    $region133: #{rac_forward.1} parent=1 // pred_fallthru
      _
    // Predicated region
    $region134: #{rac_forward.1} parent=1 // pred_check
      _
    $region135: #{rac_forward.1} parent=1 // pred_check_branch
      %3552 = sbr.rel (0) target = $region137
    $region136: #{rac_forward.1} parent=1 // pred_region
      _
    $region137: #{rac_forward.1} parent=1 // pred_fallthru
      _
    // Predicated region
    $region138: #{rac_forward.1} parent=1 // pred_check
      _
    $region139: #{rac_forward.1} parent=1 // pred_check_branch
      %3554 = sbr.rel (0) target = $region141
    $region140: #{rac_forward.1} parent=1 // pred_region
      %3555 = dma.done [#allocation4], 32
    $region141: #{rac_forward.1} parent=1 // pred_fallthru
      _
    // Predicated region
    $region142: #{rac_forward.1} parent=1 // pred_check
      _
    $region143: #{rac_forward.1} parent=1 // pred_check_branch
      %3557 = sbr.rel (0) target = $region145
    $region144: #{rac_forward.1} parent=1 // pred_region
      %3558 = dma.done [#allocation6], 32
    $region145: #{rac_forward.1} parent=1 // pred_fallthru
      _
    // Predicated region
    $region146: #{rac_forward.1} parent=1 // pred_check
      _
    $region147: #{rac_forward.1} parent=1 // pred_check_branch
      %3560 = sbr.rel (0) target = $region149
    $region148: #{rac_forward.1} parent=1 // pred_region
      _
    $region149: #{rac_forward.1} parent=1 // pred_fallthru
      _
    %3561 = vsyncpa [#allocation4], 1
    %3562 = vsyncpa [#allocation6], 1

</llo_original>
